<compile_context>
chip_gen: v7x
topology: tpu7x:2x2x1
jax: 0.10.0
libtpu: 0.0.40
codegen_flags: <defaults>
</compile_context>

<pallas_src>
import functools

import jax
import jax.numpy as jnp
from jax.experimental import pallas as pl
from jax.experimental.pallas import tpu as pltpu

BN_EPS = 1e-5


def _make_divisible(v, divisor, min_value=None):
    if min_value is None:
        min_value = divisor
    new_v = max(min_value, int(v + divisor / 2) // divisor * divisor)
    if new_v < 0.9 * v:
        new_v += divisor
    return new_v


# ---------------------------------------------------------------------------
# Fully fused MBConv kernel (one image per grid step).
#   expand 1x1 + BN + SiLU  ->  dw 3x3 + BN + SiLU  ->  SE pool + MLP gate
#   ->  channel scale  ->  project 1x1 + BN  (+ identity residual)
# ---------------------------------------------------------------------------
def _mbconv_kernel(x_ref, w_exp_ref, s1_ref, b1_ref,
                   w_dw_ref, s2_ref, b2_ref,
                   se_w1_ref, se_b1_ref, se_w2_ref, se_b2_ref,
                   w_proj_ref, s3_ref, b3_ref,
                   o_ref, ypad_sc, *, identity):
    h = o_ref.shape[1]
    w = o_ref.shape[2]
    cin = x_ref.shape[3]
    hid = w_exp_ref.shape[1]
    cout = o_ref.shape[3]

    x = x_ref[...].astype(jnp.float32)                                 # (1,H,W,cin)

    # --- 1x1 expand conv (channel matmul) + folded BN + SiLU ---
    y = jnp.dot(x.reshape(h * w, cin), w_exp_ref[...],
                preferred_element_type=jnp.float32)                    # (H*W, hid)
    y = y * s1_ref[...][0] + b1_ref[...][0]
    y = y * jax.nn.sigmoid(y)                                          # SiLU

    # --- 3x3 depthwise conv (stride 1, pad 1): halo built in VMEM scratch ---
    ypad_sc[...] = jnp.zeros_like(ypad_sc)
    ypad_sc[:, 1:h + 1, 1:w + 1, :] = y.reshape(1, h, w, hid)

    wdw = w_dw_ref[...].astype(jnp.float32)                            # (3,3,hid)
    acc = jnp.zeros((1, h, w, hid), jnp.float32)
    for kh in range(3):
        for kw in range(3):
            tap = ypad_sc[:, kh:kh + h, kw:kw + w, :]
            acc = acc + tap * wdw[kh, kw]                              # VPU MAC

    y2 = acc * s2_ref[...][0] + b2_ref[...][0]
    y2 = y2 * jax.nn.sigmoid(y2)                                       # SiLU, (1,H,W,hid)

    # --- SE: global average pool + 2-layer MLP gate (tiny matmuls) ---
    pooled = jnp.mean(y2, axis=(1, 2))                                 # (1, hid)
    t = jnp.dot(pooled, se_w1_ref[...],
                preferred_element_type=jnp.float32) + se_b1_ref[...]
    t = t * jax.nn.sigmoid(t)                                          # SiLU
    g = jnp.dot(t, se_w2_ref[...],
                preferred_element_type=jnp.float32) + se_b2_ref[...]
    gate = jax.nn.sigmoid(g)                                           # (1, hid)

    y2 = y2 * gate[0]                                                  # channel scale

    # --- 1x1 projection conv + folded BN (+ identity residual) ---
    z = jnp.dot(y2.reshape(h * w, hid), w_proj_ref[...],
                preferred_element_type=jnp.float32)                    # (H*W, cout)
    z = z * s3_ref[...][0] + b3_ref[...][0]
    z = z.reshape(1, h, w, cout)
    if identity:
        z = z + x                                                      # cin == cout
    o_ref[...] = z.astype(o_ref.dtype)


def mbconv_forward(x_nchw, params, *, identity):
    x = jnp.transpose(x_nchw, (0, 2, 3, 1))                            # NCHW -> NHWC
    b, h, w, cin = x.shape
    hid = params["w_expand"].shape[1]
    mid = params["se_w1"].shape[1]
    cout = params["w_proj"].shape[1]

    const2 = lambda i: (0, 0)
    out = pl.pallas_call(
        functools.partial(_mbconv_kernel, identity=identity),
        out_shape=jax.ShapeDtypeStruct((b, h, w, cout), x.dtype),
        grid=(b,),
        in_specs=[
            pl.BlockSpec((1, h, w, cin), lambda i: (i, 0, 0, 0)),
            pl.BlockSpec((cin, hid), const2),
            pl.BlockSpec((1, hid), const2),
            pl.BlockSpec((1, hid), const2),
            pl.BlockSpec((3, 3, hid), lambda i: (0, 0, 0)),
            pl.BlockSpec((1, hid), const2),
            pl.BlockSpec((1, hid), const2),
            pl.BlockSpec((hid, mid), const2),
            pl.BlockSpec((1, mid), const2),
            pl.BlockSpec((mid, hid), const2),
            pl.BlockSpec((1, hid), const2),
            pl.BlockSpec((hid, cout), const2),
            pl.BlockSpec((1, cout), const2),
            pl.BlockSpec((1, cout), const2),
        ],
        out_specs=pl.BlockSpec((1, h, w, cout), lambda i: (i, 0, 0, 0)),
        scratch_shapes=[pltpu.VMEM((1, h + 2, w + 2, hid), jnp.float32)],
        compiler_params=pltpu.CompilerParams(dimension_semantics=("parallel",)),
    )(
        x,
        params["w_expand"],
        params["bn1_scale"].reshape(1, hid), params["bn1_shift"].reshape(1, hid),
        params["w_dw"],
        params["bn2_scale"].reshape(1, hid), params["bn2_shift"].reshape(1, hid),
        params["se_w1"], params["se_b1"].reshape(1, mid),
        params["se_w2"], params["se_b2"].reshape(1, hid),
        params["w_proj"],
        params["bn3_scale"].reshape(1, cout), params["bn3_shift"].reshape(1, cout),
    )
    return jnp.transpose(out, (0, 3, 1, 2))                            # NHWC -> NCHW


# ---------------------------------------------------------------------------
# Pure-JAX reference (NHWC), mirrors PyTorch semantics for eval-mode BN
# ---------------------------------------------------------------------------
def mbconv_reference(x_nchw, params, *, identity):
    x = jnp.transpose(x_nchw, (0, 2, 3, 1)).astype(jnp.float32)
    b, h, w, _ = x.shape
    silu = lambda v: v * jax.nn.sigmoid(v)

    y = jnp.einsum("bhwi,io->bhwo", x, params["w_expand"])
    y = silu(y * params["bn1_scale"] + params["bn1_shift"])

    xp = jnp.pad(y, ((0, 0), (1, 1), (1, 1), (0, 0)))
    acc = jnp.zeros_like(y)
    for kh in range(3):
        for kw in range(3):
            acc = acc + xp[:, kh:kh + h, kw:kw + w, :] * params["w_dw"][kh, kw]
    y = silu(acc * params["bn2_scale"] + params["bn2_shift"])

    pooled = y.mean(axis=(1, 2))
    t = silu(pooled @ params["se_w1"] + params["se_b1"])
    gate = jax.nn.sigmoid(t @ params["se_w2"] + params["se_b2"])
    y = y * gate[:, None, None, :]

    z = jnp.einsum("bhwi,io->bhwo", y, params["w_proj"])
    z = z * params["bn3_scale"] + params["bn3_shift"]
    if identity:
        z = z + x
    return jnp.transpose(z, (0, 3, 1, 2))


def _fold_bn(gamma, beta, mean, var):
    scale = gamma / jnp.sqrt(var + BN_EPS)
    shift = beta - mean * scale
    return scale, shift


def make_params(key, inp, oup, expand_ratio):
    hid = round(inp * expand_ratio)
    mid = _make_divisible(inp // 4, 8)
    ks = jax.random.split(key, 16)

    def bn(k, c):
        k1, k2, k3, k4 = jax.random.split(k, 4)
        gamma = 1.0 + 0.1 * jax.random.normal(k1, (c,), jnp.float32)
        beta = 0.1 * jax.random.normal(k2, (c,), jnp.float32)
        mean = 0.1 * jax.random.normal(k3, (c,), jnp.float32)
        var = jax.random.uniform(k4, (c,), jnp.float32, 0.5, 1.5)
        return _fold_bn(gamma, beta, mean, var)

    bn1_scale, bn1_shift = bn(ks[0], hid)
    bn2_scale, bn2_shift = bn(ks[1], hid)
    bn3_scale, bn3_shift = bn(ks[2], oup)

    return dict(
        # torch Conv2d(inp, hid, 1) weight (hid, inp, 1, 1) -> (inp, hid)
        w_expand=0.2 * jax.random.normal(ks[3], (inp, hid), jnp.float32),
        bn1_scale=bn1_scale, bn1_shift=bn1_shift,
        # torch Conv2d(hid, hid, 3, groups=hid) weight (hid, 1, 3, 3) -> (3, 3, hid)
        w_dw=0.2 * jax.random.normal(ks[4], (3, 3, hid), jnp.float32),
        bn2_scale=bn2_scale, bn2_shift=bn2_shift,
        # SE: Linear(hid, mid), Linear(mid, hid); torch weight (out, in) -> (in, out)
        se_w1=0.2 * jax.random.normal(ks[5], (hid, mid), jnp.float32),
        se_b1=0.1 * jax.random.normal(ks[6], (mid,), jnp.float32),
        se_w2=0.2 * jax.random.normal(ks[7], (mid, hid), jnp.float32),
        se_b2=0.1 * jax.random.normal(ks[8], (hid,), jnp.float32),
        # torch Conv2d(hid, oup, 1) weight (oup, hid, 1, 1) -> (hid, oup)
        w_proj=0.2 * jax.random.normal(ks[9], (hid, oup), jnp.float32),
        bn3_scale=bn3_scale, bn3_shift=bn3_shift,
    )


if __name__ == "__main__":
    key = jax.random.PRNGKey(0)

    configs = [
        # (inp, oup, stride, expand_ratio)  -> identity & non-identity paths
        (4, 4, 1, 4),   # identity residual (cin == cout, stride 1)
        (4, 8, 1, 2),   # no residual (trace-time variant without the add)
    ]

    for idx, (inp, oup, stride, expand_ratio) in enumerate(configs):
        identity = (stride == 1 and inp == oup)
        kx, kp, key = jax.random.split(key, 3)
        x = jax.random.normal(kx, (2, inp, 16, 16), jnp.float32)   # NCHW
        params = make_params(kp, inp, oup, expand_ratio)

        out = mbconv_forward(x, params, identity=identity)
        out = jax.block_until_ready(out)

        ref = mbconv_reference(x, params, identity=identity)
        assert out.shape == ref.shape == (2, oup, 16, 16)
        assert jnp.allclose(out, ref, atol=2e-4, rtol=2e-4), \
            f"Pallas output mismatch for config {idx}"

    print("KERNEL_OK")
</pallas_src>

<mosaic_0001>
module attributes {stable_mosaic.version = 11 : i64} {
  func.func @_mbconv_kernel(%arg0: i32, %arg1: memref<1x16x16x4xf32, #tpu.memory_space<vmem>>, %arg2: memref<4x16xf32, #tpu.memory_space<vmem>>, %arg3: memref<1x16xf32, #tpu.memory_space<vmem>>, %arg4: memref<1x16xf32, #tpu.memory_space<vmem>>, %arg5: memref<3x3x16xf32, #tpu.memory_space<vmem>>, %arg6: memref<1x16xf32, #tpu.memory_space<vmem>>, %arg7: memref<1x16xf32, #tpu.memory_space<vmem>>, %arg8: memref<16x8xf32, #tpu.memory_space<vmem>>, %arg9: memref<1x8xf32, #tpu.memory_space<vmem>>, %arg10: memref<8x16xf32, #tpu.memory_space<vmem>>, %arg11: memref<1x16xf32, #tpu.memory_space<vmem>>, %arg12: memref<16x4xf32, #tpu.memory_space<vmem>>, %arg13: memref<1x4xf32, #tpu.memory_space<vmem>>, %arg14: memref<1x4xf32, #tpu.memory_space<vmem>>, %arg15: memref<1x16x16x4xf32, #tpu.memory_space<vmem>>, %arg16: memref<1x18x18x16xf32, #tpu.memory_space<vmem>>) attributes {dimension_semantics = [#tpu.dimension_semantics<parallel>], iteration_bounds = array<i64: 2>, scalar_prefetch = 0 : i64, scratch_operands = 1 : i64, tpu.core_type = #tpu.core_type<tc>, window_params = [{transform_indices = @transform_0, window_bounds = array<i64: 1, 16, 16, 4>}, {pipeline_mode = #tpu.pipeline_mode<synchronous>, transform_indices = @transform_1, window_bounds = array<i64: 4, 16>}, {pipeline_mode = #tpu.pipeline_mode<synchronous>, transform_indices = @transform_2, window_bounds = array<i64: 1, 16>}, {pipeline_mode = #tpu.pipeline_mode<synchronous>, transform_indices = @transform_3, window_bounds = array<i64: 1, 16>}, {pipeline_mode = #tpu.pipeline_mode<synchronous>, transform_indices = @transform_4, window_bounds = array<i64: 3, 3, 16>}, {pipeline_mode = #tpu.pipeline_mode<synchronous>, transform_indices = @transform_5, window_bounds = array<i64: 1, 16>}, {pipeline_mode = #tpu.pipeline_mode<synchronous>, transform_indices = @transform_6, window_bounds = array<i64: 1, 16>}, {pipeline_mode = #tpu.pipeline_mode<synchronous>, transform_indices = @transform_7, window_bounds = array<i64: 16, 8>}, {pipeline_mode = #tpu.pipeline_mode<synchronous>, transform_indices = @transform_8, window_bounds = array<i64: 1, 8>}, {pipeline_mode = #tpu.pipeline_mode<synchronous>, transform_indices = @transform_9, window_bounds = array<i64: 8, 16>}, {pipeline_mode = #tpu.pipeline_mode<synchronous>, transform_indices = @transform_10, window_bounds = array<i64: 1, 16>}, {pipeline_mode = #tpu.pipeline_mode<synchronous>, transform_indices = @transform_11, window_bounds = array<i64: 16, 4>}, {pipeline_mode = #tpu.pipeline_mode<synchronous>, transform_indices = @transform_12, window_bounds = array<i64: 1, 4>}, {pipeline_mode = #tpu.pipeline_mode<synchronous>, transform_indices = @transform_13, window_bounds = array<i64: 1, 4>}, {transform_indices = @transform_14, window_bounds = array<i64: 1, 16, 16, 4>}]} {
    %c0 = arith.constant 0 : index
    %c0_0 = arith.constant 0 : index
    %c0_1 = arith.constant 0 : index
    %c0_2 = arith.constant 0 : index
    %0 = vector.load %arg1[%c0, %c0_0, %c0_1, %c0_2] : memref<1x16x16x4xf32, #tpu.memory_space<vmem>>, vector<1x16x16x4xf32>
    %1 = vector.shape_cast %0 : vector<1x16x16x4xf32> to vector<256x4xf32>
    %c0_3 = arith.constant 0 : index
    %c0_4 = arith.constant 0 : index
    %2 = vector.load %arg2[%c0_3, %c0_4] : memref<4x16xf32, #tpu.memory_space<vmem>>, vector<4x16xf32>
    %cst = arith.constant dense<0.000000e+00> : vector<256x16xf32>
    %3 = tpu.matmul %1, %2, %cst {dimension_numbers = #tpu.dot_dimension_numbers<[1], [0], [0], [1], [0, 0, 1, 1], [], []>} : vector<256x4xf32>, vector<4x16xf32>, vector<256x16xf32> -> vector<256x16xf32>
    %c0_5 = arith.constant 0 : index
    %c0_6 = arith.constant 0 : index
    %4 = vector.load %arg3[%c0_5, %c0_6] : memref<1x16xf32, #tpu.memory_space<vmem>>, vector<1x16xf32>
    %5 = vector.shape_cast %4 : vector<1x16xf32> to vector<16xf32>
    %6 = vector.shape_cast %5 : vector<16xf32> to vector<1x16xf32>
    %7 = vector.broadcast %6 : vector<1x16xf32> to vector<256x16xf32>
    %8 = arith.mulf %3, %7 : vector<256x16xf32>
    %c0_7 = arith.constant 0 : index
    %c0_8 = arith.constant 0 : index
    %9 = vector.load %arg4[%c0_7, %c0_8] : memref<1x16xf32, #tpu.memory_space<vmem>>, vector<1x16xf32>
    %10 = vector.shape_cast %9 : vector<1x16xf32> to vector<16xf32>
    %11 = vector.shape_cast %10 : vector<16xf32> to vector<1x16xf32>
    %12 = vector.broadcast %11 : vector<1x16xf32> to vector<256x16xf32>
    %13 = arith.addf %8, %12 : vector<256x16xf32>
    %14 = arith.negf %13 : vector<256x16xf32>
    %15 = math.exp %14 : vector<256x16xf32>
    %cst_9 = arith.constant 1.000000e+00 : f32
    %16 = vector.broadcast %cst_9 : f32 to vector<256x16xf32>
    %17 = arith.addf %16, %15 : vector<256x16xf32>
    %18 = arith.divf %16, %17 : vector<256x16xf32>
    %19 = arith.mulf %13, %18 : vector<256x16xf32>
    %cst_10 = arith.constant 0.000000e+00 : f32
    %20 = vector.broadcast %cst_10 : f32 to vector<1x18x18x16xf32>
    %c0_11 = arith.constant 0 : index
    %c0_12 = arith.constant 0 : index
    %c0_13 = arith.constant 0 : index
    %c0_14 = arith.constant 0 : index
    %21 = vector.load %arg16[%c0_11, %c0_12, %c0_13, %c0_14] : memref<1x18x18x16xf32, #tpu.memory_space<vmem>>, vector<1x18x18x16xf32>
    tpu.vector_store %arg16[%c0_11, %c0_12, %c0_13, %c0_14], %20 {strides = array<i32>} : memref<1x18x18x16xf32, #tpu.memory_space<vmem>>, vector<1x18x18x16xf32>,
    %22 = vector.shape_cast %19 : vector<256x16xf32> to vector<1x16x16x16xf32>
    %c0_15 = arith.constant 0 : index
    %c1 = arith.constant 1 : index
    %c1_16 = arith.constant 1 : index
    %c0_17 = arith.constant 0 : index
    %23 = vector.load %arg16[%c0_15, %c1, %c1_16, %c0_17] : memref<1x18x18x16xf32, #tpu.memory_space<vmem>>, vector<1x16x16x16xf32>
    tpu.vector_store %arg16[%c0_15, %c1, %c1_16, %c0_17], %22 {strides = array<i32>} : memref<1x18x18x16xf32, #tpu.memory_space<vmem>>, vector<1x16x16x16xf32>,
    %c0_18 = arith.constant 0 : index
    %c0_19 = arith.constant 0 : index
    %c0_20 = arith.constant 0 : index
    %24 = vector.load %arg5[%c0_18, %c0_19, %c0_20] : memref<3x3x16xf32, #tpu.memory_space<vmem>>, vector<3x3x16xf32>
    %cst_21 = arith.constant 0.000000e+00 : f32
    %25 = vector.broadcast %cst_21 : f32 to vector<1x16x16x16xf32>
    %c0_22 = arith.constant 0 : index
    %c0_23 = arith.constant 0 : index
    %c0_24 = arith.constant 0 : index
    %c0_25 = arith.constant 0 : index
    %26 = vector.load %arg16[%c0_22, %c0_23, %c0_24, %c0_25] : memref<1x18x18x16xf32, #tpu.memory_space<vmem>>, vector<1x16x16x16xf32>
    %27 = vector.extract_strided_slice %24 {offsets = [0, 0, 0], sizes = [1, 1, 16], strides = [1, 1, 1]} : vector<3x3x16xf32> to vector<1x1x16xf32>
    %28 = vector.shape_cast %27 : vector<1x1x16xf32> to vector<16xf32>
    %29 = vector.shape_cast %28 : vector<16xf32> to vector<1x1x1x16xf32>
    %30 = vector.broadcast %29 : vector<1x1x1x16xf32> to vector<1x16x16x16xf32>
    %31 = arith.mulf %26, %30 : vector<1x16x16x16xf32>
    %32 = arith.addf %25, %31 : vector<1x16x16x16xf32>
    %c0_26 = arith.constant 0 : index
    %c0_27 = arith.constant 0 : index
    %c1_28 = arith.constant 1 : index
    %c0_29 = arith.constant 0 : index
    %33 = vector.load %arg16[%c0_26, %c0_27, %c1_28, %c0_29] : memref<1x18x18x16xf32, #tpu.memory_space<vmem>>, vector<1x16x16x16xf32>
    %34 = vector.extract_strided_slice %24 {offsets = [0, 1, 0], sizes = [1, 1, 16], strides = [1, 1, 1]} : vector<3x3x16xf32> to vector<1x1x16xf32>
    %35 = vector.shape_cast %34 : vector<1x1x16xf32> to vector<16xf32>
    %36 = vector.shape_cast %35 : vector<16xf32> to vector<1x1x1x16xf32>
    %37 = vector.broadcast %36 : vector<1x1x1x16xf32> to vector<1x16x16x16xf32>
    %38 = arith.mulf %33, %37 : vector<1x16x16x16xf32>
    %39 = arith.addf %32, %38 : vector<1x16x16x16xf32>
    %c0_30 = arith.constant 0 : index
    %c0_31 = arith.constant 0 : index
    %c2 = arith.constant 2 : index
    %c0_32 = arith.constant 0 : index
    %40 = vector.load %arg16[%c0_30, %c0_31, %c2, %c0_32] : memref<1x18x18x16xf32, #tpu.memory_space<vmem>>, vector<1x16x16x16xf32>
    %41 = vector.extract_strided_slice %24 {offsets = [0, 2, 0], sizes = [1, 1, 16], strides = [1, 1, 1]} : vector<3x3x16xf32> to vector<1x1x16xf32>
    %42 = vector.shape_cast %41 : vector<1x1x16xf32> to vector<16xf32>
    %43 = vector.shape_cast %42 : vector<16xf32> to vector<1x1x1x16xf32>
    %44 = vector.broadcast %43 : vector<1x1x1x16xf32> to vector<1x16x16x16xf32>
    %45 = arith.mulf %40, %44 : vector<1x16x16x16xf32>
    %46 = arith.addf %39, %45 : vector<1x16x16x16xf32>
    %c0_33 = arith.constant 0 : index
    %c1_34 = arith.constant 1 : index
    %c0_35 = arith.constant 0 : index
    %c0_36 = arith.constant 0 : index
    %47 = vector.load %arg16[%c0_33, %c1_34, %c0_35, %c0_36] : memref<1x18x18x16xf32, #tpu.memory_space<vmem>>, vector<1x16x16x16xf32>
    %48 = vector.extract_strided_slice %24 {offsets = [1, 0, 0], sizes = [1, 1, 16], strides = [1, 1, 1]} : vector<3x3x16xf32> to vector<1x1x16xf32>
    %49 = vector.shape_cast %48 : vector<1x1x16xf32> to vector<16xf32>
    %50 = vector.shape_cast %49 : vector<16xf32> to vector<1x1x1x16xf32>
    %51 = vector.broadcast %50 : vector<1x1x1x16xf32> to vector<1x16x16x16xf32>
    %52 = arith.mulf %47, %51 : vector<1x16x16x16xf32>
    %53 = arith.addf %46, %52 : vector<1x16x16x16xf32>
    %c0_37 = arith.constant 0 : index
    %c1_38 = arith.constant 1 : index
    %c1_39 = arith.constant 1 : index
    %c0_40 = arith.constant 0 : index
    %54 = vector.load %arg16[%c0_37, %c1_38, %c1_39, %c0_40] : memref<1x18x18x16xf32, #tpu.memory_space<vmem>>, vector<1x16x16x16xf32>
    %55 = vector.extract_strided_slice %24 {offsets = [1, 1, 0], sizes = [1, 1, 16], strides = [1, 1, 1]} : vector<3x3x16xf32> to vector<1x1x16xf32>
    %56 = vector.shape_cast %55 : vector<1x1x16xf32> to vector<16xf32>
    %57 = vector.shape_cast %56 : vector<16xf32> to vector<1x1x1x16xf32>
    %58 = vector.broadcast %57 : vector<1x1x1x16xf32> to vector<1x16x16x16xf32>
    %59 = arith.mulf %54, %58 : vector<1x16x16x16xf32>
    %60 = arith.addf %53, %59 : vector<1x16x16x16xf32>
    %c0_41 = arith.constant 0 : index
    %c1_42 = arith.constant 1 : index
    %c2_43 = arith.constant 2 : index
    %c0_44 = arith.constant 0 : index
    %61 = vector.load %arg16[%c0_41, %c1_42, %c2_43, %c0_44] : memref<1x18x18x16xf32, #tpu.memory_space<vmem>>, vector<1x16x16x16xf32>
    %62 = vector.extract_strided_slice %24 {offsets = [1, 2, 0], sizes = [1, 1, 16], strides = [1, 1, 1]} : vector<3x3x16xf32> to vector<1x1x16xf32>
    %63 = vector.shape_cast %62 : vector<1x1x16xf32> to vector<16xf32>
    %64 = vector.shape_cast %63 : vector<16xf32> to vector<1x1x1x16xf32>
    %65 = vector.broadcast %64 : vector<1x1x1x16xf32> to vector<1x16x16x16xf32>
    %66 = arith.mulf %61, %65 : vector<1x16x16x16xf32>
    %67 = arith.addf %60, %66 : vector<1x16x16x16xf32>
    %c0_45 = arith.constant 0 : index
    %c2_46 = arith.constant 2 : index
    %c0_47 = arith.constant 0 : index
    %c0_48 = arith.constant 0 : index
    %68 = vector.load %arg16[%c0_45, %c2_46, %c0_47, %c0_48] : memref<1x18x18x16xf32, #tpu.memory_space<vmem>>, vector<1x16x16x16xf32>
    %69 = vector.extract_strided_slice %24 {offsets = [2, 0, 0], sizes = [1, 1, 16], strides = [1, 1, 1]} : vector<3x3x16xf32> to vector<1x1x16xf32>
    %70 = vector.shape_cast %69 : vector<1x1x16xf32> to vector<16xf32>
    %71 = vector.shape_cast %70 : vector<16xf32> to vector<1x1x1x16xf32>
    %72 = vector.broadcast %71 : vector<1x1x1x16xf32> to vector<1x16x16x16xf32>
    %73 = arith.mulf %68, %72 : vector<1x16x16x16xf32>
    %74 = arith.addf %67, %73 : vector<1x16x16x16xf32>
    %c0_49 = arith.constant 0 : index
    %c2_50 = arith.constant 2 : index
    %c1_51 = arith.constant 1 : index
    %c0_52 = arith.constant 0 : index
    %75 = vector.load %arg16[%c0_49, %c2_50, %c1_51, %c0_52] : memref<1x18x18x16xf32, #tpu.memory_space<vmem>>, vector<1x16x16x16xf32>
    %76 = vector.extract_strided_slice %24 {offsets = [2, 1, 0], sizes = [1, 1, 16], strides = [1, 1, 1]} : vector<3x3x16xf32> to vector<1x1x16xf32>
    %77 = vector.shape_cast %76 : vector<1x1x16xf32> to vector<16xf32>
    %78 = vector.shape_cast %77 : vector<16xf32> to vector<1x1x1x16xf32>
    %79 = vector.broadcast %78 : vector<1x1x1x16xf32> to vector<1x16x16x16xf32>
    %80 = arith.mulf %75, %79 : vector<1x16x16x16xf32>
    %81 = arith.addf %74, %80 : vector<1x16x16x16xf32>
    %c0_53 = arith.constant 0 : index
    %c2_54 = arith.constant 2 : index
    %c2_55 = arith.constant 2 : index
    %c0_56 = arith.constant 0 : index
    %82 = vector.load %arg16[%c0_53, %c2_54, %c2_55, %c0_56] : memref<1x18x18x16xf32, #tpu.memory_space<vmem>>, vector<1x16x16x16xf32>
    %83 = vector.extract_strided_slice %24 {offsets = [2, 2, 0], sizes = [1, 1, 16], strides = [1, 1, 1]} : vector<3x3x16xf32> to vector<1x1x16xf32>
    %84 = vector.shape_cast %83 : vector<1x1x16xf32> to vector<16xf32>
    %85 = vector.shape_cast %84 : vector<16xf32> to vector<1x1x1x16xf32>
    %86 = vector.broadcast %85 : vector<1x1x1x16xf32> to vector<1x16x16x16xf32>
    %87 = arith.mulf %82, %86 : vector<1x16x16x16xf32>
    %88 = arith.addf %81, %87 : vector<1x16x16x16xf32>
    %c0_57 = arith.constant 0 : index
    %c0_58 = arith.constant 0 : index
    %89 = vector.load %arg6[%c0_57, %c0_58] : memref<1x16xf32, #tpu.memory_space<vmem>>, vector<1x16xf32>
    %90 = vector.shape_cast %89 : vector<1x16xf32> to vector<16xf32>
    %91 = vector.shape_cast %90 : vector<16xf32> to vector<1x1x1x16xf32>
    %92 = vector.broadcast %91 : vector<1x1x1x16xf32> to vector<1x16x16x16xf32>
    %93 = arith.mulf %88, %92 : vector<1x16x16x16xf32>
    %c0_59 = arith.constant 0 : index
    %c0_60 = arith.constant 0 : index
    %94 = vector.load %arg7[%c0_59, %c0_60] : memref<1x16xf32, #tpu.memory_space<vmem>>, vector<1x16xf32>
    %95 = vector.shape_cast %94 : vector<1x16xf32> to vector<16xf32>
    %96 = vector.shape_cast %95 : vector<16xf32> to vector<1x1x1x16xf32>
    %97 = vector.broadcast %96 : vector<1x1x1x16xf32> to vector<1x16x16x16xf32>
    %98 = arith.addf %93, %97 : vector<1x16x16x16xf32>
    %99 = arith.negf %98 : vector<1x16x16x16xf32>
    %100 = math.exp %99 : vector<1x16x16x16xf32>
    %cst_61 = arith.constant 1.000000e+00 : f32
    %101 = vector.broadcast %cst_61 : f32 to vector<1x16x16x16xf32>
    %102 = arith.addf %101, %100 : vector<1x16x16x16xf32>
    %103 = arith.divf %101, %102 : vector<1x16x16x16xf32>
    %104 = arith.mulf %98, %103 : vector<1x16x16x16xf32>
    %cst_62 = arith.constant dense<0.000000e+00> : vector<1x16xf32>
    %105 = vector.multi_reduction <add>, %104, %cst_62 [1, 2] : vector<1x16x16x16xf32> to vector<1x16xf32>
    %cst_63 = arith.constant 2.560000e+02 : f32
    %106 = vector.broadcast %cst_63 : f32 to vector<1x16xf32>
    %107 = arith.divf %105, %106 : vector<1x16xf32>
    %c0_64 = arith.constant 0 : index
    %c0_65 = arith.constant 0 : index
    %108 = vector.load %arg8[%c0_64, %c0_65] : memref<16x8xf32, #tpu.memory_space<vmem>>, vector<16x8xf32>
    %cst_66 = arith.constant dense<0.000000e+00> : vector<1x8xf32>
    %109 = tpu.matmul %107, %108, %cst_66 {dimension_numbers = #tpu.dot_dimension_numbers<[1], [0], [0], [1], [0, 0, 1, 1], [], []>} : vector<1x16xf32>, vector<16x8xf32>, vector<1x8xf32> -> vector<1x8xf32>
    %c0_67 = arith.constant 0 : index
    %c0_68 = arith.constant 0 : index
    %110 = vector.load %arg9[%c0_67, %c0_68] : memref<1x8xf32, #tpu.memory_space<vmem>>, vector<1x8xf32>
    %111 = arith.addf %109, %110 : vector<1x8xf32>
    %112 = arith.negf %111 : vector<1x8xf32>
    %113 = math.exp %112 : vector<1x8xf32>
    %cst_69 = arith.constant 1.000000e+00 : f32
    %114 = vector.broadcast %cst_69 : f32 to vector<1x8xf32>
    %115 = arith.addf %114, %113 : vector<1x8xf32>
    %116 = arith.divf %114, %115 : vector<1x8xf32>
    %117 = arith.mulf %111, %116 : vector<1x8xf32>
    %c0_70 = arith.constant 0 : index
    %c0_71 = arith.constant 0 : index
    %118 = vector.load %arg10[%c0_70, %c0_71] : memref<8x16xf32, #tpu.memory_space<vmem>>, vector<8x16xf32>
    %cst_72 = arith.constant dense<0.000000e+00> : vector<1x16xf32>
    %119 = tpu.matmul %117, %118, %cst_72 {dimension_numbers = #tpu.dot_dimension_numbers<[1], [0], [0], [1], [0, 0, 1, 1], [], []>} : vector<1x8xf32>, vector<8x16xf32>, vector<1x16xf32> -> vector<1x16xf32>
    %c0_73 = arith.constant 0 : index
    %c0_74 = arith.constant 0 : index
    %120 = vector.load %arg11[%c0_73, %c0_74] : memref<1x16xf32, #tpu.memory_space<vmem>>, vector<1x16xf32>
    %121 = arith.addf %119, %120 : vector<1x16xf32>
    %122 = arith.negf %121 : vector<1x16xf32>
    %123 = math.exp %122 : vector<1x16xf32>
    %cst_75 = arith.constant 1.000000e+00 : f32
    %124 = vector.broadcast %cst_75 : f32 to vector<1x16xf32>
    %125 = arith.addf %124, %123 : vector<1x16xf32>
    %126 = arith.divf %124, %125 : vector<1x16xf32>
    %127 = vector.shape_cast %126 : vector<1x16xf32> to vector<16xf32>
    %128 = vector.shape_cast %127 : vector<16xf32> to vector<1x1x1x16xf32>
    %129 = vector.broadcast %128 : vector<1x1x1x16xf32> to vector<1x16x16x16xf32>
    %130 = arith.mulf %104, %129 : vector<1x16x16x16xf32>
    %131 = vector.shape_cast %130 : vector<1x16x16x16xf32> to vector<256x16xf32>
    %c0_76 = arith.constant 0 : index
    %c0_77 = arith.constant 0 : index
    %132 = vector.load %arg12[%c0_76, %c0_77] : memref<16x4xf32, #tpu.memory_space<vmem>>, vector<16x4xf32>
    %cst_78 = arith.constant dense<0.000000e+00> : vector<256x4xf32>
    %133 = tpu.matmul %131, %132, %cst_78 {dimension_numbers = #tpu.dot_dimension_numbers<[1], [0], [0], [1], [0, 0, 1, 1], [], []>} : vector<256x16xf32>, vector<16x4xf32>, vector<256x4xf32> -> vector<256x4xf32>
    %c0_79 = arith.constant 0 : index
    %c0_80 = arith.constant 0 : index
    %134 = vector.load %arg13[%c0_79, %c0_80] : memref<1x4xf32, #tpu.memory_space<vmem>>, vector<1x4xf32>
    %135 = vector.shape_cast %134 : vector<1x4xf32> to vector<4xf32>
    %136 = vector.shape_cast %135 : vector<4xf32> to vector<1x4xf32>
    %137 = vector.broadcast %136 : vector<1x4xf32> to vector<256x4xf32>
    %138 = arith.mulf %133, %137 : vector<256x4xf32>
    %c0_81 = arith.constant 0 : index
    %c0_82 = arith.constant 0 : index
    %139 = vector.load %arg14[%c0_81, %c0_82] : memref<1x4xf32, #tpu.memory_space<vmem>>, vector<1x4xf32>
    %140 = vector.shape_cast %139 : vector<1x4xf32> to vector<4xf32>
    %141 = vector.shape_cast %140 : vector<4xf32> to vector<1x4xf32>
    %142 = vector.broadcast %141 : vector<1x4xf32> to vector<256x4xf32>
    %143 = arith.addf %138, %142 : vector<256x4xf32>
    %144 = vector.shape_cast %143 : vector<256x4xf32> to vector<1x16x16x4xf32>
    %145 = arith.addf %144, %0 : vector<1x16x16x4xf32>
    %c0_83 = arith.constant 0 : index
    %c0_84 = arith.constant 0 : index
    %c0_85 = arith.constant 0 : index
    %c0_86 = arith.constant 0 : index
    %146 = vector.load %arg15[%c0_83, %c0_84, %c0_85, %c0_86] : memref<1x16x16x4xf32, #tpu.memory_space<vmem>>, vector<1x16x16x4xf32>
    tpu.vector_store %arg15[%c0_83, %c0_84, %c0_85, %c0_86], %145 {strides = array<i32>} : memref<1x16x16x4xf32, #tpu.memory_space<vmem>>, vector<1x16x16x4xf32>,
    return
  }
  func.func @transform_0(%arg0: i32) -> (i32, i32, i32, i32) {
    %c0_i32 = arith.constant 0 : i32
    %c0_i32_0 = arith.constant 0 : i32
    %c0_i32_1 = arith.constant 0 : i32
    %c0_i32_2 = arith.constant 0 : i32
    return %arg0, %c0_i32, %c0_i32_0, %c0_i32_1 : i32, i32, i32, i32
  }
  func.func @transform_1(%arg0: i32) -> (i32, i32) {
    %c0_i32 = arith.constant 0 : i32
    %c0_i32_0 = arith.constant 0 : i32
    %c0_i32_1 = arith.constant 0 : i32
    return %c0_i32, %c0_i32_0 : i32, i32
  }
  func.func @transform_2(%arg0: i32) -> (i32, i32) {
    %c0_i32 = arith.constant 0 : i32
    %c0_i32_0 = arith.constant 0 : i32
    %c0_i32_1 = arith.constant 0 : i32
    return %c0_i32, %c0_i32_0 : i32, i32
  }
  func.func @transform_3(%arg0: i32) -> (i32, i32) {
    %c0_i32 = arith.constant 0 : i32
    %c0_i32_0 = arith.constant 0 : i32
    %c0_i32_1 = arith.constant 0 : i32
    return %c0_i32, %c0_i32_0 : i32, i32
  }
  func.func @transform_4(%arg0: i32) -> (i32, i32, i32) {
    %c0_i32 = arith.constant 0 : i32
    %c0_i32_0 = arith.constant 0 : i32
    %c0_i32_1 = arith.constant 0 : i32
    %c0_i32_2 = arith.constant 0 : i32
    return %c0_i32, %c0_i32_0, %c0_i32_1 : i32, i32, i32
  }
  func.func @transform_5(%arg0: i32) -> (i32, i32) {
    %c0_i32 = arith.constant 0 : i32
    %c0_i32_0 = arith.constant 0 : i32
    %c0_i32_1 = arith.constant 0 : i32
    return %c0_i32, %c0_i32_0 : i32, i32
  }
  func.func @transform_6(%arg0: i32) -> (i32, i32) {
    %c0_i32 = arith.constant 0 : i32
    %c0_i32_0 = arith.constant 0 : i32
    %c0_i32_1 = arith.constant 0 : i32
    return %c0_i32, %c0_i32_0 : i32, i32
  }
  func.func @transform_7(%arg0: i32) -> (i32, i32) {
    %c0_i32 = arith.constant 0 : i32
    %c0_i32_0 = arith.constant 0 : i32
    %c0_i32_1 = arith.constant 0 : i32
    return %c0_i32, %c0_i32_0 : i32, i32
  }
  func.func @transform_8(%arg0: i32) -> (i32, i32) {
    %c0_i32 = arith.constant 0 : i32
    %c0_i32_0 = arith.constant 0 : i32
    %c0_i32_1 = arith.constant 0 : i32
    return %c0_i32, %c0_i32_0 : i32, i32
  }
  func.func @transform_9(%arg0: i32) -> (i32, i32) {
    %c0_i32 = arith.constant 0 : i32
    %c0_i32_0 = arith.constant 0 : i32
    %c0_i32_1 = arith.constant 0 : i32
    return %c0_i32, %c0_i32_0 : i32, i32
  }
  func.func @transform_10(%arg0: i32) -> (i32, i32) {
    %c0_i32 = arith.constant 0 : i32
    %c0_i32_0 = arith.constant 0 : i32
    %c0_i32_1 = arith.constant 0 : i32
    return %c0_i32, %c0_i32_0 : i32, i32
  }
  func.func @transform_11(%arg0: i32) -> (i32, i32) {
    %c0_i32 = arith.constant 0 : i32
    %c0_i32_0 = arith.constant 0 : i32
    %c0_i32_1 = arith.constant 0 : i32
    return %c0_i32, %c0_i32_0 : i32, i32
  }
  func.func @transform_12(%arg0: i32) -> (i32, i32) {
    %c0_i32 = arith.constant 0 : i32
    %c0_i32_0 = arith.constant 0 : i32
    %c0_i32_1 = arith.constant 0 : i32
    return %c0_i32, %c0_i32_0 : i32, i32
  }
  func.func @transform_13(%arg0: i32) -> (i32, i32) {
    %c0_i32 = arith.constant 0 : i32
    %c0_i32_0 = arith.constant 0 : i32
    %c0_i32_1 = arith.constant 0 : i32
    return %c0_i32, %c0_i32_0 : i32, i32
  }
  func.func @transform_14(%arg0: i32) -> (i32, i32, i32, i32) {
    %c0_i32 = arith.constant 0 : i32
    %c0_i32_0 = arith.constant 0 : i32
    %c0_i32_1 = arith.constant 0 : i32
    %c0_i32_2 = arith.constant 0 : i32
    return %arg0, %c0_i32, %c0_i32_0, %c0_i32_1 : i32, i32, i32, i32
  }
}

</mosaic_0001>

<llo_original>
// kernel: tpu_custom_call.1
$region0: #{tpu_custom_call.1}
  #allocation0 [shape = 'u32[]', space=smem, size = 0x4, offset = 0x4, fixed_abs, tag = 'smem constant byte address 0x4 - core index']
  #allocation1 [shape = 'u32[144,128]{1,0:T(1,128)}', space=vmem, size = 0x12000, scoped, tag = 'internal scratch']
  #allocation2 [shape = 'f32[1,18,18,16]{3,2,1,0:T(8,128)}', space=vmem, size = 0x36000, scoped, tag = 'scratch operand']
  %s0 = inlined_call_operand.vmem [shape: f32[2,16,16,4], index: 0, kind: input, shape index: {}]
  %s1 = inlined_call_operand.vmem [shape: f32[4,16], index: 1, kind: input, shape index: {}]
  %s2 = inlined_call_operand.vmem [shape: f32[1,16], index: 2, kind: input, shape index: {}]
  %s3 = inlined_call_operand.vmem [shape: f32[1,16], index: 3, kind: input, shape index: {}]
  %s4 = inlined_call_operand.vmem [shape: f32[3,3,16], index: 4, kind: input, shape index: {}]
  %s5 = inlined_call_operand.vmem [shape: f32[1,16], index: 5, kind: input, shape index: {}]
  %s6 = inlined_call_operand.vmem [shape: f32[1,16], index: 6, kind: input, shape index: {}]
  %s7 = inlined_call_operand.vmem [shape: f32[16,8], index: 7, kind: input, shape index: {}]
  %s8 = inlined_call_operand.vmem [shape: f32[1,8], index: 8, kind: input, shape index: {}]
  %s9 = inlined_call_operand.vmem [shape: f32[8,16], index: 9, kind: input, shape index: {}]
  %s10 = inlined_call_operand.vmem [shape: f32[1,16], index: 10, kind: input, shape index: {}]
  %s11 = inlined_call_operand.vmem [shape: f32[16,4], index: 11, kind: input, shape index: {}]
  %s12 = inlined_call_operand.vmem [shape: f32[1,4], index: 12, kind: input, shape index: {}]
  %s13 = inlined_call_operand.vmem [shape: f32[1,4], index: 13, kind: input, shape index: {}]
  %s14 = inlined_call_operand.vmem [shape: f32[2,16,16,4], index: 14, kind: output, shape index: {}]
  %s15 = sld [smem:[#allocation0]]
  $region89: #{tpu_custom_call.1} parent=0
    _
  %s17 = ssub.s32 1, %s15
  %s18 = scalar_select 0, %s17, %s15
  loop: start=0, step=1, limit=4
  $region2: #{tpu_custom_call.1} parent=0 // loop_pre_header
    _
  $region3: #{tpu_custom_call.1} parent=0 // loop_header
    %s20 = sphi 0, %s24
    %p21 = scmp.ge.s32.totalorder %s20, 4
    %s30 = sphi 0, %s32
    %s33 = sphi 0, %s30
    %s34 = sphi 0, %s33
    %s50 = sphi 0, %s34
    %s54 = sphi 0, %s54
    %s56 = sphi 0, %s54
    %s57 = sphi 0, %s56
    %s71 = sphi 0, %s57
    %s75 = sphi 0, %s75
    %s77 = sphi 0, %s75
    %s78 = sphi 0, %s77
    %s92 = sphi 0, %s78
    %s96 = sphi 0, %s96
    %s98 = sphi 0, %s96
    %s99 = sphi 0, %s98
    %s113 = sphi 0, %s99
    %s117 = sphi 0, %s117
    %s119 = sphi 0, %s117
    %s120 = sphi 0, %s119
    %s134 = sphi 0, %s120
    %s138 = sphi 0, %s138
    %s140 = sphi 0, %s138
    %s141 = sphi 0, %s140
    %s155 = sphi 0, %s141
    %s159 = sphi 0, %s159
    %s161 = sphi 0, %s159
    %s162 = sphi 0, %s161
    %s176 = sphi 0, %s162
    %s180 = sphi 0, %s180
    %s182 = sphi 0, %s180
    %s183 = sphi 0, %s182
    %s197 = sphi 0, %s183
    %s201 = sphi 0, %s201
    %s203 = sphi 0, %s201
    %s204 = sphi 0, %s203
    %s218 = sphi 0, %s204
    %s222 = sphi 0, %s222
    %s224 = sphi 0, %s222
    %s225 = sphi 0, %s224
    %s239 = sphi 0, %s225
    %s243 = sphi 0, %s243
    %s245 = sphi 0, %s243
    %s246 = sphi 0, %s245
    %s260 = sphi 0, %s246
    %s264 = sphi 0, %s264
    %s266 = sphi 0, %s264
    %s267 = sphi 0, %s266
    %s281 = sphi 0, %s267
    %s285 = sphi 0, %s285
    %s287 = sphi 0, %s285
    %s288 = sphi 0, %s287
    %s302 = sphi 0, %s288
    %s306 = sphi 0, %s306
    %s308 = sphi 0, %s306
    %s309 = sphi 0, %s308
    %s323 = sphi 0, %s309
    %s329 = sphi 0, %s331
    %s332 = sphi 0, %s329
    %s333 = sphi 0, %s332
    %s349 = sphi 0, %s333
  $region4: #{tpu_custom_call.1} parent=0 // loop_header_branch
    %23 = sbr.rel (%p21) target = $region8
  $region5: #{tpu_custom_call.1} parent=0 // loop_body
    %s25 = ssub.s32 %s20, 1
    %s26 = ssub.s32 %s20, 2
    %s27 = sadd.s32 %s20, 1
    %s28 = ssub.s32 %s20, %s27
    %p29 = scmp.eq.s32.totalorder %s28, 0
    %s31 = sadd.s32 %s30, 1
    %s32 = scalar_select %p29, %s30, %s31
    %p35 = pneg %p29
    %p36 = scmp.eq.s32.totalorder %s20, 1
    %p37 = por %p35, %p36
    %p38 = scmp.ne.s32.totalorder %s30, %s33
    %p39 = scmp.eq.s32.totalorder %s20, 0
    %p40 = por %p38, %p39
    %p41 = scmp.ne.s32.totalorder %s30, %s33
    %p42 = scmp.eq.s32.totalorder %s25, 1
    %p43 = por %p41, %p42
    %p44 = scmp.ne.s32.totalorder %s33, %s34
    %p45 = scmp.eq.s32.totalorder %s25, 0
    %p46 = por %p44, %p45
    %p47 = scmp.ne.s32.totalorder %s33, %s34
    %p48 = scmp.eq.s32.totalorder %s26, 1
    %p49 = por %p47, %p48
    %p51 = scmp.ne.s32.totalorder %s34, %s50
    %p52 = scmp.eq.s32.totalorder %s26, 0
    %p53 = por %p51, %p52
    %s55 = sadd.s32 %s54, 1
    %p58 = scmp.eq.s32.totalorder %s20, 1
    %p59 = scmp.ne.s32.totalorder %s54, %s56
    %p60 = scmp.eq.s32.totalorder %s20, 0
    %p61 = por %p59, %p60
    %p62 = scmp.ne.s32.totalorder %s54, %s56
    %p63 = scmp.eq.s32.totalorder %s25, 1
    %p64 = por %p62, %p63
    %p65 = scmp.ne.s32.totalorder %s56, %s57
    %p66 = scmp.eq.s32.totalorder %s25, 0
    %p67 = por %p65, %p66
    %p68 = scmp.ne.s32.totalorder %s56, %s57
    %p69 = scmp.eq.s32.totalorder %s26, 1
    %p70 = por %p68, %p69
    %p72 = scmp.ne.s32.totalorder %s57, %s71
    %p73 = scmp.eq.s32.totalorder %s26, 0
    %p74 = por %p72, %p73
    %s76 = sadd.s32 %s75, 1
    %p79 = scmp.eq.s32.totalorder %s20, 1
    %p80 = scmp.ne.s32.totalorder %s75, %s77
    %p81 = scmp.eq.s32.totalorder %s20, 0
    %p82 = por %p80, %p81
    %p83 = scmp.ne.s32.totalorder %s75, %s77
    %p84 = scmp.eq.s32.totalorder %s25, 1
    %p85 = por %p83, %p84
    %p86 = scmp.ne.s32.totalorder %s77, %s78
    %p87 = scmp.eq.s32.totalorder %s25, 0
    %p88 = por %p86, %p87
    %p89 = scmp.ne.s32.totalorder %s77, %s78
    %p90 = scmp.eq.s32.totalorder %s26, 1
    %p91 = por %p89, %p90
    %p93 = scmp.ne.s32.totalorder %s78, %s92
    %p94 = scmp.eq.s32.totalorder %s26, 0
    %p95 = por %p93, %p94
    %s97 = sadd.s32 %s96, 1
    %p100 = scmp.eq.s32.totalorder %s20, 1
    %p101 = scmp.ne.s32.totalorder %s96, %s98
    %p102 = scmp.eq.s32.totalorder %s20, 0
    %p103 = por %p101, %p102
    %p104 = scmp.ne.s32.totalorder %s96, %s98
    %p105 = scmp.eq.s32.totalorder %s25, 1
    %p106 = por %p104, %p105
    %p107 = scmp.ne.s32.totalorder %s98, %s99
    %p108 = scmp.eq.s32.totalorder %s25, 0
    %p109 = por %p107, %p108
    %p110 = scmp.ne.s32.totalorder %s98, %s99
    %p111 = scmp.eq.s32.totalorder %s26, 1
    %p112 = por %p110, %p111
    %p114 = scmp.ne.s32.totalorder %s99, %s113
    %p115 = scmp.eq.s32.totalorder %s26, 0
    %p116 = por %p114, %p115
    %s118 = sadd.s32 %s117, 1
    %p121 = scmp.eq.s32.totalorder %s20, 1
    %p122 = scmp.ne.s32.totalorder %s117, %s119
    %p123 = scmp.eq.s32.totalorder %s20, 0
    %p124 = por %p122, %p123
    %p125 = scmp.ne.s32.totalorder %s117, %s119
    %p126 = scmp.eq.s32.totalorder %s25, 1
    %p127 = por %p125, %p126
    %p128 = scmp.ne.s32.totalorder %s119, %s120
    %p129 = scmp.eq.s32.totalorder %s25, 0
    %p130 = por %p128, %p129
    %p131 = scmp.ne.s32.totalorder %s119, %s120
    %p132 = scmp.eq.s32.totalorder %s26, 1
    %p133 = por %p131, %p132
    %p135 = scmp.ne.s32.totalorder %s120, %s134
    %p136 = scmp.eq.s32.totalorder %s26, 0
    %p137 = por %p135, %p136
    %s139 = sadd.s32 %s138, 1
    %p142 = scmp.eq.s32.totalorder %s20, 1
    %p143 = scmp.ne.s32.totalorder %s138, %s140
    %p144 = scmp.eq.s32.totalorder %s20, 0
    %p145 = por %p143, %p144
    %p146 = scmp.ne.s32.totalorder %s138, %s140
    %p147 = scmp.eq.s32.totalorder %s25, 1
    %p148 = por %p146, %p147
    %p149 = scmp.ne.s32.totalorder %s140, %s141
    %p150 = scmp.eq.s32.totalorder %s25, 0
    %p151 = por %p149, %p150
    %p152 = scmp.ne.s32.totalorder %s140, %s141
    %p153 = scmp.eq.s32.totalorder %s26, 1
    %p154 = por %p152, %p153
    %p156 = scmp.ne.s32.totalorder %s141, %s155
    %p157 = scmp.eq.s32.totalorder %s26, 0
    %p158 = por %p156, %p157
    %s160 = sadd.s32 %s159, 1
    %p163 = scmp.eq.s32.totalorder %s20, 1
    %p164 = scmp.ne.s32.totalorder %s159, %s161
    %p165 = scmp.eq.s32.totalorder %s20, 0
    %p166 = por %p164, %p165
    %p167 = scmp.ne.s32.totalorder %s159, %s161
    %p168 = scmp.eq.s32.totalorder %s25, 1
    %p169 = por %p167, %p168
    %p170 = scmp.ne.s32.totalorder %s161, %s162
    %p171 = scmp.eq.s32.totalorder %s25, 0
    %p172 = por %p170, %p171
    %p173 = scmp.ne.s32.totalorder %s161, %s162
    %p174 = scmp.eq.s32.totalorder %s26, 1
    %p175 = por %p173, %p174
    %p177 = scmp.ne.s32.totalorder %s162, %s176
    %p178 = scmp.eq.s32.totalorder %s26, 0
    %p179 = por %p177, %p178
    %s181 = sadd.s32 %s180, 1
    %p184 = scmp.eq.s32.totalorder %s20, 1
    %p185 = scmp.ne.s32.totalorder %s180, %s182
    %p186 = scmp.eq.s32.totalorder %s20, 0
    %p187 = por %p185, %p186
    %p188 = scmp.ne.s32.totalorder %s180, %s182
    %p189 = scmp.eq.s32.totalorder %s25, 1
    %p190 = por %p188, %p189
    %p191 = scmp.ne.s32.totalorder %s182, %s183
    %p192 = scmp.eq.s32.totalorder %s25, 0
    %p193 = por %p191, %p192
    %p194 = scmp.ne.s32.totalorder %s182, %s183
    %p195 = scmp.eq.s32.totalorder %s26, 1
    %p196 = por %p194, %p195
    %p198 = scmp.ne.s32.totalorder %s183, %s197
    %p199 = scmp.eq.s32.totalorder %s26, 0
    %p200 = por %p198, %p199
    %s202 = sadd.s32 %s201, 1
    %p205 = scmp.eq.s32.totalorder %s20, 1
    %p206 = scmp.ne.s32.totalorder %s201, %s203
    %p207 = scmp.eq.s32.totalorder %s20, 0
    %p208 = por %p206, %p207
    %p209 = scmp.ne.s32.totalorder %s201, %s203
    %p210 = scmp.eq.s32.totalorder %s25, 1
    %p211 = por %p209, %p210
    %p212 = scmp.ne.s32.totalorder %s203, %s204
    %p213 = scmp.eq.s32.totalorder %s25, 0
    %p214 = por %p212, %p213
    %p215 = scmp.ne.s32.totalorder %s203, %s204
    %p216 = scmp.eq.s32.totalorder %s26, 1
    %p217 = por %p215, %p216
    %p219 = scmp.ne.s32.totalorder %s204, %s218
    %p220 = scmp.eq.s32.totalorder %s26, 0
    %p221 = por %p219, %p220
    %s223 = sadd.s32 %s222, 1
    %p226 = scmp.eq.s32.totalorder %s20, 1
    %p227 = scmp.ne.s32.totalorder %s222, %s224
    %p228 = scmp.eq.s32.totalorder %s20, 0
    %p229 = por %p227, %p228
    %p230 = scmp.ne.s32.totalorder %s222, %s224
    %p231 = scmp.eq.s32.totalorder %s25, 1
    %p232 = por %p230, %p231
    %p233 = scmp.ne.s32.totalorder %s224, %s225
    %p234 = scmp.eq.s32.totalorder %s25, 0
    %p235 = por %p233, %p234
    %p236 = scmp.ne.s32.totalorder %s224, %s225
    %p237 = scmp.eq.s32.totalorder %s26, 1
    %p238 = por %p236, %p237
    %p240 = scmp.ne.s32.totalorder %s225, %s239
    %p241 = scmp.eq.s32.totalorder %s26, 0
    %p242 = por %p240, %p241
    %s244 = sadd.s32 %s243, 1
    %p247 = scmp.eq.s32.totalorder %s20, 1
    %p248 = scmp.ne.s32.totalorder %s243, %s245
    %p249 = scmp.eq.s32.totalorder %s20, 0
    %p250 = por %p248, %p249
    %p251 = scmp.ne.s32.totalorder %s243, %s245
    %p252 = scmp.eq.s32.totalorder %s25, 1
    %p253 = por %p251, %p252
    %p254 = scmp.ne.s32.totalorder %s245, %s246
    %p255 = scmp.eq.s32.totalorder %s25, 0
    %p256 = por %p254, %p255
    %p257 = scmp.ne.s32.totalorder %s245, %s246
    %p258 = scmp.eq.s32.totalorder %s26, 1
    %p259 = por %p257, %p258
    %p261 = scmp.ne.s32.totalorder %s246, %s260
    %p262 = scmp.eq.s32.totalorder %s26, 0
    %p263 = por %p261, %p262
    %s265 = sadd.s32 %s264, 1
    %p268 = scmp.eq.s32.totalorder %s20, 1
    %p269 = scmp.ne.s32.totalorder %s264, %s266
    %p270 = scmp.eq.s32.totalorder %s20, 0
    %p271 = por %p269, %p270
    %p272 = scmp.ne.s32.totalorder %s264, %s266
    %p273 = scmp.eq.s32.totalorder %s25, 1
    %p274 = por %p272, %p273
    %p275 = scmp.ne.s32.totalorder %s266, %s267
    %p276 = scmp.eq.s32.totalorder %s25, 0
    %p277 = por %p275, %p276
    %p278 = scmp.ne.s32.totalorder %s266, %s267
    %p279 = scmp.eq.s32.totalorder %s26, 1
    %p280 = por %p278, %p279
    %p282 = scmp.ne.s32.totalorder %s267, %s281
    %p283 = scmp.eq.s32.totalorder %s26, 0
    %p284 = por %p282, %p283
    %s286 = sadd.s32 %s285, 1
    %p289 = scmp.eq.s32.totalorder %s20, 1
    %p290 = scmp.ne.s32.totalorder %s285, %s287
    %p291 = scmp.eq.s32.totalorder %s20, 0
    %p292 = por %p290, %p291
    %p293 = scmp.ne.s32.totalorder %s285, %s287
    %p294 = scmp.eq.s32.totalorder %s25, 1
    %p295 = por %p293, %p294
    %p296 = scmp.ne.s32.totalorder %s287, %s288
    %p297 = scmp.eq.s32.totalorder %s25, 0
    %p298 = por %p296, %p297
    %p299 = scmp.ne.s32.totalorder %s287, %s288
    %p300 = scmp.eq.s32.totalorder %s26, 1
    %p301 = por %p299, %p300
    %p303 = scmp.ne.s32.totalorder %s288, %s302
    %p304 = scmp.eq.s32.totalorder %s26, 0
    %p305 = por %p303, %p304
    %s307 = sadd.s32 %s306, 1
    %p310 = scmp.eq.s32.totalorder %s20, 1
    %p311 = scmp.ne.s32.totalorder %s306, %s308
    %p312 = scmp.eq.s32.totalorder %s20, 0
    %p313 = por %p311, %p312
    %p314 = scmp.ne.s32.totalorder %s306, %s308
    %p315 = scmp.eq.s32.totalorder %s25, 1
    %p316 = por %p314, %p315
    %p317 = scmp.ne.s32.totalorder %s308, %s309
    %p318 = scmp.eq.s32.totalorder %s25, 0
    %p319 = por %p317, %p318
    %p320 = scmp.ne.s32.totalorder %s308, %s309
    %p321 = scmp.eq.s32.totalorder %s26, 1
    %p322 = por %p320, %p321
    %p324 = scmp.ne.s32.totalorder %s309, %s323
    %p325 = scmp.eq.s32.totalorder %s26, 0
    %p326 = por %p324, %p325
    %s327 = ssub.s32 %s20, %s27
    %p328 = scmp.eq.s32.totalorder %s327, 0
    %s330 = sadd.s32 %s329, 1
    %s331 = scalar_select %p328, %s329, %s330
    %p334 = pneg %p328
    %p335 = scmp.eq.s32.totalorder %s20, 1
    %p336 = por %p334, %p335
    %p337 = scmp.ne.s32.totalorder %s329, %s332
    %p338 = scmp.eq.s32.totalorder %s20, 0
    %p339 = por %p337, %p338
    %p340 = scmp.ne.s32.totalorder %s329, %s332
    %p341 = scmp.eq.s32.totalorder %s25, 1
    %p342 = por %p340, %p341
    %p343 = scmp.ne.s32.totalorder %s332, %s333
    %p344 = scmp.eq.s32.totalorder %s25, 0
    %p345 = por %p343, %p344
    %p346 = scmp.ne.s32.totalorder %s332, %s333
    %p347 = scmp.eq.s32.totalorder %s26, 1
    %p348 = por %p346, %p347
    %p350 = scmp.ne.s32.totalorder %s333, %s349
    %p351 = scmp.eq.s32.totalorder %s26, 0
    %p352 = por %p350, %p351
    %p353 = scmp.le.s32.totalorder 1, %s20
    %p354 = scmp.lt.s32.totalorder %s20, 3
    %p355 = pnand %p353, %p354
    %p356 = pneg %p355
    // Predicated region
    $region9: #{tpu_custom_call.1} parent=5 // pred_check
      _
    $region10: #{tpu_custom_call.1} parent=5 // pred_check_branch
      %358 = sbr.rel (%p355) target = $region12
    $region11: #{tpu_custom_call.1} parent=5 // pred_region
      %s359 = ssub.s32 %s20, 1
      // Predicated region
      $region13: #{tpu_custom_call.1} parent=11 // pred_check
        %p360 = pneg %p67
      $region14: #{tpu_custom_call.1} parent=11 // pred_check_branch
        %362 = sbr.rel (%p360) target = $region16
      $region15: #{tpu_custom_call.1} parent=11 // pred_region
        _
      $region16: #{tpu_custom_call.1} parent=11 // pred_fallthru
        _
      // Predicated region
      $region17: #{tpu_custom_call.1} parent=11 // pred_check
        %p363 = pneg %p88
      $region18: #{tpu_custom_call.1} parent=11 // pred_check_branch
        %365 = sbr.rel (%p363) target = $region20
      $region19: #{tpu_custom_call.1} parent=11 // pred_region
        _
      $region20: #{tpu_custom_call.1} parent=11 // pred_fallthru
        _
      // Predicated region
      $region21: #{tpu_custom_call.1} parent=11 // pred_check
        %p366 = pneg %p109
      $region22: #{tpu_custom_call.1} parent=11 // pred_check_branch
        %368 = sbr.rel (%p366) target = $region24
      $region23: #{tpu_custom_call.1} parent=11 // pred_region
        _
      $region24: #{tpu_custom_call.1} parent=11 // pred_fallthru
        _
      // Predicated region
      $region25: #{tpu_custom_call.1} parent=11 // pred_check
        %p369 = pneg %p130
      $region26: #{tpu_custom_call.1} parent=11 // pred_check_branch
        %371 = sbr.rel (%p369) target = $region28
      $region27: #{tpu_custom_call.1} parent=11 // pred_region
        _
      $region28: #{tpu_custom_call.1} parent=11 // pred_fallthru
        _
      // Predicated region
      $region29: #{tpu_custom_call.1} parent=11 // pred_check
        %p372 = pneg %p151
      $region30: #{tpu_custom_call.1} parent=11 // pred_check_branch
        %374 = sbr.rel (%p372) target = $region32
      $region31: #{tpu_custom_call.1} parent=11 // pred_region
        _
      $region32: #{tpu_custom_call.1} parent=11 // pred_fallthru
        _
      // Predicated region
      $region33: #{tpu_custom_call.1} parent=11 // pred_check
        %p375 = pneg %p172
      $region34: #{tpu_custom_call.1} parent=11 // pred_check_branch
        %377 = sbr.rel (%p375) target = $region36
      $region35: #{tpu_custom_call.1} parent=11 // pred_region
        _
      $region36: #{tpu_custom_call.1} parent=11 // pred_fallthru
        _
      // Predicated region
      $region37: #{tpu_custom_call.1} parent=11 // pred_check
        %p378 = pneg %p193
      $region38: #{tpu_custom_call.1} parent=11 // pred_check_branch
        %380 = sbr.rel (%p378) target = $region40
      $region39: #{tpu_custom_call.1} parent=11 // pred_region
        _
      $region40: #{tpu_custom_call.1} parent=11 // pred_fallthru
        _
      // Predicated region
      $region41: #{tpu_custom_call.1} parent=11 // pred_check
        %p381 = pneg %p214
      $region42: #{tpu_custom_call.1} parent=11 // pred_check_branch
        %383 = sbr.rel (%p381) target = $region44
      $region43: #{tpu_custom_call.1} parent=11 // pred_region
        _
      $region44: #{tpu_custom_call.1} parent=11 // pred_fallthru
        _
      // Predicated region
      $region45: #{tpu_custom_call.1} parent=11 // pred_check
        %p384 = pneg %p235
      $region46: #{tpu_custom_call.1} parent=11 // pred_check_branch
        %386 = sbr.rel (%p384) target = $region48
      $region47: #{tpu_custom_call.1} parent=11 // pred_region
        _
      $region48: #{tpu_custom_call.1} parent=11 // pred_fallthru
        _
      // Predicated region
      $region49: #{tpu_custom_call.1} parent=11 // pred_check
        %p387 = pneg %p256
      $region50: #{tpu_custom_call.1} parent=11 // pred_check_branch
        %389 = sbr.rel (%p387) target = $region52
      $region51: #{tpu_custom_call.1} parent=11 // pred_region
        _
      $region52: #{tpu_custom_call.1} parent=11 // pred_fallthru
        _
      // Predicated region
      $region53: #{tpu_custom_call.1} parent=11 // pred_check
        %p390 = pneg %p277
      $region54: #{tpu_custom_call.1} parent=11 // pred_check_branch
        %392 = sbr.rel (%p390) target = $region56
      $region55: #{tpu_custom_call.1} parent=11 // pred_region
        _
      $region56: #{tpu_custom_call.1} parent=11 // pred_fallthru
        _
      // Predicated region
      $region57: #{tpu_custom_call.1} parent=11 // pred_check
        %p393 = pneg %p298
      $region58: #{tpu_custom_call.1} parent=11 // pred_check_branch
        %395 = sbr.rel (%p393) target = $region60
      $region59: #{tpu_custom_call.1} parent=11 // pred_region
        _
      $region60: #{tpu_custom_call.1} parent=11 // pred_fallthru
        _
      // Predicated region
      $region61: #{tpu_custom_call.1} parent=11 // pred_check
        %p396 = pneg %p319
      $region62: #{tpu_custom_call.1} parent=11 // pred_check_branch
        %398 = sbr.rel (%p396) target = $region64
      $region63: #{tpu_custom_call.1} parent=11 // pred_region
        _
      $region64: #{tpu_custom_call.1} parent=11 // pred_fallthru
        _
    $region12: #{tpu_custom_call.1} parent=5 // pred_fallthru
      _
    %p399 = scmp.lt.s32.totalorder %s20, 2
    // Predicated region
    $region65: #{tpu_custom_call.1} parent=5 // pred_check
      %p400 = pneg %p399
    $region66: #{tpu_custom_call.1} parent=5 // pred_check_branch
      %402 = sbr.rel (%p400) target = $region68
    $region67: #{tpu_custom_call.1} parent=5 // pred_region
      // Predicated region
      $region69: #{tpu_custom_call.1} parent=67 // pred_check
        %p403 = pneg %p40
      $region70: #{tpu_custom_call.1} parent=67 // pred_check_branch
        %405 = sbr.rel (%p403) target = $region72
      $region71: #{tpu_custom_call.1} parent=67 // pred_region
        %p406 = scmp.lt.s32.totalorder %s20, 1
        %s407 = scalar_select %p406, %s20, 1
        %s408 = smul.addr %s407, 32
        %s409 = smul.addr %s408, 8
        %s410 = scalar_lea.vmem %s0, %s409
      $region72: #{tpu_custom_call.1} parent=67 // pred_fallthru
        _
    $region68: #{tpu_custom_call.1} parent=5 // pred_fallthru
      _
    %p411 = scmp.le.s32.totalorder 1, %s20
    %p412 = scmp.lt.s32.totalorder %s20, 3
    %p413 = pnand %p411, %p412
    %p414 = pneg %p413
    // Predicated region
    $region73: #{tpu_custom_call.1} parent=5 // pred_check
      _
    $region74: #{tpu_custom_call.1} parent=5 // pred_check_branch
      %416 = sbr.rel (%p413) target = $region76
    $region75: #{tpu_custom_call.1} parent=5 // pred_region
      %s417 = ssub.s32 %s20, 1
      %p418 = scmp.lt.s32.totalorder %s25, 1
      %s419 = scalar_select %p418, %s25, 1
      %s420 = smul.addr %s419, 32
      %s421 = smul.addr %s420, 8
      %s422 = scalar_lea.vmem %s0, %s421
      %p423 = pneg %p46
      %p424 = pneg %p43
      %p425 = pneg %p67
      %p426 = pneg %p64
      %p427 = pneg %p88
      %p428 = pneg %p85
      %p429 = pneg %p109
      %p430 = pneg %p106
      %p431 = pneg %p130
      %p432 = pneg %p127
      %p433 = pneg %p151
      %p434 = pneg %p148
      %p435 = pneg %p172
      %p436 = pneg %p169
      %p437 = pneg %p193
      %p438 = pneg %p190
      %p439 = pneg %p214
      %p440 = pneg %p211
      %p441 = pneg %p235
      %p442 = pneg %p232
      %p443 = pneg %p256
      %p444 = pneg %p253
      %p445 = pneg %p277
      %p446 = pneg %p274
      %p447 = pneg %p298
      %p448 = pneg %p295
      %p449 = pneg %p319
      %p450 = pneg %p316
      %p451 = pneg %p345
      %p452 = pneg %p342
      %p453 = scmp.lt.s32.totalorder %s25, 1
      %s454 = scalar_select %p453, %s25, 1
      %s455 = smul.addr %s454, 32
      %s456 = smul.addr %s455, 8
      %s457 = scalar_lea.vmem %s14, %s456
      %p458 = scmp.lt.s32.totalorder %s25, 1
      %s459 = scalar_select %p458, %s25, 1
      %s460 = smul.addr %s459, 32
      %s461 = smul.addr %s460, 8
      %s462 = scalar_lea.vmem %s0, %s461
      %p463 = scmp.lt.s32.totalorder %s25, 1
      %s464 = scalar_select %p463, %s25, 1
      %s465 = smul.addr %s464, 32
      %s466 = smul.addr %s465, 8
      %s467 = scalar_lea.vmem %s14, %s466
      %v468 = vld [vmem:[%s462] sm:$0xff]
      %v469 = vld [vmem:[%s462 + $0x8] sm:$0xff]
      %v470 = vld [vmem:[%s462 + $0x10] sm:$0xff]
      %v471 = vld [vmem:[%s462 + $0x18] sm:$0xff]
      %v472 = vld [vmem:[%s462 + $0x20] sm:$0xff]
      %v473 = vld [vmem:[%s462 + $0x28] sm:$0xff]
      %v474 = vld [vmem:[%s462 + $0x30] sm:$0xff]
      %v475 = vld [vmem:[%s462 + $0x38] sm:$0xff]
      %v476 = vld [vmem:[%s462 + $0x40] sm:$0xff]
      %v477 = vld [vmem:[%s462 + $0x48] sm:$0xff]
      %v478 = vld [vmem:[%s462 + $0x50] sm:$0xff]
      %v479 = vld [vmem:[%s462 + $0x58] sm:$0xff]
      %v480 = vld [vmem:[%s462 + $0x60] sm:$0xff]
      %v481 = vld [vmem:[%s462 + $0x68] sm:$0xff]
      %v482 = vld [vmem:[%s462 + $0x70] sm:$0xff]
      %v483 = vld [vmem:[%s462 + $0x78] sm:$0xff]
      %v484 = vld [vmem:[%s462 + $0x80] sm:$0xff]
      %v485 = vld [vmem:[%s462 + $0x88] sm:$0xff]
      %v486 = vld [vmem:[%s462 + $0x90] sm:$0xff]
      %v487 = vld [vmem:[%s462 + $0x98] sm:$0xff]
      %v488 = vld [vmem:[%s462 + $0xa0] sm:$0xff]
      %v489 = vld [vmem:[%s462 + $0xa8] sm:$0xff]
      %v490 = vld [vmem:[%s462 + $0xb0] sm:$0xff]
      %v491 = vld [vmem:[%s462 + $0xb8] sm:$0xff]
      %v492 = vld [vmem:[%s462 + $0xc0] sm:$0xff]
      %v493 = vld [vmem:[%s462 + $0xc8] sm:$0xff]
      %v494 = vld [vmem:[%s462 + $0xd0] sm:$0xff]
      %v495 = vld [vmem:[%s462 + $0xd8] sm:$0xff]
      %v496 = vld [vmem:[%s462 + $0xe0] sm:$0xff]
      %v497 = vld [vmem:[%s462 + $0xe8] sm:$0xff]
      %v498 = vld [vmem:[%s462 + $0xf0] sm:$0xff]
      %v499 = vld [vmem:[%s462 + $0xf8] sm:$0xff]
      %v500 = vld [vmem:[%s1] sm:$0xf]
      %vm501 = vcmask 31744
      %v503 = vsel %vm501, %v468, 0
      %v506 = vsel %vm501, %v469, 0
      %v509 = vsel %vm501, %v470, 0
      %v512 = vsel %vm501, %v471, 0
      %v515 = vsel %vm501, %v472, 0
      %v518 = vsel %vm501, %v473, 0
      %v521 = vsel %vm501, %v474, 0
      %v524 = vsel %vm501, %v475, 0
      %v527 = vsel %vm501, %v476, 0
      %v530 = vsel %vm501, %v477, 0
      %v533 = vsel %vm501, %v478, 0
      %v536 = vsel %vm501, %v479, 0
      %v539 = vsel %vm501, %v480, 0
      %v542 = vsel %vm501, %v481, 0
      %v545 = vsel %vm501, %v482, 0
      %v548 = vsel %vm501, %v483, 0
      %v551 = vsel %vm501, %v484, 0
      %v554 = vsel %vm501, %v485, 0
      %v557 = vsel %vm501, %v486, 0
      %v560 = vsel %vm501, %v487, 0
      %v563 = vsel %vm501, %v488, 0
      %v566 = vsel %vm501, %v489, 0
      %v569 = vsel %vm501, %v490, 0
      %v572 = vsel %vm501, %v491, 0
      %v575 = vsel %vm501, %v492, 0
      %v578 = vsel %vm501, %v493, 0
      %v581 = vsel %vm501, %v494, 0
      %v584 = vsel %vm501, %v495, 0
      %v587 = vsel %vm501, %v496, 0
      %v590 = vsel %vm501, %v497, 0
      %v593 = vsel %vm501, %v498, 0
      %v596 = vsel %vm501, %v499, 0
      %vm598 = vcmask 1043456
      %v600 = vsel %vm598, %v500, 0
      %602 = vmatprep.subr.mxu0 0.0
      %603 = vmatpush1.msra.mxu0 %v600
      %604 = vmatprep.subr.mxu0 0.0
      %605 = vmatpush1.msra.mxu0 0.0
      %606 = vmatprep.subr.mxu0 0.0
      %607 = vmatpush1.msra.mxu0 0.0
      %608 = vmatprep.subr.mxu0 0.0
      %609 = vmatpush1.msra.mxu0 0.0
      %610 = vmatprep.subr.mxu0 0.0
      %611 = vmatpush1.msra.mxu0 0.0
      %612 = vmatprep.subr.mxu0 0.0
      %613 = vmatpush1.msra.mxu0 0.0
      %614 = vmatprep.subr.mxu0 0.0
      %615 = vmatpush1.msra.mxu0 0.0
      %616 = vmatprep.subr.mxu0 0.0
      %617 = vmatpush1.msra.mxu0 0.0
      %618 = vmatprep.subr.mxu0 0.0
      %619 = vmatpush1.msra.mxu0 0.0
      %620 = vmatprep.subr.mxu0 0.0
      %621 = vmatpush1.msra.mxu0 0.0
      %622 = vmatprep.subr.mxu0 0.0
      %623 = vmatpush1.msra.mxu0 0.0
      %624 = vmatprep.subr.mxu0 0.0
      %625 = vmatpush1.msra.mxu0 0.0
      %626 = vmatprep.subr.mxu0 0.0
      %627 = vmatpush1.msra.mxu0 0.0
      %628 = vmatprep.subr.mxu0 0.0
      %629 = vmatpush1.msra.mxu0 0.0
      %630 = vmatprep.subr.mxu0 0.0
      %631 = vmatpush1.msra.mxu0 0.0
      %632 = vmatprep.subr.mxu0 0.0
      %633 = vmatpush1.msra.mxu0 0.0
      %634 = vmatprep.subr.mxu0 0.0
      %635 = vmatpush1.msra.mxu0 0.0
      %636 = vmatprep.subr.mxu0 0.0
      %637 = vmatpush1.msra.mxu0 0.0
      %638 = vmatprep.subr.mxu0 0.0
      %639 = vmatpush1.msra.mxu0 0.0
      %640 = vmatprep.subr.mxu0 0.0
      %641 = vmatpush1.msra.mxu0 0.0
      %642 = vmatprep.subr.mxu0 0.0
      %643 = vmatpush1.msra.mxu0 0.0
      %644 = vmatprep.subr.mxu0 0.0
      %645 = vmatpush1.msra.mxu0 0.0
      %646 = vmatprep.subr.mxu0 0.0
      %647 = vmatpush1.msra.mxu0 0.0
      %648 = vmatprep.subr.mxu0 0.0
      %649 = vmatpush1.msra.mxu0 0.0
      %650 = vmatprep.subr.mxu0 0.0
      %651 = vmatpush1.msra.mxu0 0.0
      %652 = vmatprep.subr.mxu0 0.0
      %653 = vmatpush1.msra.mxu0 0.0
      %654 = vmatprep.subr.mxu0 0.0
      %655 = vmatpush1.msra.mxu0 0.0
      %656 = vmatprep.subr.mxu0 0.0
      %657 = vmatpush1.msra.mxu0 0.0
      %658 = vmatprep.subr.mxu0 0.0
      %659 = vmatpush1.msra.mxu0 0.0
      %660 = vmatprep.subr.mxu0 0.0
      %661 = vmatpush1.msra.mxu0 0.0
      %662 = vmatprep.subr.mxu0 0.0
      %663 = vmatpush1.msra.mxu0 0.0
      %664 = vmatprep.subr.mxu0 0.0
      %665 = vmatpush1.msra.mxu0 0.0
      %666 = vmatprep.mubr.f32.mxu0 0.0
      %667 = vmatmul.mubr.f32.gmra.mrb[0].mxu0 %v503
      %v668 = vpop.f32.mrb[0].mxu0
      %v669 = vadd.f32 0.0, %v668
      %v670 = vpop.f32.mrb[0].mxu0
      %671 = vmatprep.mubr.f32.mxu0 0.0
      %672 = vmatmul.mubr.f32.gmra.mrb[0].mxu0 %v506
      %v673 = vpop.f32.mrb[0].mxu0
      %v674 = vadd.f32 0.0, %v673
      %v675 = vpop.f32.mrb[0].mxu0
      %676 = vmatprep.mubr.f32.mxu0 0.0
      %677 = vmatmul.mubr.f32.gmra.mrb[0].mxu0 %v509
      %v678 = vpop.f32.mrb[0].mxu0
      %v679 = vadd.f32 0.0, %v678
      %v680 = vpop.f32.mrb[0].mxu0
      %681 = vmatprep.mubr.f32.mxu0 0.0
      %682 = vmatmul.mubr.f32.gmra.mrb[0].mxu0 %v512
      %v683 = vpop.f32.mrb[0].mxu0
      %v684 = vadd.f32 0.0, %v683
      %v685 = vpop.f32.mrb[0].mxu0
      %686 = vmatprep.mubr.f32.mxu0 0.0
      %687 = vmatmul.mubr.f32.gmra.mrb[0].mxu0 %v515
      %v688 = vpop.f32.mrb[0].mxu0
      %v689 = vadd.f32 0.0, %v688
      %v690 = vpop.f32.mrb[0].mxu0
      %691 = vmatprep.mubr.f32.mxu0 0.0
      %692 = vmatmul.mubr.f32.gmra.mrb[0].mxu0 %v518
      %v693 = vpop.f32.mrb[0].mxu0
      %v694 = vadd.f32 0.0, %v693
      %v695 = vpop.f32.mrb[0].mxu0
      %696 = vmatprep.mubr.f32.mxu0 0.0
      %697 = vmatmul.mubr.f32.gmra.mrb[0].mxu0 %v521
      %v698 = vpop.f32.mrb[0].mxu0
      %v699 = vadd.f32 0.0, %v698
      %v700 = vpop.f32.mrb[0].mxu0
      %701 = vmatprep.mubr.f32.mxu0 0.0
      %702 = vmatmul.mubr.f32.gmra.mrb[0].mxu0 %v524
      %v703 = vpop.f32.mrb[0].mxu0
      %v704 = vadd.f32 0.0, %v703
      %v705 = vpop.f32.mrb[0].mxu0
      %706 = vmatprep.mubr.f32.mxu0 0.0
      %707 = vmatmul.mubr.f32.gmra.mrb[0].mxu0 %v527
      %v708 = vpop.f32.mrb[0].mxu0
      %v709 = vadd.f32 0.0, %v708
      %v710 = vpop.f32.mrb[0].mxu0
      %711 = vmatprep.mubr.f32.mxu0 0.0
      %712 = vmatmul.mubr.f32.gmra.mrb[0].mxu0 %v530
      %v713 = vpop.f32.mrb[0].mxu0
      %v714 = vadd.f32 0.0, %v713
      %v715 = vpop.f32.mrb[0].mxu0
      %716 = vmatprep.mubr.f32.mxu0 0.0
      %717 = vmatmul.mubr.f32.gmra.mrb[0].mxu0 %v533
      %v718 = vpop.f32.mrb[0].mxu0
      %v719 = vadd.f32 0.0, %v718
      %v720 = vpop.f32.mrb[0].mxu0
      %721 = vmatprep.mubr.f32.mxu0 0.0
      %722 = vmatmul.mubr.f32.gmra.mrb[0].mxu0 %v536
      %v723 = vpop.f32.mrb[0].mxu0
      %v724 = vadd.f32 0.0, %v723
      %v725 = vpop.f32.mrb[0].mxu0
      %726 = vmatprep.mubr.f32.mxu0 0.0
      %727 = vmatmul.mubr.f32.gmra.mrb[0].mxu0 %v539
      %v728 = vpop.f32.mrb[0].mxu0
      %v729 = vadd.f32 0.0, %v728
      %v730 = vpop.f32.mrb[0].mxu0
      %731 = vmatprep.mubr.f32.mxu0 0.0
      %732 = vmatmul.mubr.f32.gmra.mrb[0].mxu0 %v542
      %v733 = vpop.f32.mrb[0].mxu0
      %v734 = vadd.f32 0.0, %v733
      %v735 = vpop.f32.mrb[0].mxu0
      %736 = vmatprep.mubr.f32.mxu0 0.0
      %737 = vmatmul.mubr.f32.gmra.mrb[0].mxu0 %v545
      %v738 = vpop.f32.mrb[0].mxu0
      %v739 = vadd.f32 0.0, %v738
      %v740 = vpop.f32.mrb[0].mxu0
      %741 = vmatprep.mubr.f32.mxu0 0.0
      %742 = vmatmul.mubr.f32.gmra.mrb[0].mxu0 %v548
      %v743 = vpop.f32.mrb[0].mxu0
      %v744 = vadd.f32 0.0, %v743
      %v745 = vpop.f32.mrb[0].mxu0
      %746 = vmatprep.mubr.f32.mxu0 0.0
      %747 = vmatmul.mubr.f32.gmra.mrb[0].mxu0 %v551
      %v748 = vpop.f32.mrb[0].mxu0
      %v749 = vadd.f32 0.0, %v748
      %v750 = vpop.f32.mrb[0].mxu0
      %751 = vmatprep.mubr.f32.mxu0 0.0
      %752 = vmatmul.mubr.f32.gmra.mrb[0].mxu0 %v554
      %v753 = vpop.f32.mrb[0].mxu0
      %v754 = vadd.f32 0.0, %v753
      %v755 = vpop.f32.mrb[0].mxu0
      %756 = vmatprep.mubr.f32.mxu0 0.0
      %757 = vmatmul.mubr.f32.gmra.mrb[0].mxu0 %v557
      %v758 = vpop.f32.mrb[0].mxu0
      %v759 = vadd.f32 0.0, %v758
      %v760 = vpop.f32.mrb[0].mxu0
      %761 = vmatprep.mubr.f32.mxu0 0.0
      %762 = vmatmul.mubr.f32.gmra.mrb[0].mxu0 %v560
      %v763 = vpop.f32.mrb[0].mxu0
      %v764 = vadd.f32 0.0, %v763
      %v765 = vpop.f32.mrb[0].mxu0
      %766 = vmatprep.mubr.f32.mxu0 0.0
      %767 = vmatmul.mubr.f32.gmra.mrb[0].mxu0 %v563
      %v768 = vpop.f32.mrb[0].mxu0
      %v769 = vadd.f32 0.0, %v768
      %v770 = vpop.f32.mrb[0].mxu0
      %771 = vmatprep.mubr.f32.mxu0 0.0
      %772 = vmatmul.mubr.f32.gmra.mrb[0].mxu0 %v566
      %v773 = vpop.f32.mrb[0].mxu0
      %v774 = vadd.f32 0.0, %v773
      %v775 = vpop.f32.mrb[0].mxu0
      %776 = vmatprep.mubr.f32.mxu0 0.0
      %777 = vmatmul.mubr.f32.gmra.mrb[0].mxu0 %v569
      %v778 = vpop.f32.mrb[0].mxu0
      %v779 = vadd.f32 0.0, %v778
      %v780 = vpop.f32.mrb[0].mxu0
      %781 = vmatprep.mubr.f32.mxu0 0.0
      %782 = vmatmul.mubr.f32.gmra.mrb[0].mxu0 %v572
      %v783 = vpop.f32.mrb[0].mxu0
      %v784 = vadd.f32 0.0, %v783
      %v785 = vpop.f32.mrb[0].mxu0
      %786 = vmatprep.mubr.f32.mxu0 0.0
      %787 = vmatmul.mubr.f32.gmra.mrb[0].mxu0 %v575
      %v788 = vpop.f32.mrb[0].mxu0
      %v789 = vadd.f32 0.0, %v788
      %v790 = vpop.f32.mrb[0].mxu0
      %791 = vmatprep.mubr.f32.mxu0 0.0
      %792 = vmatmul.mubr.f32.gmra.mrb[0].mxu0 %v578
      %v793 = vpop.f32.mrb[0].mxu0
      %v794 = vadd.f32 0.0, %v793
      %v795 = vpop.f32.mrb[0].mxu0
      %796 = vmatprep.mubr.f32.mxu0 0.0
      %797 = vmatmul.mubr.f32.gmra.mrb[0].mxu0 %v581
      %v798 = vpop.f32.mrb[0].mxu0
      %v799 = vadd.f32 0.0, %v798
      %v800 = vpop.f32.mrb[0].mxu0
      %801 = vmatprep.mubr.f32.mxu0 0.0
      %802 = vmatmul.mubr.f32.gmra.mrb[0].mxu0 %v584
      %v803 = vpop.f32.mrb[0].mxu0
      %v804 = vadd.f32 0.0, %v803
      %v805 = vpop.f32.mrb[0].mxu0
      %806 = vmatprep.mubr.f32.mxu0 0.0
      %807 = vmatmul.mubr.f32.gmra.mrb[0].mxu0 %v587
      %v808 = vpop.f32.mrb[0].mxu0
      %v809 = vadd.f32 0.0, %v808
      %v810 = vpop.f32.mrb[0].mxu0
      %811 = vmatprep.mubr.f32.mxu0 0.0
      %812 = vmatmul.mubr.f32.gmra.mrb[0].mxu0 %v590
      %v813 = vpop.f32.mrb[0].mxu0
      %v814 = vadd.f32 0.0, %v813
      %v815 = vpop.f32.mrb[0].mxu0
      %816 = vmatprep.mubr.f32.mxu0 0.0
      %817 = vmatmul.mubr.f32.gmra.mrb[0].mxu0 %v593
      %v818 = vpop.f32.mrb[0].mxu0
      %v819 = vadd.f32 0.0, %v818
      %v820 = vpop.f32.mrb[0].mxu0
      %821 = vmatprep.mubr.f32.mxu0 0.0
      %822 = vmatmul.mubr.f32.gmra.mrb[0].mxu0 %v596
      %v823 = vpop.f32.mrb[0].mxu0
      %v824 = vadd.f32 0.0, %v823
      %v825 = vpop.f32.mrb[0].mxu0
      %826 = vdwg.mxu0
      %v827 = vld [vmem:[%s2] sm:$0x1]
      %v829 = vlaneseq
      %v830 = vshrl.u32 %v829, 7
      %v831 = vsub.s32 0, %v830
      %v832 = vrot.slane %v827, %v831
      %v834 = vmul.f32 %v669, %v832
      %v835 = vmul.f32 %v674, %v832
      %v836 = vmul.f32 %v679, %v832
      %v837 = vmul.f32 %v684, %v832
      %v838 = vmul.f32 %v689, %v832
      %v839 = vmul.f32 %v694, %v832
      %v840 = vmul.f32 %v699, %v832
      %v841 = vmul.f32 %v704, %v832
      %v842 = vmul.f32 %v709, %v832
      %v843 = vmul.f32 %v714, %v832
      %v844 = vmul.f32 %v719, %v832
      %v845 = vmul.f32 %v724, %v832
      %v846 = vmul.f32 %v729, %v832
      %v847 = vmul.f32 %v734, %v832
      %v848 = vmul.f32 %v739, %v832
      %v849 = vmul.f32 %v744, %v832
      %v850 = vmul.f32 %v749, %v832
      %v851 = vmul.f32 %v754, %v832
      %v852 = vmul.f32 %v759, %v832
      %v853 = vmul.f32 %v764, %v832
      %v854 = vmul.f32 %v769, %v832
      %v855 = vmul.f32 %v774, %v832
      %v856 = vmul.f32 %v779, %v832
      %v857 = vmul.f32 %v784, %v832
      %v858 = vmul.f32 %v789, %v832
      %v859 = vmul.f32 %v794, %v832
      %v860 = vmul.f32 %v799, %v832
      %v861 = vmul.f32 %v804, %v832
      %v862 = vmul.f32 %v809, %v832
      %v863 = vmul.f32 %v814, %v832
      %v864 = vmul.f32 %v819, %v832
      %v865 = vmul.f32 %v824, %v832
      %v866 = vld [vmem:[%s3] sm:$0x1]
      %v868 = vlaneseq
      %v869 = vshrl.u32 %v868, 7
      %v870 = vsub.s32 0, %v869
      %v871 = vrot.slane %v866, %v870
      %v873 = vadd.f32 %v834, %v871
      %v874 = vadd.f32 %v835, %v871
      %v875 = vadd.f32 %v836, %v871
      %v876 = vadd.f32 %v837, %v871
      %v877 = vadd.f32 %v838, %v871
      %v878 = vadd.f32 %v839, %v871
      %v879 = vadd.f32 %v840, %v871
      %v880 = vadd.f32 %v841, %v871
      %v881 = vadd.f32 %v842, %v871
      %v882 = vadd.f32 %v843, %v871
      %v883 = vadd.f32 %v844, %v871
      %v884 = vadd.f32 %v845, %v871
      %v885 = vadd.f32 %v846, %v871
      %v886 = vadd.f32 %v847, %v871
      %v887 = vadd.f32 %v848, %v871
      %v888 = vadd.f32 %v849, %v871
      %v889 = vadd.f32 %v850, %v871
      %v890 = vadd.f32 %v851, %v871
      %v891 = vadd.f32 %v852, %v871
      %v892 = vadd.f32 %v853, %v871
      %v893 = vadd.f32 %v854, %v871
      %v894 = vadd.f32 %v855, %v871
      %v895 = vadd.f32 %v856, %v871
      %v896 = vadd.f32 %v857, %v871
      %v897 = vadd.f32 %v858, %v871
      %v898 = vadd.f32 %v859, %v871
      %v899 = vadd.f32 %v860, %v871
      %v900 = vadd.f32 %v861, %v871
      %v901 = vadd.f32 %v862, %v871
      %v902 = vadd.f32 %v863, %v871
      %v903 = vadd.f32 %v864, %v871
      %v904 = vadd.f32 %v865, %v871
      %v905 = vxor.u32 %v873, 2147483648
      %v906 = vxor.u32 %v874, 2147483648
      %v907 = vxor.u32 %v875, 2147483648
      %v908 = vxor.u32 %v876, 2147483648
      %v909 = vxor.u32 %v877, 2147483648
      %v910 = vxor.u32 %v878, 2147483648
      %v911 = vxor.u32 %v879, 2147483648
      %v912 = vxor.u32 %v880, 2147483648
      %v913 = vxor.u32 %v881, 2147483648
      %v914 = vxor.u32 %v882, 2147483648
      %v915 = vxor.u32 %v883, 2147483648
      %v916 = vxor.u32 %v884, 2147483648
      %v917 = vxor.u32 %v885, 2147483648
      %v918 = vxor.u32 %v886, 2147483648
      %v919 = vxor.u32 %v887, 2147483648
      %v920 = vxor.u32 %v888, 2147483648
      %v921 = vxor.u32 %v889, 2147483648
      %v922 = vxor.u32 %v890, 2147483648
      %v923 = vxor.u32 %v891, 2147483648
      %v924 = vxor.u32 %v892, 2147483648
      %v925 = vxor.u32 %v893, 2147483648
      %v926 = vxor.u32 %v894, 2147483648
      %v927 = vxor.u32 %v895, 2147483648
      %v928 = vxor.u32 %v896, 2147483648
      %v929 = vxor.u32 %v897, 2147483648
      %v930 = vxor.u32 %v898, 2147483648
      %v931 = vxor.u32 %v899, 2147483648
      %v932 = vxor.u32 %v900, 2147483648
      %v933 = vxor.u32 %v901, 2147483648
      %v934 = vxor.u32 %v902, 2147483648
      %v935 = vxor.u32 %v903, 2147483648
      %v936 = vxor.u32 %v904, 2147483648
      %v937 = vmul.f32 %v905, 1.442695
      %v938 = vpow.pop %v937
      %v939 = vmul.f32 %v906, 1.442695
      %v940 = vpow.pop %v939
      %v941 = vmul.f32 %v907, 1.442695
      %v942 = vpow.pop %v941
      %v943 = vmul.f32 %v908, 1.442695
      %v944 = vpow.pop %v943
      %v945 = vmul.f32 %v909, 1.442695
      %v946 = vpow.pop %v945
      %v947 = vmul.f32 %v910, 1.442695
      %v948 = vpow.pop %v947
      %v949 = vmul.f32 %v911, 1.442695
      %v950 = vpow.pop %v949
      %v951 = vmul.f32 %v912, 1.442695
      %v952 = vpow.pop %v951
      %v953 = vmul.f32 %v913, 1.442695
      %v954 = vpow.pop %v953
      %v955 = vmul.f32 %v914, 1.442695
      %v956 = vpow.pop %v955
      %v957 = vmul.f32 %v915, 1.442695
      %v958 = vpow.pop %v957
      %v959 = vmul.f32 %v916, 1.442695
      %v960 = vpow.pop %v959
      %v961 = vmul.f32 %v917, 1.442695
      %v962 = vpow.pop %v961
      %v963 = vmul.f32 %v918, 1.442695
      %v964 = vpow.pop %v963
      %v965 = vmul.f32 %v919, 1.442695
      %v966 = vpow.pop %v965
      %v967 = vmul.f32 %v920, 1.442695
      %v968 = vpow.pop %v967
      %v969 = vmul.f32 %v921, 1.442695
      %v970 = vpow.pop %v969
      %v971 = vmul.f32 %v922, 1.442695
      %v972 = vpow.pop %v971
      %v973 = vmul.f32 %v923, 1.442695
      %v974 = vpow.pop %v973
      %v975 = vmul.f32 %v924, 1.442695
      %v976 = vpow.pop %v975
      %v977 = vmul.f32 %v925, 1.442695
      %v978 = vpow.pop %v977
      %v979 = vmul.f32 %v926, 1.442695
      %v980 = vpow.pop %v979
      %v981 = vmul.f32 %v927, 1.442695
      %v982 = vpow.pop %v981
      %v983 = vmul.f32 %v928, 1.442695
      %v984 = vpow.pop %v983
      %v985 = vmul.f32 %v929, 1.442695
      %v986 = vpow.pop %v985
      %v987 = vmul.f32 %v930, 1.442695
      %v988 = vpow.pop %v987
      %v989 = vmul.f32 %v931, 1.442695
      %v990 = vpow.pop %v989
      %v991 = vmul.f32 %v932, 1.442695
      %v992 = vpow.pop %v991
      %v993 = vmul.f32 %v933, 1.442695
      %v994 = vpow.pop %v993
      %v995 = vmul.f32 %v934, 1.442695
      %v996 = vpow.pop %v995
      %v997 = vmul.f32 %v935, 1.442695
      %v998 = vpow.pop %v997
      %v999 = vmul.f32 %v936, 1.442695
      %v1000 = vpow.pop %v999
      %v1001 = vadd.f32 %v938, 1.0
      %v1002 = vadd.f32 %v940, 1.0
      %v1003 = vadd.f32 %v942, 1.0
      %v1004 = vadd.f32 %v944, 1.0
      %v1005 = vadd.f32 %v946, 1.0
      %v1006 = vadd.f32 %v948, 1.0
      %v1007 = vadd.f32 %v950, 1.0
      %v1008 = vadd.f32 %v952, 1.0
      %v1009 = vadd.f32 %v954, 1.0
      %v1010 = vadd.f32 %v956, 1.0
      %v1011 = vadd.f32 %v958, 1.0
      %v1012 = vadd.f32 %v960, 1.0
      %v1013 = vadd.f32 %v962, 1.0
      %v1014 = vadd.f32 %v964, 1.0
      %v1015 = vadd.f32 %v966, 1.0
      %v1016 = vadd.f32 %v968, 1.0
      %v1017 = vadd.f32 %v970, 1.0
      %v1018 = vadd.f32 %v972, 1.0
      %v1019 = vadd.f32 %v974, 1.0
      %v1020 = vadd.f32 %v976, 1.0
      %v1021 = vadd.f32 %v978, 1.0
      %v1022 = vadd.f32 %v980, 1.0
      %v1023 = vadd.f32 %v982, 1.0
      %v1024 = vadd.f32 %v984, 1.0
      %v1025 = vadd.f32 %v986, 1.0
      %v1026 = vadd.f32 %v988, 1.0
      %v1027 = vadd.f32 %v990, 1.0
      %v1028 = vadd.f32 %v992, 1.0
      %v1029 = vadd.f32 %v994, 1.0
      %v1030 = vadd.f32 %v996, 1.0
      %v1031 = vadd.f32 %v998, 1.0
      %v1032 = vadd.f32 %v1000, 1.0
      %v1033 = vrcp.pop %v1001
      %v1034 = vmul.f32 1.0, %v1033
      %v1035 = vrcp.pop %v1002
      %v1036 = vmul.f32 1.0, %v1035
      %v1037 = vrcp.pop %v1003
      %v1038 = vmul.f32 1.0, %v1037
      %v1039 = vrcp.pop %v1004
      %v1040 = vmul.f32 1.0, %v1039
      %v1041 = vrcp.pop %v1005
      %v1042 = vmul.f32 1.0, %v1041
      %v1043 = vrcp.pop %v1006
      %v1044 = vmul.f32 1.0, %v1043
      %v1045 = vrcp.pop %v1007
      %v1046 = vmul.f32 1.0, %v1045
      %v1047 = vrcp.pop %v1008
      %v1048 = vmul.f32 1.0, %v1047
      %v1049 = vrcp.pop %v1009
      %v1050 = vmul.f32 1.0, %v1049
      %v1051 = vrcp.pop %v1010
      %v1052 = vmul.f32 1.0, %v1051
      %v1053 = vrcp.pop %v1011
      %v1054 = vmul.f32 1.0, %v1053
      %v1055 = vrcp.pop %v1012
      %v1056 = vmul.f32 1.0, %v1055
      %v1057 = vrcp.pop %v1013
      %v1058 = vmul.f32 1.0, %v1057
      %v1059 = vrcp.pop %v1014
      %v1060 = vmul.f32 1.0, %v1059
      %v1061 = vrcp.pop %v1015
      %v1062 = vmul.f32 1.0, %v1061
      %v1063 = vrcp.pop %v1016
      %v1064 = vmul.f32 1.0, %v1063
      %v1065 = vrcp.pop %v1017
      %v1066 = vmul.f32 1.0, %v1065
      %v1067 = vrcp.pop %v1018
      %v1068 = vmul.f32 1.0, %v1067
      %v1069 = vrcp.pop %v1019
      %v1070 = vmul.f32 1.0, %v1069
      %v1071 = vrcp.pop %v1020
      %v1072 = vmul.f32 1.0, %v1071
      %v1073 = vrcp.pop %v1021
      %v1074 = vmul.f32 1.0, %v1073
      %v1075 = vrcp.pop %v1022
      %v1076 = vmul.f32 1.0, %v1075
      %v1077 = vrcp.pop %v1023
      %v1078 = vmul.f32 1.0, %v1077
      %v1079 = vrcp.pop %v1024
      %v1080 = vmul.f32 1.0, %v1079
      %v1081 = vrcp.pop %v1025
      %v1082 = vmul.f32 1.0, %v1081
      %v1083 = vrcp.pop %v1026
      %v1084 = vmul.f32 1.0, %v1083
      %v1085 = vrcp.pop %v1027
      %v1086 = vmul.f32 1.0, %v1085
      %v1087 = vrcp.pop %v1028
      %v1088 = vmul.f32 1.0, %v1087
      %v1089 = vrcp.pop %v1029
      %v1090 = vmul.f32 1.0, %v1089
      %v1091 = vrcp.pop %v1030
      %v1092 = vmul.f32 1.0, %v1091
      %v1093 = vrcp.pop %v1031
      %v1094 = vmul.f32 1.0, %v1093
      %v1095 = vrcp.pop %v1032
      %v1096 = vmul.f32 1.0, %v1095
      %v1097 = vmul.f32 %v873, %v1034
      %v1098 = vmul.f32 %v874, %v1036
      %v1099 = vmul.f32 %v875, %v1038
      %v1100 = vmul.f32 %v876, %v1040
      %v1101 = vmul.f32 %v877, %v1042
      %v1102 = vmul.f32 %v878, %v1044
      %v1103 = vmul.f32 %v879, %v1046
      %v1104 = vmul.f32 %v880, %v1048
      %v1105 = vmul.f32 %v881, %v1050
      %v1106 = vmul.f32 %v882, %v1052
      %v1107 = vmul.f32 %v883, %v1054
      %v1108 = vmul.f32 %v884, %v1056
      %v1109 = vmul.f32 %v885, %v1058
      %v1110 = vmul.f32 %v886, %v1060
      %v1111 = vmul.f32 %v887, %v1062
      %v1112 = vmul.f32 %v888, %v1064
      %v1113 = vmul.f32 %v889, %v1066
      %v1114 = vmul.f32 %v890, %v1068
      %v1115 = vmul.f32 %v891, %v1070
      %v1116 = vmul.f32 %v892, %v1072
      %v1117 = vmul.f32 %v893, %v1074
      %v1118 = vmul.f32 %v894, %v1076
      %v1119 = vmul.f32 %v895, %v1078
      %v1120 = vmul.f32 %v896, %v1080
      %v1121 = vmul.f32 %v897, %v1082
      %v1122 = vmul.f32 %v898, %v1084
      %v1123 = vmul.f32 %v899, %v1086
      %v1124 = vmul.f32 %v900, %v1088
      %v1125 = vmul.f32 %v901, %v1090
      %v1126 = vmul.f32 %v902, %v1092
      %v1127 = vmul.f32 %v903, %v1094
      %v1128 = vmul.f32 %v904, %v1096
      %vm1129 = vcmask 130048
      %1130 = vst.msk [vmem:[#allocation2] sm:$0xff] %vm1129, 0.0
      %1131 = vst.msk [vmem:[#allocation2 + $0x8] sm:$0xff] %vm1129, 0.0
      %vm1132 = vcmask 123904
      %1133 = vst.msk [vmem:[#allocation2 + $0x10] sm:$0x3] %vm1132, 0.0
      %1134 = vst.msk [vmem:[#allocation2 + $0x18] sm:$0xff] %vm1129, 0.0
      %1135 = vst.msk [vmem:[#allocation2 + $0x20] sm:$0xff] %vm1129, 0.0
      %1136 = vst.msk [vmem:[#allocation2 + $0x28] sm:$0x3] %vm1132, 0.0
      %1137 = vst.msk [vmem:[#allocation2 + $0x30] sm:$0xff] %vm1129, 0.0
      %1138 = vst.msk [vmem:[#allocation2 + $0x38] sm:$0xff] %vm1129, 0.0
      %1139 = vst.msk [vmem:[#allocation2 + $0x40] sm:$0x3] %vm1132, 0.0
      %1140 = vst.msk [vmem:[#allocation2 + $0x48] sm:$0xff] %vm1129, 0.0
      %1141 = vst.msk [vmem:[#allocation2 + $0x50] sm:$0xff] %vm1129, 0.0
      %1142 = vst.msk [vmem:[#allocation2 + $0x58] sm:$0x3] %vm1132, 0.0
      %1143 = vst.msk [vmem:[#allocation2 + $0x60] sm:$0xff] %vm1129, 0.0
      %1144 = vst.msk [vmem:[#allocation2 + $0x68] sm:$0xff] %vm1129, 0.0
      %1145 = vst.msk [vmem:[#allocation2 + $0x70] sm:$0x3] %vm1132, 0.0
      %1146 = vst.msk [vmem:[#allocation2 + $0x78] sm:$0xff] %vm1129, 0.0
      %1147 = vst.msk [vmem:[#allocation2 + $0x80] sm:$0xff] %vm1129, 0.0
      %1148 = vst.msk [vmem:[#allocation2 + $0x88] sm:$0x3] %vm1132, 0.0
      %1149 = vst.msk [vmem:[#allocation2 + $0x90] sm:$0xff] %vm1129, 0.0
      %1150 = vst.msk [vmem:[#allocation2 + $0x98] sm:$0xff] %vm1129, 0.0
      %1151 = vst.msk [vmem:[#allocation2 + $0xa0] sm:$0x3] %vm1132, 0.0
      %1152 = vst.msk [vmem:[#allocation2 + $0xa8] sm:$0xff] %vm1129, 0.0
      %1153 = vst.msk [vmem:[#allocation2 + $0xb0] sm:$0xff] %vm1129, 0.0
      %1154 = vst.msk [vmem:[#allocation2 + $0xb8] sm:$0x3] %vm1132, 0.0
      %1155 = vst.msk [vmem:[#allocation2 + $0xc0] sm:$0xff] %vm1129, 0.0
      %1156 = vst.msk [vmem:[#allocation2 + $0xc8] sm:$0xff] %vm1129, 0.0
      %1157 = vst.msk [vmem:[#allocation2 + $0xd0] sm:$0x3] %vm1132, 0.0
      %1158 = vst.msk [vmem:[#allocation2 + $0xd8] sm:$0xff] %vm1129, 0.0
      %1159 = vst.msk [vmem:[#allocation2 + $0xe0] sm:$0xff] %vm1129, 0.0
      %1160 = vst.msk [vmem:[#allocation2 + $0xe8] sm:$0x3] %vm1132, 0.0
      %1161 = vst.msk [vmem:[#allocation2 + $0xf0] sm:$0xff] %vm1129, 0.0
      %1162 = vst.msk [vmem:[#allocation2 + $0xf8] sm:$0xff] %vm1129, 0.0
      %1163 = vst.msk [vmem:[#allocation2 + $0x100] sm:$0x3] %vm1132, 0.0
      %1164 = vst.msk [vmem:[#allocation2 + $0x108] sm:$0xff] %vm1129, 0.0
      %1165 = vst.msk [vmem:[#allocation2 + $0x110] sm:$0xff] %vm1129, 0.0
      %1166 = vst.msk [vmem:[#allocation2 + $0x118] sm:$0x3] %vm1132, 0.0
      %1167 = vst.msk [vmem:[#allocation2 + $0x120] sm:$0xff] %vm1129, 0.0
      %1168 = vst.msk [vmem:[#allocation2 + $0x128] sm:$0xff] %vm1129, 0.0
      %1169 = vst.msk [vmem:[#allocation2 + $0x130] sm:$0x3] %vm1132, 0.0
      %1170 = vst.msk [vmem:[#allocation2 + $0x138] sm:$0xff] %vm1129, 0.0
      %1171 = vst.msk [vmem:[#allocation2 + $0x140] sm:$0xff] %vm1129, 0.0
      %1172 = vst.msk [vmem:[#allocation2 + $0x148] sm:$0x3] %vm1132, 0.0
      %1173 = vst.msk [vmem:[#allocation2 + $0x150] sm:$0xff] %vm1129, 0.0
      %1174 = vst.msk [vmem:[#allocation2 + $0x158] sm:$0xff] %vm1129, 0.0
      %1175 = vst.msk [vmem:[#allocation2 + $0x160] sm:$0x3] %vm1132, 0.0
      %1176 = vst.msk [vmem:[#allocation2 + $0x168] sm:$0xff] %vm1129, 0.0
      %1177 = vst.msk [vmem:[#allocation2 + $0x170] sm:$0xff] %vm1129, 0.0
      %1178 = vst.msk [vmem:[#allocation2 + $0x178] sm:$0x3] %vm1132, 0.0
      %1179 = vst.msk [vmem:[#allocation2 + $0x180] sm:$0xff] %vm1129, 0.0
      %1180 = vst.msk [vmem:[#allocation2 + $0x188] sm:$0xff] %vm1129, 0.0
      %1181 = vst.msk [vmem:[#allocation2 + $0x190] sm:$0x3] %vm1132, 0.0
      %1182 = vst.msk [vmem:[#allocation2 + $0x198] sm:$0xff] %vm1129, 0.0
      %1183 = vst.msk [vmem:[#allocation2 + $0x1a0] sm:$0xff] %vm1129, 0.0
      %1184 = vst.msk [vmem:[#allocation2 + $0x1a8] sm:$0x3] %vm1132, 0.0
      %s1185 = scalar_lea.vmem [#allocation2], 24
      %1186 = vst.msk [vmem:[%s1185 + $0x1] sm:$0xff] %vm1129, %v1097
      %1187 = vst.msk [vmem:[%s1185 + $0x9] sm:$0xff] %vm1129, %v1098
      %1188 = vst.msk [vmem:[%s1185 + $0x19] sm:$0xff] %vm1129, %v1099
      %1189 = vst.msk [vmem:[%s1185 + $0x21] sm:$0xff] %vm1129, %v1100
      %1190 = vst.msk [vmem:[%s1185 + $0x31] sm:$0xff] %vm1129, %v1101
      %1191 = vst.msk [vmem:[%s1185 + $0x39] sm:$0xff] %vm1129, %v1102
      %1192 = vst.msk [vmem:[%s1185 + $0x49] sm:$0xff] %vm1129, %v1103
      %1193 = vst.msk [vmem:[%s1185 + $0x51] sm:$0xff] %vm1129, %v1104
      %1194 = vst.msk [vmem:[%s1185 + $0x61] sm:$0xff] %vm1129, %v1105
      %1195 = vst.msk [vmem:[%s1185 + $0x69] sm:$0xff] %vm1129, %v1106
      %1196 = vst.msk [vmem:[%s1185 + $0x79] sm:$0xff] %vm1129, %v1107
      %1197 = vst.msk [vmem:[%s1185 + $0x81] sm:$0xff] %vm1129, %v1108
      %1198 = vst.msk [vmem:[%s1185 + $0x91] sm:$0xff] %vm1129, %v1109
      %1199 = vst.msk [vmem:[%s1185 + $0x99] sm:$0xff] %vm1129, %v1110
      %1200 = vst.msk [vmem:[%s1185 + $0xa9] sm:$0xff] %vm1129, %v1111
      %1201 = vst.msk [vmem:[%s1185 + $0xb1] sm:$0xff] %vm1129, %v1112
      %1202 = vst.msk [vmem:[%s1185 + $0xc1] sm:$0xff] %vm1129, %v1113
      %1203 = vst.msk [vmem:[%s1185 + $0xc9] sm:$0xff] %vm1129, %v1114
      %1204 = vst.msk [vmem:[%s1185 + $0xd9] sm:$0xff] %vm1129, %v1115
      %1205 = vst.msk [vmem:[%s1185 + $0xe1] sm:$0xff] %vm1129, %v1116
      %1206 = vst.msk [vmem:[%s1185 + $0xf1] sm:$0xff] %vm1129, %v1117
      %1207 = vst.msk [vmem:[%s1185 + $0xf9] sm:$0xff] %vm1129, %v1118
      %1208 = vst.msk [vmem:[%s1185 + $0x109] sm:$0xff] %vm1129, %v1119
      %1209 = vst.msk [vmem:[%s1185 + $0x111] sm:$0xff] %vm1129, %v1120
      %1210 = vst.msk [vmem:[%s1185 + $0x121] sm:$0xff] %vm1129, %v1121
      %1211 = vst.msk [vmem:[%s1185 + $0x129] sm:$0xff] %vm1129, %v1122
      %1212 = vst.msk [vmem:[%s1185 + $0x139] sm:$0xff] %vm1129, %v1123
      %1213 = vst.msk [vmem:[%s1185 + $0x141] sm:$0xff] %vm1129, %v1124
      %1214 = vst.msk [vmem:[%s1185 + $0x151] sm:$0xff] %vm1129, %v1125
      %1215 = vst.msk [vmem:[%s1185 + $0x159] sm:$0xff] %vm1129, %v1126
      %1216 = vst.msk [vmem:[%s1185 + $0x169] sm:$0xff] %vm1129, %v1127
      %1217 = vst.msk [vmem:[%s1185 + $0x171] sm:$0xff] %vm1129, %v1128
      %v1218 = vld [vmem:[%s4] sm:$0x7]
      %v1219 = vld [vmem:[%s4 + $0x4] sm:$0x7]
      %v1220 = vld [vmem:[%s4 + $0x8] sm:$0x7]
      %v1221 = vld [vmem:[#allocation2] sm:$0xff]
      %v1222 = vld [vmem:[#allocation2 + $0x8] sm:$0xff]
      %v1223 = vld [vmem:[#allocation2 + $0x18] sm:$0xff]
      %v1224 = vld [vmem:[#allocation2 + $0x20] sm:$0xff]
      %v1225 = vld [vmem:[#allocation2 + $0x30] sm:$0xff]
      %v1226 = vld [vmem:[#allocation2 + $0x38] sm:$0xff]
      %v1227 = vld [vmem:[#allocation2 + $0x48] sm:$0xff]
      %v1228 = vld [vmem:[#allocation2 + $0x50] sm:$0xff]
      %v1229 = vld [vmem:[#allocation2 + $0x60] sm:$0xff]
      %v1230 = vld [vmem:[#allocation2 + $0x68] sm:$0xff]
      %v1231 = vld [vmem:[#allocation2 + $0x78] sm:$0xff]
      %v1232 = vld [vmem:[#allocation2 + $0x80] sm:$0xff]
      %v1233 = vld [vmem:[#allocation2 + $0x90] sm:$0xff]
      %v1234 = vld [vmem:[#allocation2 + $0x98] sm:$0xff]
      %v1235 = vld [vmem:[#allocation2 + $0xa8] sm:$0xff]
      %v1236 = vld [vmem:[#allocation2 + $0xb0] sm:$0xff]
      %v1237 = vld [vmem:[#allocation2 + $0xc0] sm:$0xff]
      %v1238 = vld [vmem:[#allocation2 + $0xc8] sm:$0xff]
      %v1239 = vld [vmem:[#allocation2 + $0xd8] sm:$0xff]
      %v1240 = vld [vmem:[#allocation2 + $0xe0] sm:$0xff]
      %v1241 = vld [vmem:[#allocation2 + $0xf0] sm:$0xff]
      %v1242 = vld [vmem:[#allocation2 + $0xf8] sm:$0xff]
      %v1243 = vld [vmem:[#allocation2 + $0x108] sm:$0xff]
      %v1244 = vld [vmem:[#allocation2 + $0x110] sm:$0xff]
      %v1245 = vld [vmem:[#allocation2 + $0x120] sm:$0xff]
      %v1246 = vld [vmem:[#allocation2 + $0x128] sm:$0xff]
      %v1247 = vld [vmem:[#allocation2 + $0x138] sm:$0xff]
      %v1248 = vld [vmem:[#allocation2 + $0x140] sm:$0xff]
      %v1249 = vld [vmem:[#allocation2 + $0x150] sm:$0xff]
      %v1250 = vld [vmem:[#allocation2 + $0x158] sm:$0xff]
      %v1251 = vld [vmem:[#allocation2 + $0x168] sm:$0xff]
      %v1252 = vld [vmem:[#allocation2 + $0x170] sm:$0xff]
      %v1253 = vlaneseq
      %v1254 = vshrl.u32 %v1253, 7
      %v1255 = vsub.s32 0, %v1254
      %v1256 = vrot.slane %v1218, %v1255
      %v1257 = vmul.f32 %v1221, %v1256
      %v1258 = vmul.f32 %v1222, %v1256
      %v1259 = vmul.f32 %v1223, %v1256
      %v1260 = vmul.f32 %v1224, %v1256
      %v1261 = vmul.f32 %v1225, %v1256
      %v1262 = vmul.f32 %v1226, %v1256
      %v1263 = vmul.f32 %v1227, %v1256
      %v1264 = vmul.f32 %v1228, %v1256
      %v1265 = vmul.f32 %v1229, %v1256
      %v1266 = vmul.f32 %v1230, %v1256
      %v1267 = vmul.f32 %v1231, %v1256
      %v1268 = vmul.f32 %v1232, %v1256
      %v1269 = vmul.f32 %v1233, %v1256
      %v1270 = vmul.f32 %v1234, %v1256
      %v1271 = vmul.f32 %v1235, %v1256
      %v1272 = vmul.f32 %v1236, %v1256
      %v1273 = vmul.f32 %v1237, %v1256
      %v1274 = vmul.f32 %v1238, %v1256
      %v1275 = vmul.f32 %v1239, %v1256
      %v1276 = vmul.f32 %v1240, %v1256
      %v1277 = vmul.f32 %v1241, %v1256
      %v1278 = vmul.f32 %v1242, %v1256
      %v1279 = vmul.f32 %v1243, %v1256
      %v1280 = vmul.f32 %v1244, %v1256
      %v1281 = vmul.f32 %v1245, %v1256
      %v1282 = vmul.f32 %v1246, %v1256
      %v1283 = vmul.f32 %v1247, %v1256
      %v1284 = vmul.f32 %v1248, %v1256
      %v1285 = vmul.f32 %v1249, %v1256
      %v1286 = vmul.f32 %v1250, %v1256
      %v1287 = vmul.f32 %v1251, %v1256
      %v1288 = vmul.f32 %v1252, %v1256
      %v1289 = vadd.f32 %v1257, 0.0
      %v1290 = vadd.f32 %v1258, 0.0
      %v1291 = vadd.f32 %v1259, 0.0
      %v1292 = vadd.f32 %v1260, 0.0
      %v1293 = vadd.f32 %v1261, 0.0
      %v1294 = vadd.f32 %v1262, 0.0
      %v1295 = vadd.f32 %v1263, 0.0
      %v1296 = vadd.f32 %v1264, 0.0
      %v1297 = vadd.f32 %v1265, 0.0
      %v1298 = vadd.f32 %v1266, 0.0
      %v1299 = vadd.f32 %v1267, 0.0
      %v1300 = vadd.f32 %v1268, 0.0
      %v1301 = vadd.f32 %v1269, 0.0
      %v1302 = vadd.f32 %v1270, 0.0
      %v1303 = vadd.f32 %v1271, 0.0
      %v1304 = vadd.f32 %v1272, 0.0
      %v1305 = vadd.f32 %v1273, 0.0
      %v1306 = vadd.f32 %v1274, 0.0
      %v1307 = vadd.f32 %v1275, 0.0
      %v1308 = vadd.f32 %v1276, 0.0
      %v1309 = vadd.f32 %v1277, 0.0
      %v1310 = vadd.f32 %v1278, 0.0
      %v1311 = vadd.f32 %v1279, 0.0
      %v1312 = vadd.f32 %v1280, 0.0
      %v1313 = vadd.f32 %v1281, 0.0
      %v1314 = vadd.f32 %v1282, 0.0
      %v1315 = vadd.f32 %v1283, 0.0
      %v1316 = vadd.f32 %v1284, 0.0
      %v1317 = vadd.f32 %v1285, 0.0
      %v1318 = vadd.f32 %v1286, 0.0
      %v1319 = vadd.f32 %v1287, 0.0
      %v1320 = vadd.f32 %v1288, 0.0
      %v1321 = vld [vmem:[#allocation2 + $0x1] sm:$0xff]
      %v1322 = vld [vmem:[#allocation2 + $0x9] sm:$0xff]
      %v1323 = vld [vmem:[#allocation2 + $0x19] sm:$0xff]
      %v1324 = vld [vmem:[#allocation2 + $0x21] sm:$0xff]
      %v1325 = vld [vmem:[#allocation2 + $0x31] sm:$0xff]
      %v1326 = vld [vmem:[#allocation2 + $0x39] sm:$0xff]
      %v1327 = vld [vmem:[#allocation2 + $0x49] sm:$0xff]
      %v1328 = vld [vmem:[#allocation2 + $0x51] sm:$0xff]
      %v1329 = vld [vmem:[#allocation2 + $0x61] sm:$0xff]
      %v1330 = vld [vmem:[#allocation2 + $0x69] sm:$0xff]
      %v1331 = vld [vmem:[#allocation2 + $0x79] sm:$0xff]
      %v1332 = vld [vmem:[#allocation2 + $0x81] sm:$0xff]
      %v1333 = vld [vmem:[#allocation2 + $0x91] sm:$0xff]
      %v1334 = vld [vmem:[#allocation2 + $0x99] sm:$0xff]
      %v1335 = vld [vmem:[#allocation2 + $0xa9] sm:$0xff]
      %v1336 = vld [vmem:[#allocation2 + $0xb1] sm:$0xff]
      %v1337 = vld [vmem:[#allocation2 + $0xc1] sm:$0xff]
      %v1338 = vld [vmem:[#allocation2 + $0xc9] sm:$0xff]
      %v1339 = vld [vmem:[#allocation2 + $0xd9] sm:$0xff]
      %v1340 = vld [vmem:[#allocation2 + $0xe1] sm:$0xff]
      %v1341 = vld [vmem:[#allocation2 + $0xf1] sm:$0xff]
      %v1342 = vld [vmem:[#allocation2 + $0xf9] sm:$0xff]
      %v1343 = vld [vmem:[#allocation2 + $0x109] sm:$0xff]
      %v1344 = vld [vmem:[#allocation2 + $0x111] sm:$0xff]
      %v1345 = vld [vmem:[#allocation2 + $0x121] sm:$0xff]
      %v1346 = vld [vmem:[#allocation2 + $0x129] sm:$0xff]
      %v1347 = vld [vmem:[#allocation2 + $0x139] sm:$0xff]
      %v1348 = vld [vmem:[#allocation2 + $0x141] sm:$0xff]
      %v1349 = vld [vmem:[#allocation2 + $0x151] sm:$0xff]
      %v1350 = vld [vmem:[#allocation2 + $0x159] sm:$0xff]
      %v1351 = vld [vmem:[#allocation2 + $0x169] sm:$0xff]
      %v1352 = vld [vmem:[#allocation2 + $0x171] sm:$0xff]
      %v1353 = vlaneseq
      %v1354 = vshrl.u32 %v1353, 7
      %v1355 = vsub.s32 1, %v1354
      %v1356 = vrot.slane %v1218, %v1355
      %v1357 = vmul.f32 %v1321, %v1356
      %v1358 = vmul.f32 %v1322, %v1356
      %v1359 = vmul.f32 %v1323, %v1356
      %v1360 = vmul.f32 %v1324, %v1356
      %v1361 = vmul.f32 %v1325, %v1356
      %v1362 = vmul.f32 %v1326, %v1356
      %v1363 = vmul.f32 %v1327, %v1356
      %v1364 = vmul.f32 %v1328, %v1356
      %v1365 = vmul.f32 %v1329, %v1356
      %v1366 = vmul.f32 %v1330, %v1356
      %v1367 = vmul.f32 %v1331, %v1356
      %v1368 = vmul.f32 %v1332, %v1356
      %v1369 = vmul.f32 %v1333, %v1356
      %v1370 = vmul.f32 %v1334, %v1356
      %v1371 = vmul.f32 %v1335, %v1356
      %v1372 = vmul.f32 %v1336, %v1356
      %v1373 = vmul.f32 %v1337, %v1356
      %v1374 = vmul.f32 %v1338, %v1356
      %v1375 = vmul.f32 %v1339, %v1356
      %v1376 = vmul.f32 %v1340, %v1356
      %v1377 = vmul.f32 %v1341, %v1356
      %v1378 = vmul.f32 %v1342, %v1356
      %v1379 = vmul.f32 %v1343, %v1356
      %v1380 = vmul.f32 %v1344, %v1356
      %v1381 = vmul.f32 %v1345, %v1356
      %v1382 = vmul.f32 %v1346, %v1356
      %v1383 = vmul.f32 %v1347, %v1356
      %v1384 = vmul.f32 %v1348, %v1356
      %v1385 = vmul.f32 %v1349, %v1356
      %v1386 = vmul.f32 %v1350, %v1356
      %v1387 = vmul.f32 %v1351, %v1356
      %v1388 = vmul.f32 %v1352, %v1356
      %v1389 = vadd.f32 %v1289, %v1357
      %v1390 = vadd.f32 %v1290, %v1358
      %v1391 = vadd.f32 %v1291, %v1359
      %v1392 = vadd.f32 %v1292, %v1360
      %v1393 = vadd.f32 %v1293, %v1361
      %v1394 = vadd.f32 %v1294, %v1362
      %v1395 = vadd.f32 %v1295, %v1363
      %v1396 = vadd.f32 %v1296, %v1364
      %v1397 = vadd.f32 %v1297, %v1365
      %v1398 = vadd.f32 %v1298, %v1366
      %v1399 = vadd.f32 %v1299, %v1367
      %v1400 = vadd.f32 %v1300, %v1368
      %v1401 = vadd.f32 %v1301, %v1369
      %v1402 = vadd.f32 %v1302, %v1370
      %v1403 = vadd.f32 %v1303, %v1371
      %v1404 = vadd.f32 %v1304, %v1372
      %v1405 = vadd.f32 %v1305, %v1373
      %v1406 = vadd.f32 %v1306, %v1374
      %v1407 = vadd.f32 %v1307, %v1375
      %v1408 = vadd.f32 %v1308, %v1376
      %v1409 = vadd.f32 %v1309, %v1377
      %v1410 = vadd.f32 %v1310, %v1378
      %v1411 = vadd.f32 %v1311, %v1379
      %v1412 = vadd.f32 %v1312, %v1380
      %v1413 = vadd.f32 %v1313, %v1381
      %v1414 = vadd.f32 %v1314, %v1382
      %v1415 = vadd.f32 %v1315, %v1383
      %v1416 = vadd.f32 %v1316, %v1384
      %v1417 = vadd.f32 %v1317, %v1385
      %v1418 = vadd.f32 %v1318, %v1386
      %v1419 = vadd.f32 %v1319, %v1387
      %v1420 = vadd.f32 %v1320, %v1388
      %v1421 = vld [vmem:[#allocation2 + $0x2] sm:$0xff]
      %v1422 = vld [vmem:[#allocation2 + $0xa] sm:$0xff]
      %v1423 = vld [vmem:[#allocation2 + $0x1a] sm:$0xff]
      %v1424 = vld [vmem:[#allocation2 + $0x22] sm:$0xff]
      %v1425 = vld [vmem:[#allocation2 + $0x32] sm:$0xff]
      %v1426 = vld [vmem:[#allocation2 + $0x3a] sm:$0xff]
      %v1427 = vld [vmem:[#allocation2 + $0x4a] sm:$0xff]
      %v1428 = vld [vmem:[#allocation2 + $0x52] sm:$0xff]
      %v1429 = vld [vmem:[#allocation2 + $0x62] sm:$0xff]
      %v1430 = vld [vmem:[#allocation2 + $0x6a] sm:$0xff]
      %v1431 = vld [vmem:[#allocation2 + $0x7a] sm:$0xff]
      %v1432 = vld [vmem:[#allocation2 + $0x82] sm:$0xff]
      %v1433 = vld [vmem:[#allocation2 + $0x92] sm:$0xff]
      %v1434 = vld [vmem:[#allocation2 + $0x9a] sm:$0xff]
      %v1435 = vld [vmem:[#allocation2 + $0xaa] sm:$0xff]
      %v1436 = vld [vmem:[#allocation2 + $0xb2] sm:$0xff]
      %v1437 = vld [vmem:[#allocation2 + $0xc2] sm:$0xff]
      %v1438 = vld [vmem:[#allocation2 + $0xca] sm:$0xff]
      %v1439 = vld [vmem:[#allocation2 + $0xda] sm:$0xff]
      %v1440 = vld [vmem:[#allocation2 + $0xe2] sm:$0xff]
      %v1441 = vld [vmem:[#allocation2 + $0xf2] sm:$0xff]
      %v1442 = vld [vmem:[#allocation2 + $0xfa] sm:$0xff]
      %v1443 = vld [vmem:[#allocation2 + $0x10a] sm:$0xff]
      %v1444 = vld [vmem:[#allocation2 + $0x112] sm:$0xff]
      %v1445 = vld [vmem:[#allocation2 + $0x122] sm:$0xff]
      %v1446 = vld [vmem:[#allocation2 + $0x12a] sm:$0xff]
      %v1447 = vld [vmem:[#allocation2 + $0x13a] sm:$0xff]
      %v1448 = vld [vmem:[#allocation2 + $0x142] sm:$0xff]
      %v1449 = vld [vmem:[#allocation2 + $0x152] sm:$0xff]
      %v1450 = vld [vmem:[#allocation2 + $0x15a] sm:$0xff]
      %v1451 = vld [vmem:[#allocation2 + $0x16a] sm:$0xff]
      %v1452 = vld [vmem:[#allocation2 + $0x172] sm:$0xff]
      %v1453 = vlaneseq
      %v1454 = vshrl.u32 %v1453, 7
      %v1455 = vsub.s32 2, %v1454
      %v1456 = vrot.slane %v1218, %v1455
      %v1457 = vmul.f32 %v1421, %v1456
      %v1458 = vmul.f32 %v1422, %v1456
      %v1459 = vmul.f32 %v1423, %v1456
      %v1460 = vmul.f32 %v1424, %v1456
      %v1461 = vmul.f32 %v1425, %v1456
      %v1462 = vmul.f32 %v1426, %v1456
      %v1463 = vmul.f32 %v1427, %v1456
      %v1464 = vmul.f32 %v1428, %v1456
      %v1465 = vmul.f32 %v1429, %v1456
      %v1466 = vmul.f32 %v1430, %v1456
      %v1467 = vmul.f32 %v1431, %v1456
      %v1468 = vmul.f32 %v1432, %v1456
      %v1469 = vmul.f32 %v1433, %v1456
      %v1470 = vmul.f32 %v1434, %v1456
      %v1471 = vmul.f32 %v1435, %v1456
      %v1472 = vmul.f32 %v1436, %v1456
      %v1473 = vmul.f32 %v1437, %v1456
      %v1474 = vmul.f32 %v1438, %v1456
      %v1475 = vmul.f32 %v1439, %v1456
      %v1476 = vmul.f32 %v1440, %v1456
      %v1477 = vmul.f32 %v1441, %v1456
      %v1478 = vmul.f32 %v1442, %v1456
      %v1479 = vmul.f32 %v1443, %v1456
      %v1480 = vmul.f32 %v1444, %v1456
      %v1481 = vmul.f32 %v1445, %v1456
      %v1482 = vmul.f32 %v1446, %v1456
      %v1483 = vmul.f32 %v1447, %v1456
      %v1484 = vmul.f32 %v1448, %v1456
      %v1485 = vmul.f32 %v1449, %v1456
      %v1486 = vmul.f32 %v1450, %v1456
      %v1487 = vmul.f32 %v1451, %v1456
      %v1488 = vmul.f32 %v1452, %v1456
      %v1489 = vadd.f32 %v1389, %v1457
      %v1490 = vadd.f32 %v1390, %v1458
      %v1491 = vadd.f32 %v1391, %v1459
      %v1492 = vadd.f32 %v1392, %v1460
      %v1493 = vadd.f32 %v1393, %v1461
      %v1494 = vadd.f32 %v1394, %v1462
      %v1495 = vadd.f32 %v1395, %v1463
      %v1496 = vadd.f32 %v1396, %v1464
      %v1497 = vadd.f32 %v1397, %v1465
      %v1498 = vadd.f32 %v1398, %v1466
      %v1499 = vadd.f32 %v1399, %v1467
      %v1500 = vadd.f32 %v1400, %v1468
      %v1501 = vadd.f32 %v1401, %v1469
      %v1502 = vadd.f32 %v1402, %v1470
      %v1503 = vadd.f32 %v1403, %v1471
      %v1504 = vadd.f32 %v1404, %v1472
      %v1505 = vadd.f32 %v1405, %v1473
      %v1506 = vadd.f32 %v1406, %v1474
      %v1507 = vadd.f32 %v1407, %v1475
      %v1508 = vadd.f32 %v1408, %v1476
      %v1509 = vadd.f32 %v1409, %v1477
      %v1510 = vadd.f32 %v1410, %v1478
      %v1511 = vadd.f32 %v1411, %v1479
      %v1512 = vadd.f32 %v1412, %v1480
      %v1513 = vadd.f32 %v1413, %v1481
      %v1514 = vadd.f32 %v1414, %v1482
      %v1515 = vadd.f32 %v1415, %v1483
      %v1516 = vadd.f32 %v1416, %v1484
      %v1517 = vadd.f32 %v1417, %v1485
      %v1518 = vadd.f32 %v1418, %v1486
      %v1519 = vadd.f32 %v1419, %v1487
      %v1520 = vadd.f32 %v1420, %v1488
      %v1521 = vld [vmem:[%s1185] sm:$0xff]
      %v1522 = vld [vmem:[%s1185 + $0x8] sm:$0xff]
      %v1523 = vld [vmem:[%s1185 + $0x18] sm:$0xff]
      %v1524 = vld [vmem:[%s1185 + $0x20] sm:$0xff]
      %v1525 = vld [vmem:[%s1185 + $0x30] sm:$0xff]
      %v1526 = vld [vmem:[%s1185 + $0x38] sm:$0xff]
      %v1527 = vld [vmem:[%s1185 + $0x48] sm:$0xff]
      %v1528 = vld [vmem:[%s1185 + $0x50] sm:$0xff]
      %v1529 = vld [vmem:[%s1185 + $0x60] sm:$0xff]
      %v1530 = vld [vmem:[%s1185 + $0x68] sm:$0xff]
      %v1531 = vld [vmem:[%s1185 + $0x78] sm:$0xff]
      %v1532 = vld [vmem:[%s1185 + $0x80] sm:$0xff]
      %v1533 = vld [vmem:[%s1185 + $0x90] sm:$0xff]
      %v1534 = vld [vmem:[%s1185 + $0x98] sm:$0xff]
      %v1535 = vld [vmem:[%s1185 + $0xa8] sm:$0xff]
      %v1536 = vld [vmem:[%s1185 + $0xb0] sm:$0xff]
      %v1537 = vld [vmem:[%s1185 + $0xc0] sm:$0xff]
      %v1538 = vld [vmem:[%s1185 + $0xc8] sm:$0xff]
      %v1539 = vld [vmem:[%s1185 + $0xd8] sm:$0xff]
      %v1540 = vld [vmem:[%s1185 + $0xe0] sm:$0xff]
      %v1541 = vld [vmem:[%s1185 + $0xf0] sm:$0xff]
      %v1542 = vld [vmem:[%s1185 + $0xf8] sm:$0xff]
      %v1543 = vld [vmem:[%s1185 + $0x108] sm:$0xff]
      %v1544 = vld [vmem:[%s1185 + $0x110] sm:$0xff]
      %v1545 = vld [vmem:[%s1185 + $0x120] sm:$0xff]
      %v1546 = vld [vmem:[%s1185 + $0x128] sm:$0xff]
      %v1547 = vld [vmem:[%s1185 + $0x138] sm:$0xff]
      %v1548 = vld [vmem:[%s1185 + $0x140] sm:$0xff]
      %v1549 = vld [vmem:[%s1185 + $0x150] sm:$0xff]
      %v1550 = vld [vmem:[%s1185 + $0x158] sm:$0xff]
      %v1551 = vld [vmem:[%s1185 + $0x168] sm:$0xff]
      %v1552 = vld [vmem:[%s1185 + $0x170] sm:$0xff]
      %v1553 = vlaneseq
      %v1554 = vshrl.u32 %v1553, 7
      %v1555 = vsub.s32 0, %v1554
      %v1556 = vrot.slane %v1219, %v1555
      %v1557 = vmul.f32 %v1521, %v1556
      %v1558 = vmul.f32 %v1522, %v1556
      %v1559 = vmul.f32 %v1523, %v1556
      %v1560 = vmul.f32 %v1524, %v1556
      %v1561 = vmul.f32 %v1525, %v1556
      %v1562 = vmul.f32 %v1526, %v1556
      %v1563 = vmul.f32 %v1527, %v1556
      %v1564 = vmul.f32 %v1528, %v1556
      %v1565 = vmul.f32 %v1529, %v1556
      %v1566 = vmul.f32 %v1530, %v1556
      %v1567 = vmul.f32 %v1531, %v1556
      %v1568 = vmul.f32 %v1532, %v1556
      %v1569 = vmul.f32 %v1533, %v1556
      %v1570 = vmul.f32 %v1534, %v1556
      %v1571 = vmul.f32 %v1535, %v1556
      %v1572 = vmul.f32 %v1536, %v1556
      %v1573 = vmul.f32 %v1537, %v1556
      %v1574 = vmul.f32 %v1538, %v1556
      %v1575 = vmul.f32 %v1539, %v1556
      %v1576 = vmul.f32 %v1540, %v1556
      %v1577 = vmul.f32 %v1541, %v1556
      %v1578 = vmul.f32 %v1542, %v1556
      %v1579 = vmul.f32 %v1543, %v1556
      %v1580 = vmul.f32 %v1544, %v1556
      %v1581 = vmul.f32 %v1545, %v1556
      %v1582 = vmul.f32 %v1546, %v1556
      %v1583 = vmul.f32 %v1547, %v1556
      %v1584 = vmul.f32 %v1548, %v1556
      %v1585 = vmul.f32 %v1549, %v1556
      %v1586 = vmul.f32 %v1550, %v1556
      %v1587 = vmul.f32 %v1551, %v1556
      %v1588 = vmul.f32 %v1552, %v1556
      %v1589 = vadd.f32 %v1489, %v1557
      %v1590 = vadd.f32 %v1490, %v1558
      %v1591 = vadd.f32 %v1491, %v1559
      %v1592 = vadd.f32 %v1492, %v1560
      %v1593 = vadd.f32 %v1493, %v1561
      %v1594 = vadd.f32 %v1494, %v1562
      %v1595 = vadd.f32 %v1495, %v1563
      %v1596 = vadd.f32 %v1496, %v1564
      %v1597 = vadd.f32 %v1497, %v1565
      %v1598 = vadd.f32 %v1498, %v1566
      %v1599 = vadd.f32 %v1499, %v1567
      %v1600 = vadd.f32 %v1500, %v1568
      %v1601 = vadd.f32 %v1501, %v1569
      %v1602 = vadd.f32 %v1502, %v1570
      %v1603 = vadd.f32 %v1503, %v1571
      %v1604 = vadd.f32 %v1504, %v1572
      %v1605 = vadd.f32 %v1505, %v1573
      %v1606 = vadd.f32 %v1506, %v1574
      %v1607 = vadd.f32 %v1507, %v1575
      %v1608 = vadd.f32 %v1508, %v1576
      %v1609 = vadd.f32 %v1509, %v1577
      %v1610 = vadd.f32 %v1510, %v1578
      %v1611 = vadd.f32 %v1511, %v1579
      %v1612 = vadd.f32 %v1512, %v1580
      %v1613 = vadd.f32 %v1513, %v1581
      %v1614 = vadd.f32 %v1514, %v1582
      %v1615 = vadd.f32 %v1515, %v1583
      %v1616 = vadd.f32 %v1516, %v1584
      %v1617 = vadd.f32 %v1517, %v1585
      %v1618 = vadd.f32 %v1518, %v1586
      %v1619 = vadd.f32 %v1519, %v1587
      %v1620 = vadd.f32 %v1520, %v1588
      %v1621 = vld [vmem:[%s1185 + $0x1] sm:$0xff]
      %v1622 = vld [vmem:[%s1185 + $0x9] sm:$0xff]
      %v1623 = vld [vmem:[%s1185 + $0x19] sm:$0xff]
      %v1624 = vld [vmem:[%s1185 + $0x21] sm:$0xff]
      %v1625 = vld [vmem:[%s1185 + $0x31] sm:$0xff]
      %v1626 = vld [vmem:[%s1185 + $0x39] sm:$0xff]
      %v1627 = vld [vmem:[%s1185 + $0x49] sm:$0xff]
      %v1628 = vld [vmem:[%s1185 + $0x51] sm:$0xff]
      %v1629 = vld [vmem:[%s1185 + $0x61] sm:$0xff]
      %v1630 = vld [vmem:[%s1185 + $0x69] sm:$0xff]
      %v1631 = vld [vmem:[%s1185 + $0x79] sm:$0xff]
      %v1632 = vld [vmem:[%s1185 + $0x81] sm:$0xff]
      %v1633 = vld [vmem:[%s1185 + $0x91] sm:$0xff]
      %v1634 = vld [vmem:[%s1185 + $0x99] sm:$0xff]
      %v1635 = vld [vmem:[%s1185 + $0xa9] sm:$0xff]
      %v1636 = vld [vmem:[%s1185 + $0xb1] sm:$0xff]
      %v1637 = vld [vmem:[%s1185 + $0xc1] sm:$0xff]
      %v1638 = vld [vmem:[%s1185 + $0xc9] sm:$0xff]
      %v1639 = vld [vmem:[%s1185 + $0xd9] sm:$0xff]
      %v1640 = vld [vmem:[%s1185 + $0xe1] sm:$0xff]
      %v1641 = vld [vmem:[%s1185 + $0xf1] sm:$0xff]
      %v1642 = vld [vmem:[%s1185 + $0xf9] sm:$0xff]
      %v1643 = vld [vmem:[%s1185 + $0x109] sm:$0xff]
      %v1644 = vld [vmem:[%s1185 + $0x111] sm:$0xff]
      %v1645 = vld [vmem:[%s1185 + $0x121] sm:$0xff]
      %v1646 = vld [vmem:[%s1185 + $0x129] sm:$0xff]
      %v1647 = vld [vmem:[%s1185 + $0x139] sm:$0xff]
      %v1648 = vld [vmem:[%s1185 + $0x141] sm:$0xff]
      %v1649 = vld [vmem:[%s1185 + $0x151] sm:$0xff]
      %v1650 = vld [vmem:[%s1185 + $0x159] sm:$0xff]
      %v1651 = vld [vmem:[%s1185 + $0x169] sm:$0xff]
      %v1652 = vld [vmem:[%s1185 + $0x171] sm:$0xff]
      %v1653 = vlaneseq
      %v1654 = vshrl.u32 %v1653, 7
      %v1655 = vsub.s32 1, %v1654
      %v1656 = vrot.slane %v1219, %v1655
      %v1657 = vmul.f32 %v1621, %v1656
      %v1658 = vmul.f32 %v1622, %v1656
      %v1659 = vmul.f32 %v1623, %v1656
      %v1660 = vmul.f32 %v1624, %v1656
      %v1661 = vmul.f32 %v1625, %v1656
      %v1662 = vmul.f32 %v1626, %v1656
      %v1663 = vmul.f32 %v1627, %v1656
      %v1664 = vmul.f32 %v1628, %v1656
      %v1665 = vmul.f32 %v1629, %v1656
      %v1666 = vmul.f32 %v1630, %v1656
      %v1667 = vmul.f32 %v1631, %v1656
      %v1668 = vmul.f32 %v1632, %v1656
      %v1669 = vmul.f32 %v1633, %v1656
      %v1670 = vmul.f32 %v1634, %v1656
      %v1671 = vmul.f32 %v1635, %v1656
      %v1672 = vmul.f32 %v1636, %v1656
      %v1673 = vmul.f32 %v1637, %v1656
      %v1674 = vmul.f32 %v1638, %v1656
      %v1675 = vmul.f32 %v1639, %v1656
      %v1676 = vmul.f32 %v1640, %v1656
      %v1677 = vmul.f32 %v1641, %v1656
      %v1678 = vmul.f32 %v1642, %v1656
      %v1679 = vmul.f32 %v1643, %v1656
      %v1680 = vmul.f32 %v1644, %v1656
      %v1681 = vmul.f32 %v1645, %v1656
      %v1682 = vmul.f32 %v1646, %v1656
      %v1683 = vmul.f32 %v1647, %v1656
      %v1684 = vmul.f32 %v1648, %v1656
      %v1685 = vmul.f32 %v1649, %v1656
      %v1686 = vmul.f32 %v1650, %v1656
      %v1687 = vmul.f32 %v1651, %v1656
      %v1688 = vmul.f32 %v1652, %v1656
      %v1689 = vadd.f32 %v1589, %v1657
      %v1690 = vadd.f32 %v1590, %v1658
      %v1691 = vadd.f32 %v1591, %v1659
      %v1692 = vadd.f32 %v1592, %v1660
      %v1693 = vadd.f32 %v1593, %v1661
      %v1694 = vadd.f32 %v1594, %v1662
      %v1695 = vadd.f32 %v1595, %v1663
      %v1696 = vadd.f32 %v1596, %v1664
      %v1697 = vadd.f32 %v1597, %v1665
      %v1698 = vadd.f32 %v1598, %v1666
      %v1699 = vadd.f32 %v1599, %v1667
      %v1700 = vadd.f32 %v1600, %v1668
      %v1701 = vadd.f32 %v1601, %v1669
      %v1702 = vadd.f32 %v1602, %v1670
      %v1703 = vadd.f32 %v1603, %v1671
      %v1704 = vadd.f32 %v1604, %v1672
      %v1705 = vadd.f32 %v1605, %v1673
      %v1706 = vadd.f32 %v1606, %v1674
      %v1707 = vadd.f32 %v1607, %v1675
      %v1708 = vadd.f32 %v1608, %v1676
      %v1709 = vadd.f32 %v1609, %v1677
      %v1710 = vadd.f32 %v1610, %v1678
      %v1711 = vadd.f32 %v1611, %v1679
      %v1712 = vadd.f32 %v1612, %v1680
      %v1713 = vadd.f32 %v1613, %v1681
      %v1714 = vadd.f32 %v1614, %v1682
      %v1715 = vadd.f32 %v1615, %v1683
      %v1716 = vadd.f32 %v1616, %v1684
      %v1717 = vadd.f32 %v1617, %v1685
      %v1718 = vadd.f32 %v1618, %v1686
      %v1719 = vadd.f32 %v1619, %v1687
      %v1720 = vadd.f32 %v1620, %v1688
      %v1721 = vld [vmem:[%s1185 + $0x2] sm:$0xff]
      %v1722 = vld [vmem:[%s1185 + $0xa] sm:$0xff]
      %v1723 = vld [vmem:[%s1185 + $0x1a] sm:$0xff]
      %v1724 = vld [vmem:[%s1185 + $0x22] sm:$0xff]
      %v1725 = vld [vmem:[%s1185 + $0x32] sm:$0xff]
      %v1726 = vld [vmem:[%s1185 + $0x3a] sm:$0xff]
      %v1727 = vld [vmem:[%s1185 + $0x4a] sm:$0xff]
      %v1728 = vld [vmem:[%s1185 + $0x52] sm:$0xff]
      %v1729 = vld [vmem:[%s1185 + $0x62] sm:$0xff]
      %v1730 = vld [vmem:[%s1185 + $0x6a] sm:$0xff]
      %v1731 = vld [vmem:[%s1185 + $0x7a] sm:$0xff]
      %v1732 = vld [vmem:[%s1185 + $0x82] sm:$0xff]
      %v1733 = vld [vmem:[%s1185 + $0x92] sm:$0xff]
      %v1734 = vld [vmem:[%s1185 + $0x9a] sm:$0xff]
      %v1735 = vld [vmem:[%s1185 + $0xaa] sm:$0xff]
      %v1736 = vld [vmem:[%s1185 + $0xb2] sm:$0xff]
      %v1737 = vld [vmem:[%s1185 + $0xc2] sm:$0xff]
      %v1738 = vld [vmem:[%s1185 + $0xca] sm:$0xff]
      %v1739 = vld [vmem:[%s1185 + $0xda] sm:$0xff]
      %v1740 = vld [vmem:[%s1185 + $0xe2] sm:$0xff]
      %v1741 = vld [vmem:[%s1185 + $0xf2] sm:$0xff]
      %v1742 = vld [vmem:[%s1185 + $0xfa] sm:$0xff]
      %v1743 = vld [vmem:[%s1185 + $0x10a] sm:$0xff]
      %v1744 = vld [vmem:[%s1185 + $0x112] sm:$0xff]
      %v1745 = vld [vmem:[%s1185 + $0x122] sm:$0xff]
      %v1746 = vld [vmem:[%s1185 + $0x12a] sm:$0xff]
      %v1747 = vld [vmem:[%s1185 + $0x13a] sm:$0xff]
      %v1748 = vld [vmem:[%s1185 + $0x142] sm:$0xff]
      %v1749 = vld [vmem:[%s1185 + $0x152] sm:$0xff]
      %v1750 = vld [vmem:[%s1185 + $0x15a] sm:$0xff]
      %v1751 = vld [vmem:[%s1185 + $0x16a] sm:$0xff]
      %v1752 = vld [vmem:[%s1185 + $0x172] sm:$0xff]
      %v1753 = vlaneseq
      %v1754 = vshrl.u32 %v1753, 7
      %v1755 = vsub.s32 2, %v1754
      %v1756 = vrot.slane %v1219, %v1755
      %v1757 = vmul.f32 %v1721, %v1756
      %v1758 = vmul.f32 %v1722, %v1756
      %v1759 = vmul.f32 %v1723, %v1756
      %v1760 = vmul.f32 %v1724, %v1756
      %v1761 = vmul.f32 %v1725, %v1756
      %v1762 = vmul.f32 %v1726, %v1756
      %v1763 = vmul.f32 %v1727, %v1756
      %v1764 = vmul.f32 %v1728, %v1756
      %v1765 = vmul.f32 %v1729, %v1756
      %v1766 = vmul.f32 %v1730, %v1756
      %v1767 = vmul.f32 %v1731, %v1756
      %v1768 = vmul.f32 %v1732, %v1756
      %v1769 = vmul.f32 %v1733, %v1756
      %v1770 = vmul.f32 %v1734, %v1756
      %v1771 = vmul.f32 %v1735, %v1756
      %v1772 = vmul.f32 %v1736, %v1756
      %v1773 = vmul.f32 %v1737, %v1756
      %v1774 = vmul.f32 %v1738, %v1756
      %v1775 = vmul.f32 %v1739, %v1756
      %v1776 = vmul.f32 %v1740, %v1756
      %v1777 = vmul.f32 %v1741, %v1756
      %v1778 = vmul.f32 %v1742, %v1756
      %v1779 = vmul.f32 %v1743, %v1756
      %v1780 = vmul.f32 %v1744, %v1756
      %v1781 = vmul.f32 %v1745, %v1756
      %v1782 = vmul.f32 %v1746, %v1756
      %v1783 = vmul.f32 %v1747, %v1756
      %v1784 = vmul.f32 %v1748, %v1756
      %v1785 = vmul.f32 %v1749, %v1756
      %v1786 = vmul.f32 %v1750, %v1756
      %v1787 = vmul.f32 %v1751, %v1756
      %v1788 = vmul.f32 %v1752, %v1756
      %v1789 = vadd.f32 %v1689, %v1757
      %v1790 = vadd.f32 %v1690, %v1758
      %v1791 = vadd.f32 %v1691, %v1759
      %v1792 = vadd.f32 %v1692, %v1760
      %v1793 = vadd.f32 %v1693, %v1761
      %v1794 = vadd.f32 %v1694, %v1762
      %v1795 = vadd.f32 %v1695, %v1763
      %v1796 = vadd.f32 %v1696, %v1764
      %v1797 = vadd.f32 %v1697, %v1765
      %v1798 = vadd.f32 %v1698, %v1766
      %v1799 = vadd.f32 %v1699, %v1767
      %v1800 = vadd.f32 %v1700, %v1768
      %v1801 = vadd.f32 %v1701, %v1769
      %v1802 = vadd.f32 %v1702, %v1770
      %v1803 = vadd.f32 %v1703, %v1771
      %v1804 = vadd.f32 %v1704, %v1772
      %v1805 = vadd.f32 %v1705, %v1773
      %v1806 = vadd.f32 %v1706, %v1774
      %v1807 = vadd.f32 %v1707, %v1775
      %v1808 = vadd.f32 %v1708, %v1776
      %v1809 = vadd.f32 %v1709, %v1777
      %v1810 = vadd.f32 %v1710, %v1778
      %v1811 = vadd.f32 %v1711, %v1779
      %v1812 = vadd.f32 %v1712, %v1780
      %v1813 = vadd.f32 %v1713, %v1781
      %v1814 = vadd.f32 %v1714, %v1782
      %v1815 = vadd.f32 %v1715, %v1783
      %v1816 = vadd.f32 %v1716, %v1784
      %v1817 = vadd.f32 %v1717, %v1785
      %v1818 = vadd.f32 %v1718, %v1786
      %v1819 = vadd.f32 %v1719, %v1787
      %v1820 = vadd.f32 %v1720, %v1788
      %s1821 = scalar_lea.vmem [#allocation2], 48
      %v1822 = vld [vmem:[%s1821] sm:$0xff]
      %v1823 = vld [vmem:[%s1821 + $0x8] sm:$0xff]
      %v1824 = vld [vmem:[%s1821 + $0x18] sm:$0xff]
      %v1825 = vld [vmem:[%s1821 + $0x20] sm:$0xff]
      %v1826 = vld [vmem:[%s1821 + $0x30] sm:$0xff]
      %v1827 = vld [vmem:[%s1821 + $0x38] sm:$0xff]
      %v1828 = vld [vmem:[%s1821 + $0x48] sm:$0xff]
      %v1829 = vld [vmem:[%s1821 + $0x50] sm:$0xff]
      %v1830 = vld [vmem:[%s1821 + $0x60] sm:$0xff]
      %v1831 = vld [vmem:[%s1821 + $0x68] sm:$0xff]
      %v1832 = vld [vmem:[%s1821 + $0x78] sm:$0xff]
      %v1833 = vld [vmem:[%s1821 + $0x80] sm:$0xff]
      %v1834 = vld [vmem:[%s1821 + $0x90] sm:$0xff]
      %v1835 = vld [vmem:[%s1821 + $0x98] sm:$0xff]
      %v1836 = vld [vmem:[%s1821 + $0xa8] sm:$0xff]
      %v1837 = vld [vmem:[%s1821 + $0xb0] sm:$0xff]
      %v1838 = vld [vmem:[%s1821 + $0xc0] sm:$0xff]
      %v1839 = vld [vmem:[%s1821 + $0xc8] sm:$0xff]
      %v1840 = vld [vmem:[%s1821 + $0xd8] sm:$0xff]
      %v1841 = vld [vmem:[%s1821 + $0xe0] sm:$0xff]
      %v1842 = vld [vmem:[%s1821 + $0xf0] sm:$0xff]
      %v1843 = vld [vmem:[%s1821 + $0xf8] sm:$0xff]
      %v1844 = vld [vmem:[%s1821 + $0x108] sm:$0xff]
      %v1845 = vld [vmem:[%s1821 + $0x110] sm:$0xff]
      %v1846 = vld [vmem:[%s1821 + $0x120] sm:$0xff]
      %v1847 = vld [vmem:[%s1821 + $0x128] sm:$0xff]
      %v1848 = vld [vmem:[%s1821 + $0x138] sm:$0xff]
      %v1849 = vld [vmem:[%s1821 + $0x140] sm:$0xff]
      %v1850 = vld [vmem:[%s1821 + $0x150] sm:$0xff]
      %v1851 = vld [vmem:[%s1821 + $0x158] sm:$0xff]
      %v1852 = vld [vmem:[%s1821 + $0x168] sm:$0xff]
      %v1853 = vld [vmem:[%s1821 + $0x170] sm:$0xff]
      %v1854 = vlaneseq
      %v1855 = vshrl.u32 %v1854, 7
      %v1856 = vsub.s32 0, %v1855
      %v1857 = vrot.slane %v1220, %v1856
      %v1858 = vmul.f32 %v1822, %v1857
      %v1859 = vmul.f32 %v1823, %v1857
      %v1860 = vmul.f32 %v1824, %v1857
      %v1861 = vmul.f32 %v1825, %v1857
      %v1862 = vmul.f32 %v1826, %v1857
      %v1863 = vmul.f32 %v1827, %v1857
      %v1864 = vmul.f32 %v1828, %v1857
      %v1865 = vmul.f32 %v1829, %v1857
      %v1866 = vmul.f32 %v1830, %v1857
      %v1867 = vmul.f32 %v1831, %v1857
      %v1868 = vmul.f32 %v1832, %v1857
      %v1869 = vmul.f32 %v1833, %v1857
      %v1870 = vmul.f32 %v1834, %v1857
      %v1871 = vmul.f32 %v1835, %v1857
      %v1872 = vmul.f32 %v1836, %v1857
      %v1873 = vmul.f32 %v1837, %v1857
      %v1874 = vmul.f32 %v1838, %v1857
      %v1875 = vmul.f32 %v1839, %v1857
      %v1876 = vmul.f32 %v1840, %v1857
      %v1877 = vmul.f32 %v1841, %v1857
      %v1878 = vmul.f32 %v1842, %v1857
      %v1879 = vmul.f32 %v1843, %v1857
      %v1880 = vmul.f32 %v1844, %v1857
      %v1881 = vmul.f32 %v1845, %v1857
      %v1882 = vmul.f32 %v1846, %v1857
      %v1883 = vmul.f32 %v1847, %v1857
      %v1884 = vmul.f32 %v1848, %v1857
      %v1885 = vmul.f32 %v1849, %v1857
      %v1886 = vmul.f32 %v1850, %v1857
      %v1887 = vmul.f32 %v1851, %v1857
      %v1888 = vmul.f32 %v1852, %v1857
      %v1889 = vmul.f32 %v1853, %v1857
      %v1890 = vadd.f32 %v1789, %v1858
      %v1891 = vadd.f32 %v1790, %v1859
      %v1892 = vadd.f32 %v1791, %v1860
      %v1893 = vadd.f32 %v1792, %v1861
      %v1894 = vadd.f32 %v1793, %v1862
      %v1895 = vadd.f32 %v1794, %v1863
      %v1896 = vadd.f32 %v1795, %v1864
      %v1897 = vadd.f32 %v1796, %v1865
      %v1898 = vadd.f32 %v1797, %v1866
      %v1899 = vadd.f32 %v1798, %v1867
      %v1900 = vadd.f32 %v1799, %v1868
      %v1901 = vadd.f32 %v1800, %v1869
      %v1902 = vadd.f32 %v1801, %v1870
      %v1903 = vadd.f32 %v1802, %v1871
      %v1904 = vadd.f32 %v1803, %v1872
      %v1905 = vadd.f32 %v1804, %v1873
      %v1906 = vadd.f32 %v1805, %v1874
      %v1907 = vadd.f32 %v1806, %v1875
      %v1908 = vadd.f32 %v1807, %v1876
      %v1909 = vadd.f32 %v1808, %v1877
      %v1910 = vadd.f32 %v1809, %v1878
      %v1911 = vadd.f32 %v1810, %v1879
      %v1912 = vadd.f32 %v1811, %v1880
      %v1913 = vadd.f32 %v1812, %v1881
      %v1914 = vadd.f32 %v1813, %v1882
      %v1915 = vadd.f32 %v1814, %v1883
      %v1916 = vadd.f32 %v1815, %v1884
      %v1917 = vadd.f32 %v1816, %v1885
      %v1918 = vadd.f32 %v1817, %v1886
      %v1919 = vadd.f32 %v1818, %v1887
      %v1920 = vadd.f32 %v1819, %v1888
      %v1921 = vadd.f32 %v1820, %v1889
      %v1922 = vld [vmem:[%s1821 + $0x1] sm:$0xff]
      %v1923 = vld [vmem:[%s1821 + $0x9] sm:$0xff]
      %v1924 = vld [vmem:[%s1821 + $0x19] sm:$0xff]
      %v1925 = vld [vmem:[%s1821 + $0x21] sm:$0xff]
      %v1926 = vld [vmem:[%s1821 + $0x31] sm:$0xff]
      %v1927 = vld [vmem:[%s1821 + $0x39] sm:$0xff]
      %v1928 = vld [vmem:[%s1821 + $0x49] sm:$0xff]
      %v1929 = vld [vmem:[%s1821 + $0x51] sm:$0xff]
      %v1930 = vld [vmem:[%s1821 + $0x61] sm:$0xff]
      %v1931 = vld [vmem:[%s1821 + $0x69] sm:$0xff]
      %v1932 = vld [vmem:[%s1821 + $0x79] sm:$0xff]
      %v1933 = vld [vmem:[%s1821 + $0x81] sm:$0xff]
      %v1934 = vld [vmem:[%s1821 + $0x91] sm:$0xff]
      %v1935 = vld [vmem:[%s1821 + $0x99] sm:$0xff]
      %v1936 = vld [vmem:[%s1821 + $0xa9] sm:$0xff]
      %v1937 = vld [vmem:[%s1821 + $0xb1] sm:$0xff]
      %v1938 = vld [vmem:[%s1821 + $0xc1] sm:$0xff]
      %v1939 = vld [vmem:[%s1821 + $0xc9] sm:$0xff]
      %v1940 = vld [vmem:[%s1821 + $0xd9] sm:$0xff]
      %v1941 = vld [vmem:[%s1821 + $0xe1] sm:$0xff]
      %v1942 = vld [vmem:[%s1821 + $0xf1] sm:$0xff]
      %v1943 = vld [vmem:[%s1821 + $0xf9] sm:$0xff]
      %v1944 = vld [vmem:[%s1821 + $0x109] sm:$0xff]
      %v1945 = vld [vmem:[%s1821 + $0x111] sm:$0xff]
      %v1946 = vld [vmem:[%s1821 + $0x121] sm:$0xff]
      %v1947 = vld [vmem:[%s1821 + $0x129] sm:$0xff]
      %v1948 = vld [vmem:[%s1821 + $0x139] sm:$0xff]
      %v1949 = vld [vmem:[%s1821 + $0x141] sm:$0xff]
      %v1950 = vld [vmem:[%s1821 + $0x151] sm:$0xff]
      %v1951 = vld [vmem:[%s1821 + $0x159] sm:$0xff]
      %v1952 = vld [vmem:[%s1821 + $0x169] sm:$0xff]
      %v1953 = vld [vmem:[%s1821 + $0x171] sm:$0xff]
      %v1954 = vlaneseq
      %v1955 = vshrl.u32 %v1954, 7
      %v1956 = vsub.s32 1, %v1955
      %v1957 = vrot.slane %v1220, %v1956
      %v1958 = vmul.f32 %v1922, %v1957
      %v1959 = vmul.f32 %v1923, %v1957
      %v1960 = vmul.f32 %v1924, %v1957
      %v1961 = vmul.f32 %v1925, %v1957
      %v1962 = vmul.f32 %v1926, %v1957
      %v1963 = vmul.f32 %v1927, %v1957
      %v1964 = vmul.f32 %v1928, %v1957
      %v1965 = vmul.f32 %v1929, %v1957
      %v1966 = vmul.f32 %v1930, %v1957
      %v1967 = vmul.f32 %v1931, %v1957
      %v1968 = vmul.f32 %v1932, %v1957
      %v1969 = vmul.f32 %v1933, %v1957
      %v1970 = vmul.f32 %v1934, %v1957
      %v1971 = vmul.f32 %v1935, %v1957
      %v1972 = vmul.f32 %v1936, %v1957
      %v1973 = vmul.f32 %v1937, %v1957
      %v1974 = vmul.f32 %v1938, %v1957
      %v1975 = vmul.f32 %v1939, %v1957
      %v1976 = vmul.f32 %v1940, %v1957
      %v1977 = vmul.f32 %v1941, %v1957
      %v1978 = vmul.f32 %v1942, %v1957
      %v1979 = vmul.f32 %v1943, %v1957
      %v1980 = vmul.f32 %v1944, %v1957
      %v1981 = vmul.f32 %v1945, %v1957
      %v1982 = vmul.f32 %v1946, %v1957
      %v1983 = vmul.f32 %v1947, %v1957
      %v1984 = vmul.f32 %v1948, %v1957
      %v1985 = vmul.f32 %v1949, %v1957
      %v1986 = vmul.f32 %v1950, %v1957
      %v1987 = vmul.f32 %v1951, %v1957
      %v1988 = vmul.f32 %v1952, %v1957
      %v1989 = vmul.f32 %v1953, %v1957
      %v1990 = vadd.f32 %v1890, %v1958
      %v1991 = vadd.f32 %v1891, %v1959
      %v1992 = vadd.f32 %v1892, %v1960
      %v1993 = vadd.f32 %v1893, %v1961
      %v1994 = vadd.f32 %v1894, %v1962
      %v1995 = vadd.f32 %v1895, %v1963
      %v1996 = vadd.f32 %v1896, %v1964
      %v1997 = vadd.f32 %v1897, %v1965
      %v1998 = vadd.f32 %v1898, %v1966
      %v1999 = vadd.f32 %v1899, %v1967
      %v2000 = vadd.f32 %v1900, %v1968
      %v2001 = vadd.f32 %v1901, %v1969
      %v2002 = vadd.f32 %v1902, %v1970
      %v2003 = vadd.f32 %v1903, %v1971
      %v2004 = vadd.f32 %v1904, %v1972
      %v2005 = vadd.f32 %v1905, %v1973
      %v2006 = vadd.f32 %v1906, %v1974
      %v2007 = vadd.f32 %v1907, %v1975
      %v2008 = vadd.f32 %v1908, %v1976
      %v2009 = vadd.f32 %v1909, %v1977
      %v2010 = vadd.f32 %v1910, %v1978
      %v2011 = vadd.f32 %v1911, %v1979
      %v2012 = vadd.f32 %v1912, %v1980
      %v2013 = vadd.f32 %v1913, %v1981
      %v2014 = vadd.f32 %v1914, %v1982
      %v2015 = vadd.f32 %v1915, %v1983
      %v2016 = vadd.f32 %v1916, %v1984
      %v2017 = vadd.f32 %v1917, %v1985
      %v2018 = vadd.f32 %v1918, %v1986
      %v2019 = vadd.f32 %v1919, %v1987
      %v2020 = vadd.f32 %v1920, %v1988
      %v2021 = vadd.f32 %v1921, %v1989
      %v2022 = vld [vmem:[%s1821 + $0x2] sm:$0xff]
      %v2023 = vld [vmem:[%s1821 + $0xa] sm:$0xff]
      %v2024 = vld [vmem:[%s1821 + $0x1a] sm:$0xff]
      %v2025 = vld [vmem:[%s1821 + $0x22] sm:$0xff]
      %v2026 = vld [vmem:[%s1821 + $0x32] sm:$0xff]
      %v2027 = vld [vmem:[%s1821 + $0x3a] sm:$0xff]
      %v2028 = vld [vmem:[%s1821 + $0x4a] sm:$0xff]
      %v2029 = vld [vmem:[%s1821 + $0x52] sm:$0xff]
      %v2030 = vld [vmem:[%s1821 + $0x62] sm:$0xff]
      %v2031 = vld [vmem:[%s1821 + $0x6a] sm:$0xff]
      %v2032 = vld [vmem:[%s1821 + $0x7a] sm:$0xff]
      %v2033 = vld [vmem:[%s1821 + $0x82] sm:$0xff]
      %v2034 = vld [vmem:[%s1821 + $0x92] sm:$0xff]
      %v2035 = vld [vmem:[%s1821 + $0x9a] sm:$0xff]
      %v2036 = vld [vmem:[%s1821 + $0xaa] sm:$0xff]
      %v2037 = vld [vmem:[%s1821 + $0xb2] sm:$0xff]
      %v2038 = vld [vmem:[%s1821 + $0xc2] sm:$0xff]
      %v2039 = vld [vmem:[%s1821 + $0xca] sm:$0xff]
      %v2040 = vld [vmem:[%s1821 + $0xda] sm:$0xff]
      %v2041 = vld [vmem:[%s1821 + $0xe2] sm:$0xff]
      %v2042 = vld [vmem:[%s1821 + $0xf2] sm:$0xff]
      %v2043 = vld [vmem:[%s1821 + $0xfa] sm:$0xff]
      %v2044 = vld [vmem:[%s1821 + $0x10a] sm:$0xff]
      %v2045 = vld [vmem:[%s1821 + $0x112] sm:$0xff]
      %v2046 = vld [vmem:[%s1821 + $0x122] sm:$0xff]
      %v2047 = vld [vmem:[%s1821 + $0x12a] sm:$0xff]
      %v2048 = vld [vmem:[%s1821 + $0x13a] sm:$0xff]
      %v2049 = vld [vmem:[%s1821 + $0x142] sm:$0xff]
      %v2050 = vld [vmem:[%s1821 + $0x152] sm:$0xff]
      %v2051 = vld [vmem:[%s1821 + $0x15a] sm:$0xff]
      %v2052 = vld [vmem:[%s1821 + $0x16a] sm:$0xff]
      %v2053 = vld [vmem:[%s1821 + $0x172] sm:$0xff]
      %v2054 = vlaneseq
      %v2055 = vshrl.u32 %v2054, 7
      %v2056 = vsub.s32 2, %v2055
      %v2057 = vrot.slane %v1220, %v2056
      %v2058 = vmul.f32 %v2022, %v2057
      %v2059 = vmul.f32 %v2023, %v2057
      %v2060 = vmul.f32 %v2024, %v2057
      %v2061 = vmul.f32 %v2025, %v2057
      %v2062 = vmul.f32 %v2026, %v2057
      %v2063 = vmul.f32 %v2027, %v2057
      %v2064 = vmul.f32 %v2028, %v2057
      %v2065 = vmul.f32 %v2029, %v2057
      %v2066 = vmul.f32 %v2030, %v2057
      %v2067 = vmul.f32 %v2031, %v2057
      %v2068 = vmul.f32 %v2032, %v2057
      %v2069 = vmul.f32 %v2033, %v2057
      %v2070 = vmul.f32 %v2034, %v2057
      %v2071 = vmul.f32 %v2035, %v2057
      %v2072 = vmul.f32 %v2036, %v2057
      %v2073 = vmul.f32 %v2037, %v2057
      %v2074 = vmul.f32 %v2038, %v2057
      %v2075 = vmul.f32 %v2039, %v2057
      %v2076 = vmul.f32 %v2040, %v2057
      %v2077 = vmul.f32 %v2041, %v2057
      %v2078 = vmul.f32 %v2042, %v2057
      %v2079 = vmul.f32 %v2043, %v2057
      %v2080 = vmul.f32 %v2044, %v2057
      %v2081 = vmul.f32 %v2045, %v2057
      %v2082 = vmul.f32 %v2046, %v2057
      %v2083 = vmul.f32 %v2047, %v2057
      %v2084 = vmul.f32 %v2048, %v2057
      %v2085 = vmul.f32 %v2049, %v2057
      %v2086 = vmul.f32 %v2050, %v2057
      %v2087 = vmul.f32 %v2051, %v2057
      %v2088 = vmul.f32 %v2052, %v2057
      %v2089 = vmul.f32 %v2053, %v2057
      %v2090 = vadd.f32 %v1990, %v2058
      %v2091 = vadd.f32 %v1991, %v2059
      %v2092 = vadd.f32 %v1992, %v2060
      %v2093 = vadd.f32 %v1993, %v2061
      %v2094 = vadd.f32 %v1994, %v2062
      %v2095 = vadd.f32 %v1995, %v2063
      %v2096 = vadd.f32 %v1996, %v2064
      %v2097 = vadd.f32 %v1997, %v2065
      %v2098 = vadd.f32 %v1998, %v2066
      %v2099 = vadd.f32 %v1999, %v2067
      %v2100 = vadd.f32 %v2000, %v2068
      %v2101 = vadd.f32 %v2001, %v2069
      %v2102 = vadd.f32 %v2002, %v2070
      %v2103 = vadd.f32 %v2003, %v2071
      %v2104 = vadd.f32 %v2004, %v2072
      %v2105 = vadd.f32 %v2005, %v2073
      %v2106 = vadd.f32 %v2006, %v2074
      %v2107 = vadd.f32 %v2007, %v2075
      %v2108 = vadd.f32 %v2008, %v2076
      %v2109 = vadd.f32 %v2009, %v2077
      %v2110 = vadd.f32 %v2010, %v2078
      %v2111 = vadd.f32 %v2011, %v2079
      %v2112 = vadd.f32 %v2012, %v2080
      %v2113 = vadd.f32 %v2013, %v2081
      %v2114 = vadd.f32 %v2014, %v2082
      %v2115 = vadd.f32 %v2015, %v2083
      %v2116 = vadd.f32 %v2016, %v2084
      %v2117 = vadd.f32 %v2017, %v2085
      %v2118 = vadd.f32 %v2018, %v2086
      %v2119 = vadd.f32 %v2019, %v2087
      %v2120 = vadd.f32 %v2020, %v2088
      %v2121 = vadd.f32 %v2021, %v2089
      %v2122 = vld [vmem:[%s5] sm:$0x1]
      %v2124 = vlaneseq
      %v2125 = vshrl.u32 %v2124, 7
      %v2126 = vsub.s32 0, %v2125
      %v2127 = vrot.slane %v2122, %v2126
      %v2129 = vmul.f32 %v2090, %v2127
      %v2130 = vmul.f32 %v2091, %v2127
      %v2131 = vmul.f32 %v2092, %v2127
      %v2132 = vmul.f32 %v2093, %v2127
      %v2133 = vmul.f32 %v2094, %v2127
      %v2134 = vmul.f32 %v2095, %v2127
      %v2135 = vmul.f32 %v2096, %v2127
      %v2136 = vmul.f32 %v2097, %v2127
      %v2137 = vmul.f32 %v2098, %v2127
      %v2138 = vmul.f32 %v2099, %v2127
      %v2139 = vmul.f32 %v2100, %v2127
      %v2140 = vmul.f32 %v2101, %v2127
      %v2141 = vmul.f32 %v2102, %v2127
      %v2142 = vmul.f32 %v2103, %v2127
      %v2143 = vmul.f32 %v2104, %v2127
      %v2144 = vmul.f32 %v2105, %v2127
      %v2145 = vmul.f32 %v2106, %v2127
      %v2146 = vmul.f32 %v2107, %v2127
      %v2147 = vmul.f32 %v2108, %v2127
      %v2148 = vmul.f32 %v2109, %v2127
      %v2149 = vmul.f32 %v2110, %v2127
      %v2150 = vmul.f32 %v2111, %v2127
      %v2151 = vmul.f32 %v2112, %v2127
      %v2152 = vmul.f32 %v2113, %v2127
      %v2153 = vmul.f32 %v2114, %v2127
      %v2154 = vmul.f32 %v2115, %v2127
      %v2155 = vmul.f32 %v2116, %v2127
      %v2156 = vmul.f32 %v2117, %v2127
      %v2157 = vmul.f32 %v2118, %v2127
      %v2158 = vmul.f32 %v2119, %v2127
      %v2159 = vmul.f32 %v2120, %v2127
      %v2160 = vmul.f32 %v2121, %v2127
      %v2161 = vld [vmem:[%s6] sm:$0x1]
      %v2163 = vlaneseq
      %v2164 = vshrl.u32 %v2163, 7
      %v2165 = vsub.s32 0, %v2164
      %v2166 = vrot.slane %v2161, %v2165
      %v2168 = vadd.f32 %v2129, %v2166
      %v2169 = vadd.f32 %v2130, %v2166
      %v2170 = vadd.f32 %v2131, %v2166
      %v2171 = vadd.f32 %v2132, %v2166
      %v2172 = vadd.f32 %v2133, %v2166
      %v2173 = vadd.f32 %v2134, %v2166
      %v2174 = vadd.f32 %v2135, %v2166
      %v2175 = vadd.f32 %v2136, %v2166
      %v2176 = vadd.f32 %v2137, %v2166
      %v2177 = vadd.f32 %v2138, %v2166
      %v2178 = vadd.f32 %v2139, %v2166
      %v2179 = vadd.f32 %v2140, %v2166
      %v2180 = vadd.f32 %v2141, %v2166
      %v2181 = vadd.f32 %v2142, %v2166
      %v2182 = vadd.f32 %v2143, %v2166
      %v2183 = vadd.f32 %v2144, %v2166
      %v2184 = vadd.f32 %v2145, %v2166
      %v2185 = vadd.f32 %v2146, %v2166
      %v2186 = vadd.f32 %v2147, %v2166
      %v2187 = vadd.f32 %v2148, %v2166
      %v2188 = vadd.f32 %v2149, %v2166
      %v2189 = vadd.f32 %v2150, %v2166
      %v2190 = vadd.f32 %v2151, %v2166
      %v2191 = vadd.f32 %v2152, %v2166
      %v2192 = vadd.f32 %v2153, %v2166
      %v2193 = vadd.f32 %v2154, %v2166
      %v2194 = vadd.f32 %v2155, %v2166
      %v2195 = vadd.f32 %v2156, %v2166
      %v2196 = vadd.f32 %v2157, %v2166
      %v2197 = vadd.f32 %v2158, %v2166
      %v2198 = vadd.f32 %v2159, %v2166
      %v2199 = vadd.f32 %v2160, %v2166
      %v2200 = vxor.u32 %v2168, 2147483648
      %v2201 = vxor.u32 %v2169, 2147483648
      %v2202 = vxor.u32 %v2170, 2147483648
      %v2203 = vxor.u32 %v2171, 2147483648
      %v2204 = vxor.u32 %v2172, 2147483648
      %v2205 = vxor.u32 %v2173, 2147483648
      %v2206 = vxor.u32 %v2174, 2147483648
      %v2207 = vxor.u32 %v2175, 2147483648
      %v2208 = vxor.u32 %v2176, 2147483648
      %v2209 = vxor.u32 %v2177, 2147483648
      %v2210 = vxor.u32 %v2178, 2147483648
      %v2211 = vxor.u32 %v2179, 2147483648
      %v2212 = vxor.u32 %v2180, 2147483648
      %v2213 = vxor.u32 %v2181, 2147483648
      %v2214 = vxor.u32 %v2182, 2147483648
      %v2215 = vxor.u32 %v2183, 2147483648
      %v2216 = vxor.u32 %v2184, 2147483648
      %v2217 = vxor.u32 %v2185, 2147483648
      %v2218 = vxor.u32 %v2186, 2147483648
      %v2219 = vxor.u32 %v2187, 2147483648
      %v2220 = vxor.u32 %v2188, 2147483648
      %v2221 = vxor.u32 %v2189, 2147483648
      %v2222 = vxor.u32 %v2190, 2147483648
      %v2223 = vxor.u32 %v2191, 2147483648
      %v2224 = vxor.u32 %v2192, 2147483648
      %v2225 = vxor.u32 %v2193, 2147483648
      %v2226 = vxor.u32 %v2194, 2147483648
      %v2227 = vxor.u32 %v2195, 2147483648
      %v2228 = vxor.u32 %v2196, 2147483648
      %v2229 = vxor.u32 %v2197, 2147483648
      %v2230 = vxor.u32 %v2198, 2147483648
      %v2231 = vxor.u32 %v2199, 2147483648
      %v2232 = vmul.f32 %v2200, 1.442695
      %v2233 = vpow.pop %v2232
      %v2234 = vmul.f32 %v2201, 1.442695
      %v2235 = vpow.pop %v2234
      %v2236 = vmul.f32 %v2202, 1.442695
      %v2237 = vpow.pop %v2236
      %v2238 = vmul.f32 %v2203, 1.442695
      %v2239 = vpow.pop %v2238
      %v2240 = vmul.f32 %v2204, 1.442695
      %v2241 = vpow.pop %v2240
      %v2242 = vmul.f32 %v2205, 1.442695
      %v2243 = vpow.pop %v2242
      %v2244 = vmul.f32 %v2206, 1.442695
      %v2245 = vpow.pop %v2244
      %v2246 = vmul.f32 %v2207, 1.442695
      %v2247 = vpow.pop %v2246
      %v2248 = vmul.f32 %v2208, 1.442695
      %v2249 = vpow.pop %v2248
      %v2250 = vmul.f32 %v2209, 1.442695
      %v2251 = vpow.pop %v2250
      %v2252 = vmul.f32 %v2210, 1.442695
      %v2253 = vpow.pop %v2252
      %v2254 = vmul.f32 %v2211, 1.442695
      %v2255 = vpow.pop %v2254
      %v2256 = vmul.f32 %v2212, 1.442695
      %v2257 = vpow.pop %v2256
      %v2258 = vmul.f32 %v2213, 1.442695
      %v2259 = vpow.pop %v2258
      %v2260 = vmul.f32 %v2214, 1.442695
      %v2261 = vpow.pop %v2260
      %v2262 = vmul.f32 %v2215, 1.442695
      %v2263 = vpow.pop %v2262
      %v2264 = vmul.f32 %v2216, 1.442695
      %v2265 = vpow.pop %v2264
      %v2266 = vmul.f32 %v2217, 1.442695
      %v2267 = vpow.pop %v2266
      %v2268 = vmul.f32 %v2218, 1.442695
      %v2269 = vpow.pop %v2268
      %v2270 = vmul.f32 %v2219, 1.442695
      %v2271 = vpow.pop %v2270
      %v2272 = vmul.f32 %v2220, 1.442695
      %v2273 = vpow.pop %v2272
      %v2274 = vmul.f32 %v2221, 1.442695
      %v2275 = vpow.pop %v2274
      %v2276 = vmul.f32 %v2222, 1.442695
      %v2277 = vpow.pop %v2276
      %v2278 = vmul.f32 %v2223, 1.442695
      %v2279 = vpow.pop %v2278
      %v2280 = vmul.f32 %v2224, 1.442695
      %v2281 = vpow.pop %v2280
      %v2282 = vmul.f32 %v2225, 1.442695
      %v2283 = vpow.pop %v2282
      %v2284 = vmul.f32 %v2226, 1.442695
      %v2285 = vpow.pop %v2284
      %v2286 = vmul.f32 %v2227, 1.442695
      %v2287 = vpow.pop %v2286
      %v2288 = vmul.f32 %v2228, 1.442695
      %v2289 = vpow.pop %v2288
      %v2290 = vmul.f32 %v2229, 1.442695
      %v2291 = vpow.pop %v2290
      %v2292 = vmul.f32 %v2230, 1.442695
      %v2293 = vpow.pop %v2292
      %v2294 = vmul.f32 %v2231, 1.442695
      %v2295 = vpow.pop %v2294
      %v2296 = vadd.f32 %v2233, 1.0
      %v2297 = vadd.f32 %v2235, 1.0
      %v2298 = vadd.f32 %v2237, 1.0
      %v2299 = vadd.f32 %v2239, 1.0
      %v2300 = vadd.f32 %v2241, 1.0
      %v2301 = vadd.f32 %v2243, 1.0
      %v2302 = vadd.f32 %v2245, 1.0
      %v2303 = vadd.f32 %v2247, 1.0
      %v2304 = vadd.f32 %v2249, 1.0
      %v2305 = vadd.f32 %v2251, 1.0
      %v2306 = vadd.f32 %v2253, 1.0
      %v2307 = vadd.f32 %v2255, 1.0
      %v2308 = vadd.f32 %v2257, 1.0
      %v2309 = vadd.f32 %v2259, 1.0
      %v2310 = vadd.f32 %v2261, 1.0
      %v2311 = vadd.f32 %v2263, 1.0
      %v2312 = vadd.f32 %v2265, 1.0
      %v2313 = vadd.f32 %v2267, 1.0
      %v2314 = vadd.f32 %v2269, 1.0
      %v2315 = vadd.f32 %v2271, 1.0
      %v2316 = vadd.f32 %v2273, 1.0
      %v2317 = vadd.f32 %v2275, 1.0
      %v2318 = vadd.f32 %v2277, 1.0
      %v2319 = vadd.f32 %v2279, 1.0
      %v2320 = vadd.f32 %v2281, 1.0
      %v2321 = vadd.f32 %v2283, 1.0
      %v2322 = vadd.f32 %v2285, 1.0
      %v2323 = vadd.f32 %v2287, 1.0
      %v2324 = vadd.f32 %v2289, 1.0
      %v2325 = vadd.f32 %v2291, 1.0
      %v2326 = vadd.f32 %v2293, 1.0
      %v2327 = vadd.f32 %v2295, 1.0
      %v2328 = vrcp.pop %v2296
      %v2329 = vmul.f32 1.0, %v2328
      %v2330 = vrcp.pop %v2297
      %v2331 = vmul.f32 1.0, %v2330
      %v2332 = vrcp.pop %v2298
      %v2333 = vmul.f32 1.0, %v2332
      %v2334 = vrcp.pop %v2299
      %v2335 = vmul.f32 1.0, %v2334
      %v2336 = vrcp.pop %v2300
      %v2337 = vmul.f32 1.0, %v2336
      %v2338 = vrcp.pop %v2301
      %v2339 = vmul.f32 1.0, %v2338
      %v2340 = vrcp.pop %v2302
      %v2341 = vmul.f32 1.0, %v2340
      %v2342 = vrcp.pop %v2303
      %v2343 = vmul.f32 1.0, %v2342
      %v2344 = vrcp.pop %v2304
      %v2345 = vmul.f32 1.0, %v2344
      %v2346 = vrcp.pop %v2305
      %v2347 = vmul.f32 1.0, %v2346
      %v2348 = vrcp.pop %v2306
      %v2349 = vmul.f32 1.0, %v2348
      %v2350 = vrcp.pop %v2307
      %v2351 = vmul.f32 1.0, %v2350
      %v2352 = vrcp.pop %v2308
      %v2353 = vmul.f32 1.0, %v2352
      %v2354 = vrcp.pop %v2309
      %v2355 = vmul.f32 1.0, %v2354
      %v2356 = vrcp.pop %v2310
      %v2357 = vmul.f32 1.0, %v2356
      %v2358 = vrcp.pop %v2311
      %v2359 = vmul.f32 1.0, %v2358
      %v2360 = vrcp.pop %v2312
      %v2361 = vmul.f32 1.0, %v2360
      %v2362 = vrcp.pop %v2313
      %v2363 = vmul.f32 1.0, %v2362
      %v2364 = vrcp.pop %v2314
      %v2365 = vmul.f32 1.0, %v2364
      %v2366 = vrcp.pop %v2315
      %v2367 = vmul.f32 1.0, %v2366
      %v2368 = vrcp.pop %v2316
      %v2369 = vmul.f32 1.0, %v2368
      %v2370 = vrcp.pop %v2317
      %v2371 = vmul.f32 1.0, %v2370
      %v2372 = vrcp.pop %v2318
      %v2373 = vmul.f32 1.0, %v2372
      %v2374 = vrcp.pop %v2319
      %v2375 = vmul.f32 1.0, %v2374
      %v2376 = vrcp.pop %v2320
      %v2377 = vmul.f32 1.0, %v2376
      %v2378 = vrcp.pop %v2321
      %v2379 = vmul.f32 1.0, %v2378
      %v2380 = vrcp.pop %v2322
      %v2381 = vmul.f32 1.0, %v2380
      %v2382 = vrcp.pop %v2323
      %v2383 = vmul.f32 1.0, %v2382
      %v2384 = vrcp.pop %v2324
      %v2385 = vmul.f32 1.0, %v2384
      %v2386 = vrcp.pop %v2325
      %v2387 = vmul.f32 1.0, %v2386
      %v2388 = vrcp.pop %v2326
      %v2389 = vmul.f32 1.0, %v2388
      %v2390 = vrcp.pop %v2327
      %v2391 = vmul.f32 1.0, %v2390
      %v2392 = vmul.f32 %v2168, %v2329
      %v2393 = vmul.f32 %v2169, %v2331
      %v2394 = vmul.f32 %v2170, %v2333
      %v2395 = vmul.f32 %v2171, %v2335
      %v2396 = vmul.f32 %v2172, %v2337
      %v2397 = vmul.f32 %v2173, %v2339
      %v2398 = vmul.f32 %v2174, %v2341
      %v2399 = vmul.f32 %v2175, %v2343
      %v2400 = vmul.f32 %v2176, %v2345
      %v2401 = vmul.f32 %v2177, %v2347
      %v2402 = vmul.f32 %v2178, %v2349
      %v2403 = vmul.f32 %v2179, %v2351
      %v2404 = vmul.f32 %v2180, %v2353
      %v2405 = vmul.f32 %v2181, %v2355
      %v2406 = vmul.f32 %v2182, %v2357
      %v2407 = vmul.f32 %v2183, %v2359
      %v2408 = vmul.f32 %v2184, %v2361
      %v2409 = vmul.f32 %v2185, %v2363
      %v2410 = vmul.f32 %v2186, %v2365
      %v2411 = vmul.f32 %v2187, %v2367
      %v2412 = vmul.f32 %v2188, %v2369
      %v2413 = vmul.f32 %v2189, %v2371
      %v2414 = vmul.f32 %v2190, %v2373
      %v2415 = vmul.f32 %v2191, %v2375
      %v2416 = vmul.f32 %v2192, %v2377
      %v2417 = vmul.f32 %v2193, %v2379
      %v2418 = vmul.f32 %v2194, %v2381
      %v2419 = vmul.f32 %v2195, %v2383
      %v2420 = vmul.f32 %v2196, %v2385
      %v2421 = vmul.f32 %v2197, %v2387
      %v2422 = vmul.f32 %v2198, %v2389
      %v2423 = vmul.f32 %v2199, %v2391
      %v2424 = vsel %vm1129, %v2392, 0.0
      %v2425 = vsel %vm1129, %v2393, 0.0
      %v2426 = vadd.f32 %v2424, %v2425
      %v2427 = vsel %vm1129, %v2394, 0.0
      %v2428 = vadd.f32 %v2426, %v2427
      %v2429 = vsel %vm1129, %v2395, 0.0
      %v2430 = vadd.f32 %v2428, %v2429
      %v2431 = vsel %vm1129, %v2396, 0.0
      %v2432 = vadd.f32 %v2430, %v2431
      %v2433 = vsel %vm1129, %v2397, 0.0
      %v2434 = vadd.f32 %v2432, %v2433
      %v2435 = vsel %vm1129, %v2398, 0.0
      %v2436 = vadd.f32 %v2434, %v2435
      %v2437 = vsel %vm1129, %v2399, 0.0
      %v2438 = vadd.f32 %v2436, %v2437
      %v2439 = vsel %vm1129, %v2400, 0.0
      %v2440 = vadd.f32 %v2438, %v2439
      %v2441 = vsel %vm1129, %v2401, 0.0
      %v2442 = vadd.f32 %v2440, %v2441
      %v2443 = vsel %vm1129, %v2402, 0.0
      %v2444 = vadd.f32 %v2442, %v2443
      %v2445 = vsel %vm1129, %v2403, 0.0
      %v2446 = vadd.f32 %v2444, %v2445
      %v2447 = vsel %vm1129, %v2404, 0.0
      %v2448 = vadd.f32 %v2446, %v2447
      %v2449 = vsel %vm1129, %v2405, 0.0
      %v2450 = vadd.f32 %v2448, %v2449
      %v2451 = vsel %vm1129, %v2406, 0.0
      %v2452 = vadd.f32 %v2450, %v2451
      %v2453 = vsel %vm1129, %v2407, 0.0
      %v2454 = vadd.f32 %v2452, %v2453
      %v2455 = vsel %vm1129, %v2408, 0.0
      %v2456 = vadd.f32 %v2454, %v2455
      %v2457 = vsel %vm1129, %v2409, 0.0
      %v2458 = vadd.f32 %v2456, %v2457
      %v2459 = vsel %vm1129, %v2410, 0.0
      %v2460 = vadd.f32 %v2458, %v2459
      %v2461 = vsel %vm1129, %v2411, 0.0
      %v2462 = vadd.f32 %v2460, %v2461
      %v2463 = vsel %vm1129, %v2412, 0.0
      %v2464 = vadd.f32 %v2462, %v2463
      %v2465 = vsel %vm1129, %v2413, 0.0
      %v2466 = vadd.f32 %v2464, %v2465
      %v2467 = vsel %vm1129, %v2414, 0.0
      %v2468 = vadd.f32 %v2466, %v2467
      %v2469 = vsel %vm1129, %v2415, 0.0
      %v2470 = vadd.f32 %v2468, %v2469
      %v2471 = vsel %vm1129, %v2416, 0.0
      %v2472 = vadd.f32 %v2470, %v2471
      %v2473 = vsel %vm1129, %v2417, 0.0
      %v2474 = vadd.f32 %v2472, %v2473
      %v2475 = vsel %vm1129, %v2418, 0.0
      %v2476 = vadd.f32 %v2474, %v2475
      %v2477 = vsel %vm1129, %v2419, 0.0
      %v2478 = vadd.f32 %v2476, %v2477
      %v2479 = vsel %vm1129, %v2420, 0.0
      %v2480 = vadd.f32 %v2478, %v2479
      %v2481 = vsel %vm1129, %v2421, 0.0
      %v2482 = vadd.f32 %v2480, %v2481
      %v2483 = vsel %vm1129, %v2422, 0.0
      %v2484 = vadd.f32 %v2482, %v2483
      %v2485 = vsel %vm1129, %v2423, 0.0
      %v2486 = vadd.f32 %v2484, %v2485
      %v2487 = vrot.slane %v2486, 4
      %v2488 = vadd.f32 %v2486, %v2487
      %v2489 = vrot.slane %v2488, 2
      %v2490 = vadd.f32 %v2488, %v2489
      %v2491 = vrot.slane %v2490, 1
      %v2492 = vadd.f32 %v2490, %v2491
      %v2493 = vrcp.pop 256.0
      %v2494 = vmul.f32 %v2492, %v2493
      %v2495 = vld [vmem:[%s7] sm:$0xff]
      %v2496 = vld [vmem:[%s7 + $0x8] sm:$0xff]
      %v2497 = vld [vmem:[%s8] sm:$0x1]
      %v2499 = vsel %vm1129, %v2494, 0
      %2501 = vmatprep.subr.mxu0 0.0
      %2502 = vmatpush1.msra.mxu0 %v2495
      %2503 = vmatprep.subr.mxu0 0.0
      %2504 = vmatpush1.msra.mxu0 %v2496
      %2505 = vmatprep.subr.mxu0 0.0
      %2506 = vmatpush1.msra.mxu0 0.0
      %2507 = vmatprep.subr.mxu0 0.0
      %2508 = vmatpush1.msra.mxu0 0.0
      %2509 = vmatprep.subr.mxu0 0.0
      %2510 = vmatpush1.msra.mxu0 0.0
      %2511 = vmatprep.subr.mxu0 0.0
      %2512 = vmatpush1.msra.mxu0 0.0
      %2513 = vmatprep.subr.mxu0 0.0
      %2514 = vmatpush1.msra.mxu0 0.0
      %2515 = vmatprep.subr.mxu0 0.0
      %2516 = vmatpush1.msra.mxu0 0.0
      %2517 = vmatprep.subr.mxu0 0.0
      %2518 = vmatpush1.msra.mxu0 0.0
      %2519 = vmatprep.subr.mxu0 0.0
      %2520 = vmatpush1.msra.mxu0 0.0
      %2521 = vmatprep.subr.mxu0 0.0
      %2522 = vmatpush1.msra.mxu0 0.0
      %2523 = vmatprep.subr.mxu0 0.0
      %2524 = vmatpush1.msra.mxu0 0.0
      %2525 = vmatprep.subr.mxu0 0.0
      %2526 = vmatpush1.msra.mxu0 0.0
      %2527 = vmatprep.subr.mxu0 0.0
      %2528 = vmatpush1.msra.mxu0 0.0
      %2529 = vmatprep.subr.mxu0 0.0
      %2530 = vmatpush1.msra.mxu0 0.0
      %2531 = vmatprep.subr.mxu0 0.0
      %2532 = vmatpush1.msra.mxu0 0.0
      %2533 = vmatprep.subr.mxu0 0.0
      %2534 = vmatpush1.msra.mxu0 0.0
      %2535 = vmatprep.subr.mxu0 0.0
      %2536 = vmatpush1.msra.mxu0 0.0
      %2537 = vmatprep.subr.mxu0 0.0
      %2538 = vmatpush1.msra.mxu0 0.0
      %2539 = vmatprep.subr.mxu0 0.0
      %2540 = vmatpush1.msra.mxu0 0.0
      %2541 = vmatprep.subr.mxu0 0.0
      %2542 = vmatpush1.msra.mxu0 0.0
      %2543 = vmatprep.subr.mxu0 0.0
      %2544 = vmatpush1.msra.mxu0 0.0
      %2545 = vmatprep.subr.mxu0 0.0
      %2546 = vmatpush1.msra.mxu0 0.0
      %2547 = vmatprep.subr.mxu0 0.0
      %2548 = vmatpush1.msra.mxu0 0.0
      %2549 = vmatprep.subr.mxu0 0.0
      %2550 = vmatpush1.msra.mxu0 0.0
      %2551 = vmatprep.subr.mxu0 0.0
      %2552 = vmatpush1.msra.mxu0 0.0
      %2553 = vmatprep.subr.mxu0 0.0
      %2554 = vmatpush1.msra.mxu0 0.0
      %2555 = vmatprep.subr.mxu0 0.0
      %2556 = vmatpush1.msra.mxu0 0.0
      %2557 = vmatprep.subr.mxu0 0.0
      %2558 = vmatpush1.msra.mxu0 0.0
      %2559 = vmatprep.subr.mxu0 0.0
      %2560 = vmatpush1.msra.mxu0 0.0
      %2561 = vmatprep.subr.mxu0 0.0
      %2562 = vmatpush1.msra.mxu0 0.0
      %2563 = vmatprep.subr.mxu0 0.0
      %2564 = vmatpush1.msra.mxu0 0.0
      %2565 = vmatprep.mubr.f32.mxu0 0.0
      %2566 = vmatmul.mubr.f32.gmra.mrb[0].mxu0 %v2499
      %v2567 = vpop.f32.mrb[0].mxu0
      %v2568 = vadd.f32 %v2497, %v2567
      %v2569 = vpop.f32.mrb[0].mxu0
      %2570 = vdwg.mxu0
      %v2571 = vxor.u32 %v2568, 2147483648
      %v2572 = vmul.f32 %v2571, 1.442695
      %v2573 = vpow.pop %v2572
      %v2574 = vadd.f32 %v2573, 1.0
      %v2575 = vrcp.pop %v2574
      %v2576 = vmul.f32 1.0, %v2575
      %v2577 = vmul.f32 %v2568, %v2576
      %v2578 = vld [vmem:[%s9] sm:$0xff]
      %v2579 = vld [vmem:[%s10] sm:$0x1]
      %vm2580 = vcmask 64512
      %v2582 = vsel %vm2580, %v2577, 0
      %2584 = vmatprep.subr.mxu0 0.0
      %2585 = vmatpush1.msra.mxu0 %v2578
      %2586 = vmatprep.subr.mxu0 0.0
      %2587 = vmatpush1.msra.mxu0 0.0
      %2588 = vmatprep.subr.mxu0 0.0
      %2589 = vmatpush1.msra.mxu0 0.0
      %2590 = vmatprep.subr.mxu0 0.0
      %2591 = vmatpush1.msra.mxu0 0.0
      %2592 = vmatprep.subr.mxu0 0.0
      %2593 = vmatpush1.msra.mxu0 0.0
      %2594 = vmatprep.subr.mxu0 0.0
      %2595 = vmatpush1.msra.mxu0 0.0
      %2596 = vmatprep.subr.mxu0 0.0
      %2597 = vmatpush1.msra.mxu0 0.0
      %2598 = vmatprep.subr.mxu0 0.0
      %2599 = vmatpush1.msra.mxu0 0.0
      %2600 = vmatprep.subr.mxu0 0.0
      %2601 = vmatpush1.msra.mxu0 0.0
      %2602 = vmatprep.subr.mxu0 0.0
      %2603 = vmatpush1.msra.mxu0 0.0
      %2604 = vmatprep.subr.mxu0 0.0
      %2605 = vmatpush1.msra.mxu0 0.0
      %2606 = vmatprep.subr.mxu0 0.0
      %2607 = vmatpush1.msra.mxu0 0.0
      %2608 = vmatprep.subr.mxu0 0.0
      %2609 = vmatpush1.msra.mxu0 0.0
      %2610 = vmatprep.subr.mxu0 0.0
      %2611 = vmatpush1.msra.mxu0 0.0
      %2612 = vmatprep.subr.mxu0 0.0
      %2613 = vmatpush1.msra.mxu0 0.0
      %2614 = vmatprep.subr.mxu0 0.0
      %2615 = vmatpush1.msra.mxu0 0.0
      %2616 = vmatprep.subr.mxu0 0.0
      %2617 = vmatpush1.msra.mxu0 0.0
      %2618 = vmatprep.subr.mxu0 0.0
      %2619 = vmatpush1.msra.mxu0 0.0
      %2620 = vmatprep.subr.mxu0 0.0
      %2621 = vmatpush1.msra.mxu0 0.0
      %2622 = vmatprep.subr.mxu0 0.0
      %2623 = vmatpush1.msra.mxu0 0.0
      %2624 = vmatprep.subr.mxu0 0.0
      %2625 = vmatpush1.msra.mxu0 0.0
      %2626 = vmatprep.subr.mxu0 0.0
      %2627 = vmatpush1.msra.mxu0 0.0
      %2628 = vmatprep.subr.mxu0 0.0
      %2629 = vmatpush1.msra.mxu0 0.0
      %2630 = vmatprep.subr.mxu0 0.0
      %2631 = vmatpush1.msra.mxu0 0.0
      %2632 = vmatprep.subr.mxu0 0.0
      %2633 = vmatpush1.msra.mxu0 0.0
      %2634 = vmatprep.subr.mxu0 0.0
      %2635 = vmatpush1.msra.mxu0 0.0
      %2636 = vmatprep.subr.mxu0 0.0
      %2637 = vmatpush1.msra.mxu0 0.0
      %2638 = vmatprep.subr.mxu0 0.0
      %2639 = vmatpush1.msra.mxu0 0.0
      %2640 = vmatprep.subr.mxu0 0.0
      %2641 = vmatpush1.msra.mxu0 0.0
      %2642 = vmatprep.subr.mxu0 0.0
      %2643 = vmatpush1.msra.mxu0 0.0
      %2644 = vmatprep.subr.mxu0 0.0
      %2645 = vmatpush1.msra.mxu0 0.0
      %2646 = vmatprep.subr.mxu0 0.0
      %2647 = vmatpush1.msra.mxu0 0.0
      %2648 = vmatprep.mubr.f32.mxu0 0.0
      %2649 = vmatmul.mubr.f32.gmra.mrb[0].mxu0 %v2582
      %v2650 = vpop.f32.mrb[0].mxu0
      %v2651 = vadd.f32 %v2579, %v2650
      %v2652 = vpop.f32.mrb[0].mxu0
      %2653 = vdwg.mxu0
      %v2654 = vxor.u32 %v2651, 2147483648
      %v2655 = vmul.f32 %v2654, 1.442695
      %v2656 = vpow.pop %v2655
      %v2657 = vadd.f32 %v2656, 1.0
      %v2658 = vrcp.pop %v2657
      %v2659 = vmul.f32 1.0, %v2658
      %v2660 = vlaneseq
      %v2661 = vshrl.u32 %v2660, 7
      %v2662 = vsub.s32 0, %v2661
      %v2663 = vrot.slane %v2659, %v2662
      %v2664 = vmul.f32 %v2392, %v2663
      %v2665 = vmul.f32 %v2393, %v2663
      %v2666 = vmul.f32 %v2394, %v2663
      %v2667 = vmul.f32 %v2395, %v2663
      %v2668 = vmul.f32 %v2396, %v2663
      %v2669 = vmul.f32 %v2397, %v2663
      %v2670 = vmul.f32 %v2398, %v2663
      %v2671 = vmul.f32 %v2399, %v2663
      %v2672 = vmul.f32 %v2400, %v2663
      %v2673 = vmul.f32 %v2401, %v2663
      %v2674 = vmul.f32 %v2402, %v2663
      %v2675 = vmul.f32 %v2403, %v2663
      %v2676 = vmul.f32 %v2404, %v2663
      %v2677 = vmul.f32 %v2405, %v2663
      %v2678 = vmul.f32 %v2406, %v2663
      %v2679 = vmul.f32 %v2407, %v2663
      %v2680 = vmul.f32 %v2408, %v2663
      %v2681 = vmul.f32 %v2409, %v2663
      %v2682 = vmul.f32 %v2410, %v2663
      %v2683 = vmul.f32 %v2411, %v2663
      %v2684 = vmul.f32 %v2412, %v2663
      %v2685 = vmul.f32 %v2413, %v2663
      %v2686 = vmul.f32 %v2414, %v2663
      %v2687 = vmul.f32 %v2415, %v2663
      %v2688 = vmul.f32 %v2416, %v2663
      %v2689 = vmul.f32 %v2417, %v2663
      %v2690 = vmul.f32 %v2418, %v2663
      %v2691 = vmul.f32 %v2419, %v2663
      %v2692 = vmul.f32 %v2420, %v2663
      %v2693 = vmul.f32 %v2421, %v2663
      %v2694 = vmul.f32 %v2422, %v2663
      %v2695 = vmul.f32 %v2423, %v2663
      %v2696 = vld [vmem:[%s11] sm:$0xff]
      %v2697 = vld [vmem:[%s11 + $0x8] sm:$0xff]
      %v2699 = vsel %vm1129, %v2664, 0
      %v2702 = vsel %vm1129, %v2665, 0
      %v2705 = vsel %vm1129, %v2666, 0
      %v2708 = vsel %vm1129, %v2667, 0
      %v2711 = vsel %vm1129, %v2668, 0
      %v2714 = vsel %vm1129, %v2669, 0
      %v2717 = vsel %vm1129, %v2670, 0
      %v2720 = vsel %vm1129, %v2671, 0
      %v2723 = vsel %vm1129, %v2672, 0
      %v2726 = vsel %vm1129, %v2673, 0
      %v2729 = vsel %vm1129, %v2674, 0
      %v2732 = vsel %vm1129, %v2675, 0
      %v2735 = vsel %vm1129, %v2676, 0
      %v2738 = vsel %vm1129, %v2677, 0
      %v2741 = vsel %vm1129, %v2678, 0
      %v2744 = vsel %vm1129, %v2679, 0
      %v2747 = vsel %vm1129, %v2680, 0
      %v2750 = vsel %vm1129, %v2681, 0
      %v2753 = vsel %vm1129, %v2682, 0
      %v2756 = vsel %vm1129, %v2683, 0
      %v2759 = vsel %vm1129, %v2684, 0
      %v2762 = vsel %vm1129, %v2685, 0
      %v2765 = vsel %vm1129, %v2686, 0
      %v2768 = vsel %vm1129, %v2687, 0
      %v2771 = vsel %vm1129, %v2688, 0
      %v2774 = vsel %vm1129, %v2689, 0
      %v2777 = vsel %vm1129, %v2690, 0
      %v2780 = vsel %vm1129, %v2691, 0
      %v2783 = vsel %vm1129, %v2692, 0
      %v2786 = vsel %vm1129, %v2693, 0
      %v2789 = vsel %vm1129, %v2694, 0
      %v2792 = vsel %vm1129, %v2695, 0
      %2794 = vmatprep.subr.mxu0 0.0
      %2795 = vmatpush1.msra.mxu0 %v2696
      %2796 = vmatprep.subr.mxu0 0.0
      %2797 = vmatpush1.msra.mxu0 %v2697
      %2798 = vmatprep.subr.mxu0 0.0
      %2799 = vmatpush1.msra.mxu0 0.0
      %2800 = vmatprep.subr.mxu0 0.0
      %2801 = vmatpush1.msra.mxu0 0.0
      %2802 = vmatprep.subr.mxu0 0.0
      %2803 = vmatpush1.msra.mxu0 0.0
      %2804 = vmatprep.subr.mxu0 0.0
      %2805 = vmatpush1.msra.mxu0 0.0
      %2806 = vmatprep.subr.mxu0 0.0
      %2807 = vmatpush1.msra.mxu0 0.0
      %2808 = vmatprep.subr.mxu0 0.0
      %2809 = vmatpush1.msra.mxu0 0.0
      %2810 = vmatprep.subr.mxu0 0.0
      %2811 = vmatpush1.msra.mxu0 0.0
      %2812 = vmatprep.subr.mxu0 0.0
      %2813 = vmatpush1.msra.mxu0 0.0
      %2814 = vmatprep.subr.mxu0 0.0
      %2815 = vmatpush1.msra.mxu0 0.0
      %2816 = vmatprep.subr.mxu0 0.0
      %2817 = vmatpush1.msra.mxu0 0.0
      %2818 = vmatprep.subr.mxu0 0.0
      %2819 = vmatpush1.msra.mxu0 0.0
      %2820 = vmatprep.subr.mxu0 0.0
      %2821 = vmatpush1.msra.mxu0 0.0
      %2822 = vmatprep.subr.mxu0 0.0
      %2823 = vmatpush1.msra.mxu0 0.0
      %2824 = vmatprep.subr.mxu0 0.0
      %2825 = vmatpush1.msra.mxu0 0.0
      %2826 = vmatprep.subr.mxu0 0.0
      %2827 = vmatpush1.msra.mxu0 0.0
      %2828 = vmatprep.subr.mxu0 0.0
      %2829 = vmatpush1.msra.mxu0 0.0
      %2830 = vmatprep.subr.mxu0 0.0
      %2831 = vmatpush1.msra.mxu0 0.0
      %2832 = vmatprep.subr.mxu0 0.0
      %2833 = vmatpush1.msra.mxu0 0.0
      %2834 = vmatprep.subr.mxu0 0.0
      %2835 = vmatpush1.msra.mxu0 0.0
      %2836 = vmatprep.subr.mxu0 0.0
      %2837 = vmatpush1.msra.mxu0 0.0
      %2838 = vmatprep.subr.mxu0 0.0
      %2839 = vmatpush1.msra.mxu0 0.0
      %2840 = vmatprep.subr.mxu0 0.0
      %2841 = vmatpush1.msra.mxu0 0.0
      %2842 = vmatprep.subr.mxu0 0.0
      %2843 = vmatpush1.msra.mxu0 0.0
      %2844 = vmatprep.subr.mxu0 0.0
      %2845 = vmatpush1.msra.mxu0 0.0
      %2846 = vmatprep.subr.mxu0 0.0
      %2847 = vmatpush1.msra.mxu0 0.0
      %2848 = vmatprep.subr.mxu0 0.0
      %2849 = vmatpush1.msra.mxu0 0.0
      %2850 = vmatprep.subr.mxu0 0.0
      %2851 = vmatpush1.msra.mxu0 0.0
      %2852 = vmatprep.subr.mxu0 0.0
      %2853 = vmatpush1.msra.mxu0 0.0
      %2854 = vmatprep.subr.mxu0 0.0
      %2855 = vmatpush1.msra.mxu0 0.0
      %2856 = vmatprep.subr.mxu0 0.0
      %2857 = vmatpush1.msra.mxu0 0.0
      %2858 = vmatprep.mubr.f32.mxu0 0.0
      %2859 = vmatmul.mubr.f32.gmra.mrb[0].mxu0 %v2699
      %v2860 = vpop.f32.mrb[0].mxu0
      %v2861 = vadd.f32 0.0, %v2860
      %v2862 = vpop.f32.mrb[0].mxu0
      %2863 = vmatprep.mubr.f32.mxu0 0.0
      %2864 = vmatmul.mubr.f32.gmra.mrb[0].mxu0 %v2702
      %v2865 = vpop.f32.mrb[0].mxu0
      %v2866 = vadd.f32 0.0, %v2865
      %v2867 = vpop.f32.mrb[0].mxu0
      %2868 = vmatprep.mubr.f32.mxu0 0.0
      %2869 = vmatmul.mubr.f32.gmra.mrb[0].mxu0 %v2705
      %v2870 = vpop.f32.mrb[0].mxu0
      %v2871 = vadd.f32 0.0, %v2870
      %v2872 = vpop.f32.mrb[0].mxu0
      %2873 = vmatprep.mubr.f32.mxu0 0.0
      %2874 = vmatmul.mubr.f32.gmra.mrb[0].mxu0 %v2708
      %v2875 = vpop.f32.mrb[0].mxu0
      %v2876 = vadd.f32 0.0, %v2875
      %v2877 = vpop.f32.mrb[0].mxu0
      %2878 = vmatprep.mubr.f32.mxu0 0.0
      %2879 = vmatmul.mubr.f32.gmra.mrb[0].mxu0 %v2711
      %v2880 = vpop.f32.mrb[0].mxu0
      %v2881 = vadd.f32 0.0, %v2880
      %v2882 = vpop.f32.mrb[0].mxu0
      %2883 = vmatprep.mubr.f32.mxu0 0.0
      %2884 = vmatmul.mubr.f32.gmra.mrb[0].mxu0 %v2714
      %v2885 = vpop.f32.mrb[0].mxu0
      %v2886 = vadd.f32 0.0, %v2885
      %v2887 = vpop.f32.mrb[0].mxu0
      %2888 = vmatprep.mubr.f32.mxu0 0.0
      %2889 = vmatmul.mubr.f32.gmra.mrb[0].mxu0 %v2717
      %v2890 = vpop.f32.mrb[0].mxu0
      %v2891 = vadd.f32 0.0, %v2890
      %v2892 = vpop.f32.mrb[0].mxu0
      %2893 = vmatprep.mubr.f32.mxu0 0.0
      %2894 = vmatmul.mubr.f32.gmra.mrb[0].mxu0 %v2720
      %v2895 = vpop.f32.mrb[0].mxu0
      %v2896 = vadd.f32 0.0, %v2895
      %v2897 = vpop.f32.mrb[0].mxu0
      %2898 = vmatprep.mubr.f32.mxu0 0.0
      %2899 = vmatmul.mubr.f32.gmra.mrb[0].mxu0 %v2723
      %v2900 = vpop.f32.mrb[0].mxu0
      %v2901 = vadd.f32 0.0, %v2900
      %v2902 = vpop.f32.mrb[0].mxu0
      %2903 = vmatprep.mubr.f32.mxu0 0.0
      %2904 = vmatmul.mubr.f32.gmra.mrb[0].mxu0 %v2726
      %v2905 = vpop.f32.mrb[0].mxu0
      %v2906 = vadd.f32 0.0, %v2905
      %v2907 = vpop.f32.mrb[0].mxu0
      %2908 = vmatprep.mubr.f32.mxu0 0.0
      %2909 = vmatmul.mubr.f32.gmra.mrb[0].mxu0 %v2729
      %v2910 = vpop.f32.mrb[0].mxu0
      %v2911 = vadd.f32 0.0, %v2910
      %v2912 = vpop.f32.mrb[0].mxu0
      %2913 = vmatprep.mubr.f32.mxu0 0.0
      %2914 = vmatmul.mubr.f32.gmra.mrb[0].mxu0 %v2732
      %v2915 = vpop.f32.mrb[0].mxu0
      %v2916 = vadd.f32 0.0, %v2915
      %v2917 = vpop.f32.mrb[0].mxu0
      %2918 = vmatprep.mubr.f32.mxu0 0.0
      %2919 = vmatmul.mubr.f32.gmra.mrb[0].mxu0 %v2735
      %v2920 = vpop.f32.mrb[0].mxu0
      %v2921 = vadd.f32 0.0, %v2920
      %v2922 = vpop.f32.mrb[0].mxu0
      %2923 = vmatprep.mubr.f32.mxu0 0.0
      %2924 = vmatmul.mubr.f32.gmra.mrb[0].mxu0 %v2738
      %v2925 = vpop.f32.mrb[0].mxu0
      %v2926 = vadd.f32 0.0, %v2925
      %v2927 = vpop.f32.mrb[0].mxu0
      %2928 = vmatprep.mubr.f32.mxu0 0.0
      %2929 = vmatmul.mubr.f32.gmra.mrb[0].mxu0 %v2741
      %v2930 = vpop.f32.mrb[0].mxu0
      %v2931 = vadd.f32 0.0, %v2930
      %v2932 = vpop.f32.mrb[0].mxu0
      %2933 = vmatprep.mubr.f32.mxu0 0.0
      %2934 = vmatmul.mubr.f32.gmra.mrb[0].mxu0 %v2744
      %v2935 = vpop.f32.mrb[0].mxu0
      %v2936 = vadd.f32 0.0, %v2935
      %v2937 = vpop.f32.mrb[0].mxu0
      %2938 = vmatprep.mubr.f32.mxu0 0.0
      %2939 = vmatmul.mubr.f32.gmra.mrb[0].mxu0 %v2747
      %v2940 = vpop.f32.mrb[0].mxu0
      %v2941 = vadd.f32 0.0, %v2940
      %v2942 = vpop.f32.mrb[0].mxu0
      %2943 = vmatprep.mubr.f32.mxu0 0.0
      %2944 = vmatmul.mubr.f32.gmra.mrb[0].mxu0 %v2750
      %v2945 = vpop.f32.mrb[0].mxu0
      %v2946 = vadd.f32 0.0, %v2945
      %v2947 = vpop.f32.mrb[0].mxu0
      %2948 = vmatprep.mubr.f32.mxu0 0.0
      %2949 = vmatmul.mubr.f32.gmra.mrb[0].mxu0 %v2753
      %v2950 = vpop.f32.mrb[0].mxu0
      %v2951 = vadd.f32 0.0, %v2950
      %v2952 = vpop.f32.mrb[0].mxu0
      %2953 = vmatprep.mubr.f32.mxu0 0.0
      %2954 = vmatmul.mubr.f32.gmra.mrb[0].mxu0 %v2756
      %v2955 = vpop.f32.mrb[0].mxu0
      %v2956 = vadd.f32 0.0, %v2955
      %v2957 = vpop.f32.mrb[0].mxu0
      %2958 = vmatprep.mubr.f32.mxu0 0.0
      %2959 = vmatmul.mubr.f32.gmra.mrb[0].mxu0 %v2759
      %v2960 = vpop.f32.mrb[0].mxu0
      %v2961 = vadd.f32 0.0, %v2960
      %v2962 = vpop.f32.mrb[0].mxu0
      %2963 = vmatprep.mubr.f32.mxu0 0.0
      %2964 = vmatmul.mubr.f32.gmra.mrb[0].mxu0 %v2762
      %v2965 = vpop.f32.mrb[0].mxu0
      %v2966 = vadd.f32 0.0, %v2965
      %v2967 = vpop.f32.mrb[0].mxu0
      %2968 = vmatprep.mubr.f32.mxu0 0.0
      %2969 = vmatmul.mubr.f32.gmra.mrb[0].mxu0 %v2765
      %v2970 = vpop.f32.mrb[0].mxu0
      %v2971 = vadd.f32 0.0, %v2970
      %v2972 = vpop.f32.mrb[0].mxu0
      %2973 = vmatprep.mubr.f32.mxu0 0.0
      %2974 = vmatmul.mubr.f32.gmra.mrb[0].mxu0 %v2768
      %v2975 = vpop.f32.mrb[0].mxu0
      %v2976 = vadd.f32 0.0, %v2975
      %v2977 = vpop.f32.mrb[0].mxu0
      %2978 = vmatprep.mubr.f32.mxu0 0.0
      %2979 = vmatmul.mubr.f32.gmra.mrb[0].mxu0 %v2771
      %v2980 = vpop.f32.mrb[0].mxu0
      %v2981 = vadd.f32 0.0, %v2980
      %v2982 = vpop.f32.mrb[0].mxu0
      %2983 = vmatprep.mubr.f32.mxu0 0.0
      %2984 = vmatmul.mubr.f32.gmra.mrb[0].mxu0 %v2774
      %v2985 = vpop.f32.mrb[0].mxu0
      %v2986 = vadd.f32 0.0, %v2985
      %v2987 = vpop.f32.mrb[0].mxu0
      %2988 = vmatprep.mubr.f32.mxu0 0.0
      %2989 = vmatmul.mubr.f32.gmra.mrb[0].mxu0 %v2777
      %v2990 = vpop.f32.mrb[0].mxu0
      %v2991 = vadd.f32 0.0, %v2990
      %v2992 = vpop.f32.mrb[0].mxu0
      %2993 = vmatprep.mubr.f32.mxu0 0.0
      %2994 = vmatmul.mubr.f32.gmra.mrb[0].mxu0 %v2780
      %v2995 = vpop.f32.mrb[0].mxu0
      %v2996 = vadd.f32 0.0, %v2995
      %v2997 = vpop.f32.mrb[0].mxu0
      %2998 = vmatprep.mubr.f32.mxu0 0.0
      %2999 = vmatmul.mubr.f32.gmra.mrb[0].mxu0 %v2783
      %v3000 = vpop.f32.mrb[0].mxu0
      %v3001 = vadd.f32 0.0, %v3000
      %v3002 = vpop.f32.mrb[0].mxu0
      %3003 = vmatprep.mubr.f32.mxu0 0.0
      %3004 = vmatmul.mubr.f32.gmra.mrb[0].mxu0 %v2786
      %v3005 = vpop.f32.mrb[0].mxu0
      %v3006 = vadd.f32 0.0, %v3005
      %v3007 = vpop.f32.mrb[0].mxu0
      %3008 = vmatprep.mubr.f32.mxu0 0.0
      %3009 = vmatmul.mubr.f32.gmra.mrb[0].mxu0 %v2789
      %v3010 = vpop.f32.mrb[0].mxu0
      %v3011 = vadd.f32 0.0, %v3010
      %v3012 = vpop.f32.mrb[0].mxu0
      %3013 = vmatprep.mubr.f32.mxu0 0.0
      %3014 = vmatmul.mubr.f32.gmra.mrb[0].mxu0 %v2792
      %v3015 = vpop.f32.mrb[0].mxu0
      %v3016 = vadd.f32 0.0, %v3015
      %v3017 = vpop.f32.mrb[0].mxu0
      %3018 = vdwg.mxu0
      %v3019 = vld [vmem:[%s12] sm:$0x1]
      %v3021 = vlaneseq
      %v3022 = vshrl.u32 %v3021, 7
      %v3023 = vsub.s32 0, %v3022
      %v3024 = vrot.slane %v3019, %v3023
      %v3026 = vmul.f32 %v2861, %v3024
      %v3027 = vmul.f32 %v2866, %v3024
      %v3028 = vmul.f32 %v2871, %v3024
      %v3029 = vmul.f32 %v2876, %v3024
      %v3030 = vmul.f32 %v2881, %v3024
      %v3031 = vmul.f32 %v2886, %v3024
      %v3032 = vmul.f32 %v2891, %v3024
      %v3033 = vmul.f32 %v2896, %v3024
      %v3034 = vmul.f32 %v2901, %v3024
      %v3035 = vmul.f32 %v2906, %v3024
      %v3036 = vmul.f32 %v2911, %v3024
      %v3037 = vmul.f32 %v2916, %v3024
      %v3038 = vmul.f32 %v2921, %v3024
      %v3039 = vmul.f32 %v2926, %v3024
      %v3040 = vmul.f32 %v2931, %v3024
      %v3041 = vmul.f32 %v2936, %v3024
      %v3042 = vmul.f32 %v2941, %v3024
      %v3043 = vmul.f32 %v2946, %v3024
      %v3044 = vmul.f32 %v2951, %v3024
      %v3045 = vmul.f32 %v2956, %v3024
      %v3046 = vmul.f32 %v2961, %v3024
      %v3047 = vmul.f32 %v2966, %v3024
      %v3048 = vmul.f32 %v2971, %v3024
      %v3049 = vmul.f32 %v2976, %v3024
      %v3050 = vmul.f32 %v2981, %v3024
      %v3051 = vmul.f32 %v2986, %v3024
      %v3052 = vmul.f32 %v2991, %v3024
      %v3053 = vmul.f32 %v2996, %v3024
      %v3054 = vmul.f32 %v3001, %v3024
      %v3055 = vmul.f32 %v3006, %v3024
      %v3056 = vmul.f32 %v3011, %v3024
      %v3057 = vmul.f32 %v3016, %v3024
      %v3058 = vld [vmem:[%s13] sm:$0x1]
      %v3060 = vlaneseq
      %v3061 = vshrl.u32 %v3060, 7
      %v3062 = vsub.s32 0, %v3061
      %v3063 = vrot.slane %v3058, %v3062
      %v3065 = vadd.f32 %v3026, %v3063
      %v3066 = vadd.f32 %v3027, %v3063
      %v3067 = vadd.f32 %v3028, %v3063
      %v3068 = vadd.f32 %v3029, %v3063
      %v3069 = vadd.f32 %v3030, %v3063
      %v3070 = vadd.f32 %v3031, %v3063
      %v3071 = vadd.f32 %v3032, %v3063
      %v3072 = vadd.f32 %v3033, %v3063
      %v3073 = vadd.f32 %v3034, %v3063
      %v3074 = vadd.f32 %v3035, %v3063
      %v3075 = vadd.f32 %v3036, %v3063
      %v3076 = vadd.f32 %v3037, %v3063
      %v3077 = vadd.f32 %v3038, %v3063
      %v3078 = vadd.f32 %v3039, %v3063
      %v3079 = vadd.f32 %v3040, %v3063
      %v3080 = vadd.f32 %v3041, %v3063
      %v3081 = vadd.f32 %v3042, %v3063
      %v3082 = vadd.f32 %v3043, %v3063
      %v3083 = vadd.f32 %v3044, %v3063
      %v3084 = vadd.f32 %v3045, %v3063
      %v3085 = vadd.f32 %v3046, %v3063
      %v3086 = vadd.f32 %v3047, %v3063
      %v3087 = vadd.f32 %v3048, %v3063
      %v3088 = vadd.f32 %v3049, %v3063
      %v3089 = vadd.f32 %v3050, %v3063
      %v3090 = vadd.f32 %v3051, %v3063
      %v3091 = vadd.f32 %v3052, %v3063
      %v3092 = vadd.f32 %v3053, %v3063
      %v3093 = vadd.f32 %v3054, %v3063
      %v3094 = vadd.f32 %v3055, %v3063
      %v3095 = vadd.f32 %v3056, %v3063
      %v3096 = vadd.f32 %v3057, %v3063
      %v3097 = vadd.f32 %v3065, %v468
      %v3098 = vadd.f32 %v3066, %v469
      %v3099 = vadd.f32 %v3067, %v470
      %v3100 = vadd.f32 %v3068, %v471
      %v3101 = vadd.f32 %v3069, %v472
      %v3102 = vadd.f32 %v3070, %v473
      %v3103 = vadd.f32 %v3071, %v474
      %v3104 = vadd.f32 %v3072, %v475
      %v3105 = vadd.f32 %v3073, %v476
      %v3106 = vadd.f32 %v3074, %v477
      %v3107 = vadd.f32 %v3075, %v478
      %v3108 = vadd.f32 %v3076, %v479
      %v3109 = vadd.f32 %v3077, %v480
      %v3110 = vadd.f32 %v3078, %v481
      %v3111 = vadd.f32 %v3079, %v482
      %v3112 = vadd.f32 %v3080, %v483
      %v3113 = vadd.f32 %v3081, %v484
      %v3114 = vadd.f32 %v3082, %v485
      %v3115 = vadd.f32 %v3083, %v486
      %v3116 = vadd.f32 %v3084, %v487
      %v3117 = vadd.f32 %v3085, %v488
      %v3118 = vadd.f32 %v3086, %v489
      %v3119 = vadd.f32 %v3087, %v490
      %v3120 = vadd.f32 %v3088, %v491
      %v3121 = vadd.f32 %v3089, %v492
      %v3122 = vadd.f32 %v3090, %v493
      %v3123 = vadd.f32 %v3091, %v494
      %v3124 = vadd.f32 %v3092, %v495
      %v3125 = vadd.f32 %v3093, %v496
      %v3126 = vadd.f32 %v3094, %v497
      %v3127 = vadd.f32 %v3095, %v498
      %v3128 = vadd.f32 %v3096, %v499
      %3129 = vst.msk [vmem:[%s467] sm:$0xff] %vm501, %v3097
      %3130 = vst.msk [vmem:[%s467 + $0x8] sm:$0xff] %vm501, %v3098
      %3131 = vst.msk [vmem:[%s467 + $0x10] sm:$0xff] %vm501, %v3099
      %3132 = vst.msk [vmem:[%s467 + $0x18] sm:$0xff] %vm501, %v3100
      %3133 = vst.msk [vmem:[%s467 + $0x20] sm:$0xff] %vm501, %v3101
      %3134 = vst.msk [vmem:[%s467 + $0x28] sm:$0xff] %vm501, %v3102
      %3135 = vst.msk [vmem:[%s467 + $0x30] sm:$0xff] %vm501, %v3103
      %3136 = vst.msk [vmem:[%s467 + $0x38] sm:$0xff] %vm501, %v3104
      %3137 = vst.msk [vmem:[%s467 + $0x40] sm:$0xff] %vm501, %v3105
      %3138 = vst.msk [vmem:[%s467 + $0x48] sm:$0xff] %vm501, %v3106
      %3139 = vst.msk [vmem:[%s467 + $0x50] sm:$0xff] %vm501, %v3107
      %3140 = vst.msk [vmem:[%s467 + $0x58] sm:$0xff] %vm501, %v3108
      %3141 = vst.msk [vmem:[%s467 + $0x60] sm:$0xff] %vm501, %v3109
      %3142 = vst.msk [vmem:[%s467 + $0x68] sm:$0xff] %vm501, %v3110
      %3143 = vst.msk [vmem:[%s467 + $0x70] sm:$0xff] %vm501, %v3111
      %3144 = vst.msk [vmem:[%s467 + $0x78] sm:$0xff] %vm501, %v3112
      %3145 = vst.msk [vmem:[%s467 + $0x80] sm:$0xff] %vm501, %v3113
      %3146 = vst.msk [vmem:[%s467 + $0x88] sm:$0xff] %vm501, %v3114
      %3147 = vst.msk [vmem:[%s467 + $0x90] sm:$0xff] %vm501, %v3115
      %3148 = vst.msk [vmem:[%s467 + $0x98] sm:$0xff] %vm501, %v3116
      %3149 = vst.msk [vmem:[%s467 + $0xa0] sm:$0xff] %vm501, %v3117
      %3150 = vst.msk [vmem:[%s467 + $0xa8] sm:$0xff] %vm501, %v3118
      %3151 = vst.msk [vmem:[%s467 + $0xb0] sm:$0xff] %vm501, %v3119
      %3152 = vst.msk [vmem:[%s467 + $0xb8] sm:$0xff] %vm501, %v3120
      %3153 = vst.msk [vmem:[%s467 + $0xc0] sm:$0xff] %vm501, %v3121
      %3154 = vst.msk [vmem:[%s467 + $0xc8] sm:$0xff] %vm501, %v3122
      %3155 = vst.msk [vmem:[%s467 + $0xd0] sm:$0xff] %vm501, %v3123
      %3156 = vst.msk [vmem:[%s467 + $0xd8] sm:$0xff] %vm501, %v3124
      %3157 = vst.msk [vmem:[%s467 + $0xe0] sm:$0xff] %vm501, %v3125
      %3158 = vst.msk [vmem:[%s467 + $0xe8] sm:$0xff] %vm501, %v3126
      %3159 = vst.msk [vmem:[%s467 + $0xf0] sm:$0xff] %vm501, %v3127
      %3160 = vst.msk [vmem:[%s467 + $0xf8] sm:$0xff] %vm501, %v3128
      %p3161 = scmp.lt.s32.totalorder %s25, 1
      %s3162 = scalar_select %p3161, %s25, 1
      %s3163 = smul.addr %s3162, 32
      %s3164 = smul.addr %s3163, 8
      %s3165 = scalar_lea.vmem %s14, %s3164
      // Predicated region
      $region77: #{tpu_custom_call.1} parent=75 // pred_check
        %p3166 = pneg %p342
      $region78: #{tpu_custom_call.1} parent=75 // pred_check_branch
        %3168 = sbr.rel (%p3166) target = $region80
      $region79: #{tpu_custom_call.1} parent=75 // pred_region
        _
      $region80: #{tpu_custom_call.1} parent=75 // pred_fallthru
        _
    $region76: #{tpu_custom_call.1} parent=5 // pred_fallthru
      _
    %p3169 = scmp.le.s32.totalorder 2, %s20
    // Predicated region
    $region81: #{tpu_custom_call.1} parent=5 // pred_check
      %p3170 = pneg %p3169
    $region82: #{tpu_custom_call.1} parent=5 // pred_check_branch
      %3172 = sbr.rel (%p3170) target = $region84
    $region83: #{tpu_custom_call.1} parent=5 // pred_region
      %s3173 = ssub.s32 %s20, 2
      // Predicated region
      $region85: #{tpu_custom_call.1} parent=83 // pred_check
        %p3174 = pneg %p348
      $region86: #{tpu_custom_call.1} parent=83 // pred_check_branch
        %3176 = sbr.rel (%p3174) target = $region88
      $region87: #{tpu_custom_call.1} parent=83 // pred_region
        %p3177 = scmp.lt.s32.totalorder %s26, 1
        %s3178 = scalar_select %p3177, %s26, 1
        %s3179 = smul.addr %s3178, 32
        %s3180 = smul.addr %s3179, 8
        %s3181 = scalar_lea.vmem %s14, %s3180
      $region88: #{tpu_custom_call.1} parent=83 // pred_fallthru
        _
    $region84: #{tpu_custom_call.1} parent=5 // pred_fallthru
      _
  $region6: #{tpu_custom_call.1} parent=0 // loop_footer
    %s24 = sadd.s32 1, %s20
  $region7: #{tpu_custom_call.1} parent=0 // loop_footer_branch
    %19 = sbr.rel target = $region3
  $region8: #{tpu_custom_call.1} parent=0 // loop_exit
    _

</llo_original>
